<compile_context>
chip_gen: v7x
topology: tpu7x:2x2x1
jax: 0.10.0
libtpu: 0.0.40
codegen_flags: <defaults>
</compile_context>

<pallas_src>
import jax
import jax.numpy as jnp
from jax import lax
from jax.experimental import pallas as pl
from jax.experimental.pallas import tpu as pltpu  # noqa: F401  (TPU backend)

# ---- static configuration (small, consistent with the module) --------------
B = 2               # batch
IN_CH = 4           # in_channel
OUT_CH = 32         # out_channel  (C)
MOD_INTERVAL = 8    # T (decoded sequence length)
NUM_LAYERS = 2      # GRU layers


def dec_recurrent_kernel(x_ref, h0_ref,
                         wgi0_ref, bgi0_ref, whh0_ref, bhh0_ref,
                         w1f_ref, b1f_ref, whh1n_ref, bhh1n_ref,
                         wblk_ref, bblk_ref, out_ref):
    C = OUT_CH
    T = MOD_INTERVAL
    G = 3 * C

    # mean of the two encoded halves: x[:, :C] + x[:, C:]
    x = x_ref[...]                                   # [B, 2C]
    mean_feat = x[:, :C] + x[:, C:2 * C]             # [B, C]

    # --- hoisted weight/bias loads (outside the fully-unrolled t-loop) -------
    whh0 = whh0_ref[...]                             # [C, 3C]
    bhh0 = bhh0_ref[...]                             # [1, 3C]
    w1f = w1f_ref[...]                               # [2C, 3C]
    b1f = b1f_ref[...]                               # [1, 3C]
    whh1n = whh1n_ref[...]                           # [C, C]
    bhh1n = bhh1n_ref[...]                           # [1, C]

    # --- layer-0 input gates for ALL timesteps in one matmul -----------------
    # (mean_decoder Linear fused with GRU layer-0 W_ih in the wrapper)
    gi0_all = jnp.dot(mean_feat, wgi0_ref[...],
                      preferred_element_type=jnp.float32) + bgi0_ref[...]   # [B, T*3C]

    h0 = h0_ref[0]                                   # layer-0 hidden [B, C]
    h1 = h0_ref[1]                                   # layer-1 hidden [B, C]

    tops = []
    for t in range(T):
        gi0 = gi0_all[:, t * G:(t + 1) * G]          # [B, 3C]  (off the serial chain)

        # ---- GRU layer 0 (input gates precomputed) ----
        gh0 = jnp.dot(h0, whh0, preferred_element_type=jnp.float32) + bhh0  # [B, 3C]
        rz0 = jax.nn.sigmoid(gi0[:, :2 * C] + gh0[:, :2 * C])   # one wide EUP push
        r0 = rz0[:, :C]
        z0 = rz0[:, C:2 * C]
        n0 = jnp.tanh(gi0[:, 2 * C:] + r0 * gh0[:, 2 * C:])
        h0 = (1.0 - z0) * n0 + z0 * h0

        # ---- GRU layer 1 (gi+gh fused for r/z and gi_n; gh_n separate) ----
        xh = jnp.concatenate([h0, h1], axis=1)                   # [B, 2C]
        g1 = jnp.dot(xh, w1f, preferred_element_type=jnp.float32) + b1f      # [B, 3C]
        gh1n = jnp.dot(h1, whh1n, preferred_element_type=jnp.float32) + bhh1n  # [B, C]
        rz1 = jax.nn.sigmoid(g1[:, :2 * C])
        r1 = rz1[:, :C]
        z1 = rz1[:, C:2 * C]
        n1 = jnp.tanh(g1[:, 2 * C:] + r1 * gh1n)
        h1 = (1.0 - z1) * n1 + z1 * h1
        tops.append(h1)

    # --- deferred decoder projection: single matmul + single lane-dense store
    h_cat = jnp.concatenate(tops, axis=1)                        # [B, T*C]
    dec = jnp.dot(h_cat, wblk_ref[...],
                  preferred_element_type=jnp.float32) + bblk_ref[...]        # [B, T*C_in]
    out_ref[...] = dec


def _prepare_fused_params(params):
    """Host/wrapper-side weight re-packing (pure layout/algebra, no semantics change)."""
    wmean, bmean, wih, whh, bih, bhh, wdec, bdec = params
    C, T = OUT_CH, MOD_INTERVAL
    hp = lax.Precision.HIGHEST

    # Fuse mean_decoder with the GRU layer-0 input projection:
    #   gi0_t = enc_t @ Wih0 + bih0 = mean_feat @ (Wmean_t @ Wih0) + (bmean_t @ Wih0 + bih0)
    wmean3 = wmean.reshape(C, T, C)                                          # [C, T, C]
    wgi0 = jnp.einsum('ctk,kg->ctg', wmean3, wih[0],
                      precision=hp).reshape(C, T * 3 * C)                    # [C, T*3C]
    bgi0 = (jnp.dot(bmean.reshape(T, C), wih[0], precision=hp)
            + bih[0]).reshape(1, T * 3 * C)                                  # [1, T*3C]

    whh0 = whh[0]                                                            # [C, 3C]
    bhh0 = bhh[0]                                                            # [1, 3C]

    # Layer-1 fused weight: rows [0:C] act on the layer-0 output, rows [C:2C] on h1.
    # Columns [:2C] produce gi_rz + gh_rz in one push; columns [2C:] produce gi_n only.
    w1_bot = whh[1].at[:, 2 * C:].set(0.0)                                   # [C, 3C]
    w1f = jnp.concatenate([wih[1], w1_bot], axis=0)                          # [2C, 3C]
    b1f = bih[1] + bhh[1].at[:, 2 * C:].set(0.0)                             # [1, 3C]
    whh1n = whh[1][:, 2 * C:]                                                # [C, C]
    bhh1n = bhh[1][:, 2 * C:]                                                # [1, C]

    # Block-diagonal decoder weight so all T output projections run as ONE matmul
    # producing a lane-dense [B, T*IN_CH] slab.
    wblk = jnp.kron(jnp.eye(T, dtype=wdec.dtype), wdec)                      # [T*C, T*C_in]
    bblk = jnp.tile(bdec, (1, T))                                            # [1, T*C_in]

    return (wgi0, bgi0, whh0, bhh0, w1f, b1f, whh1n, bhh1n, wblk, bblk)


def dec_recurrent_block(x, hidden_state, params):
    """Wrapper. x: [B, 2*OUT_CH], hidden_state: [>=L, B, OUT_CH].
    Returns [B, IN_CH, MOD_INTERVAL] (matches PyTorch forward)."""
    fused = _prepare_fused_params(params)
    h0 = hidden_state[-NUM_LAYERS:]                   # [L, B, C]

    args = (x.astype(jnp.float32), h0.astype(jnp.float32)) + tuple(
        a.astype(jnp.float32) for a in fused)

    def full_spec(shape):
        return pl.BlockSpec(shape, lambda i, _s=shape: (0,) * len(_s))

    out_flat = pl.pallas_call(
        dec_recurrent_kernel,
        out_shape=jax.ShapeDtypeStruct((B, MOD_INTERVAL * IN_CH), jnp.float32),
        grid=(1,),
        in_specs=[full_spec(a.shape) for a in args],
        out_specs=full_spec((B, MOD_INTERVAL * IN_CH)),
    )(*args)

    # lane-dense [B, T*C_in] -> [B, T, C_in] -> permute(0, 2, 1) -> [B, C_in, T]
    return jnp.transpose(out_flat.reshape(B, MOD_INTERVAL, IN_CH), (0, 2, 1))


def reference(x, hidden_state, params):
    """Pure-JAX reference mirroring the PyTorch forward (for verification)."""
    wmean, bmean, wih, whh, bih, bhh, wdec, bdec = params
    C = OUT_CH
    mean_feat = x[:, :C] + x[:, C:]
    enc = (mean_feat @ wmean + bmean[0]).reshape(B, MOD_INTERVAL, C)
    h = [hidden_state[-NUM_LAYERS:][l] for l in range(NUM_LAYERS)]
    outs = []
    for t in range(MOD_INTERVAL):
        xt = enc[:, t]
        for l in range(NUM_LAYERS):
            gi = xt @ wih[l] + bih[l, 0]
            gh = h[l] @ whh[l] + bhh[l, 0]
            r = jax.nn.sigmoid(gi[:, :C] + gh[:, :C])
            z = jax.nn.sigmoid(gi[:, C:2 * C] + gh[:, C:2 * C])
            n = jnp.tanh(gi[:, 2 * C:] + r * gh[:, 2 * C:])
            h[l] = (1.0 - z) * n + z * h[l]
            xt = h[l]
        outs.append(xt @ wdec + bdec[0])
    dec = jnp.stack(outs, axis=1)                     # [B, T, C_in]
    return jnp.transpose(dec, (0, 2, 1))


def make_params(key):
    """Deterministic synthetic parameters (shapes from the module __init__)."""
    C, T, L = OUT_CH, MOD_INTERVAL, NUM_LAYERS
    ks = jax.random.split(key, 8)
    s = 0.1
    wmean = s * jax.random.normal(ks[0], (C, C * T), jnp.float32)      # mean_decoder.weight^T
    bmean = s * jax.random.normal(ks[1], (1, C * T), jnp.float32)      # mean_decoder.bias
    wih = s * jax.random.normal(ks[2], (L, C, 3 * C), jnp.float32)     # weight_ih_l{k}^T, [r|z|n]
    whh = s * jax.random.normal(ks[3], (L, C, 3 * C), jnp.float32)     # weight_hh_l{k}^T
    bih = s * jax.random.normal(ks[4], (L, 1, 3 * C), jnp.float32)
    bhh = s * jax.random.normal(ks[5], (L, 1, 3 * C), jnp.float32)
    wdec = s * jax.random.normal(ks[6], (C, IN_CH), jnp.float32)       # dec_rnn_layer.weight^T
    bdec = s * jax.random.normal(ks[7], (1, IN_CH), jnp.float32)
    return (wmean, bmean, wih, whh, bih, bhh, wdec, bdec)


if __name__ == "__main__":
    key = jax.random.PRNGKey(0)
    k_x, k_h, k_p = jax.random.split(key, 3)

    x = jax.random.normal(k_x, (B, 2 * OUT_CH), jnp.float32)
    hidden_state = jax.random.normal(k_h, (NUM_LAYERS, B, OUT_CH), jnp.float32)
    params = make_params(k_p)

    out = dec_recurrent_block(x, hidden_state, params)
    out = jax.block_until_ready(out)

    ref = reference(x, hidden_state, params)
    assert out.shape == (B, IN_CH, MOD_INTERVAL), out.shape
    assert jnp.allclose(out, ref, atol=2e-4, rtol=2e-4), "Pallas kernel mismatch vs reference"

    print("KERNEL_OK")
</pallas_src>

<mosaic_0001>
module attributes {stable_mosaic.version = 11 : i64} {
  func.func @dec_recurrent_kernel(%arg0: i32, %arg1: memref<2x64xf32, #tpu.memory_space<vmem>>, %arg2: memref<2x2x32xf32, #tpu.memory_space<vmem>>, %arg3: memref<32x768xf32, #tpu.memory_space<vmem>>, %arg4: memref<1x768xf32, #tpu.memory_space<vmem>>, %arg5: memref<32x96xf32, #tpu.memory_space<vmem>>, %arg6: memref<1x96xf32, #tpu.memory_space<vmem>>, %arg7: memref<64x96xf32, #tpu.memory_space<vmem>>, %arg8: memref<1x96xf32, #tpu.memory_space<vmem>>, %arg9: memref<32x32xf32, #tpu.memory_space<vmem>>, %arg10: memref<1x32xf32, #tpu.memory_space<vmem>>, %arg11: memref<256x32xf32, #tpu.memory_space<vmem>>, %arg12: memref<1x32xf32, #tpu.memory_space<vmem>>, %arg13: memref<2x32xf32, #tpu.memory_space<vmem>>) attributes {dimension_semantics = [#tpu.dimension_semantics<arbitrary>], iteration_bounds = array<i64: 1>, scalar_prefetch = 0 : i64, scratch_operands = 0 : i64, tpu.core_type = #tpu.core_type<tc>, window_params = [{pipeline_mode = #tpu.pipeline_mode<synchronous>, transform_indices = @transform_0, window_bounds = array<i64: 2, 64>}, {pipeline_mode = #tpu.pipeline_mode<synchronous>, transform_indices = @transform_1, window_bounds = array<i64: 2, 2, 32>}, {pipeline_mode = #tpu.pipeline_mode<synchronous>, transform_indices = @transform_2, window_bounds = array<i64: 32, 768>}, {pipeline_mode = #tpu.pipeline_mode<synchronous>, transform_indices = @transform_3, window_bounds = array<i64: 1, 768>}, {pipeline_mode = #tpu.pipeline_mode<synchronous>, transform_indices = @transform_4, window_bounds = array<i64: 32, 96>}, {pipeline_mode = #tpu.pipeline_mode<synchronous>, transform_indices = @transform_5, window_bounds = array<i64: 1, 96>}, {pipeline_mode = #tpu.pipeline_mode<synchronous>, transform_indices = @transform_6, window_bounds = array<i64: 64, 96>}, {pipeline_mode = #tpu.pipeline_mode<synchronous>, transform_indices = @transform_7, window_bounds = array<i64: 1, 96>}, {pipeline_mode = #tpu.pipeline_mode<synchronous>, transform_indices = @transform_8, window_bounds = array<i64: 32, 32>}, {pipeline_mode = #tpu.pipeline_mode<synchronous>, transform_indices = @transform_9, window_bounds = array<i64: 1, 32>}, {pipeline_mode = #tpu.pipeline_mode<synchronous>, transform_indices = @transform_10, window_bounds = array<i64: 256, 32>}, {pipeline_mode = #tpu.pipeline_mode<synchronous>, transform_indices = @transform_11, window_bounds = array<i64: 1, 32>}, {pipeline_mode = #tpu.pipeline_mode<synchronous>, transform_indices = @transform_12, window_bounds = array<i64: 2, 32>}]} {
    %c0 = arith.constant 0 : index
    %c0_0 = arith.constant 0 : index
    %0 = vector.load %arg1[%c0, %c0_0] : memref<2x64xf32, #tpu.memory_space<vmem>>, vector<2x64xf32>
    %1 = vector.extract_strided_slice %0 {offsets = [0, 0], sizes = [2, 32], strides = [1, 1]} : vector<2x64xf32> to vector<2x32xf32>
    %2 = vector.extract_strided_slice %0 {offsets = [0, 32], sizes = [2, 32], strides = [1, 1]} : vector<2x64xf32> to vector<2x32xf32>
    %3 = arith.addf %1, %2 : vector<2x32xf32>
    %c0_1 = arith.constant 0 : index
    %c0_2 = arith.constant 0 : index
    %4 = vector.load %arg5[%c0_1, %c0_2] : memref<32x96xf32, #tpu.memory_space<vmem>>, vector<32x96xf32>
    %c0_3 = arith.constant 0 : index
    %c0_4 = arith.constant 0 : index
    %5 = vector.load %arg6[%c0_3, %c0_4] : memref<1x96xf32, #tpu.memory_space<vmem>>, vector<1x96xf32>
    %c0_5 = arith.constant 0 : index
    %c0_6 = arith.constant 0 : index
    %6 = vector.load %arg7[%c0_5, %c0_6] : memref<64x96xf32, #tpu.memory_space<vmem>>, vector<64x96xf32>
    %c0_7 = arith.constant 0 : index
    %c0_8 = arith.constant 0 : index
    %7 = vector.load %arg8[%c0_7, %c0_8] : memref<1x96xf32, #tpu.memory_space<vmem>>, vector<1x96xf32>
    %c0_9 = arith.constant 0 : index
    %c0_10 = arith.constant 0 : index
    %8 = vector.load %arg9[%c0_9, %c0_10] : memref<32x32xf32, #tpu.memory_space<vmem>>, vector<32x32xf32>
    %c0_11 = arith.constant 0 : index
    %c0_12 = arith.constant 0 : index
    %9 = vector.load %arg10[%c0_11, %c0_12] : memref<1x32xf32, #tpu.memory_space<vmem>>, vector<1x32xf32>
    %c0_13 = arith.constant 0 : index
    %c0_14 = arith.constant 0 : index
    %10 = vector.load %arg3[%c0_13, %c0_14] : memref<32x768xf32, #tpu.memory_space<vmem>>, vector<32x768xf32>
    %cst = arith.constant dense<0.000000e+00> : vector<2x768xf32>
    %11 = tpu.matmul %3, %10, %cst {dimension_numbers = #tpu.dot_dimension_numbers<[1], [0], [0], [1], [0, 0, 1, 1], [], []>} : vector<2x32xf32>, vector<32x768xf32>, vector<2x768xf32> -> vector<2x768xf32>
    %c0_15 = arith.constant 0 : index
    %c0_16 = arith.constant 0 : index
    %12 = vector.load %arg4[%c0_15, %c0_16] : memref<1x768xf32, #tpu.memory_space<vmem>>, vector<1x768xf32>
    %13 = vector.broadcast %12 : vector<1x768xf32> to vector<2x768xf32>
    %14 = arith.addf %11, %13 : vector<2x768xf32>
    %c0_17 = arith.constant 0 : index
    %c0_18 = arith.constant 0 : index
    %c0_19 = arith.constant 0 : index
    %15 = vector.load %arg2[%c0_17, %c0_18, %c0_19] : memref<2x2x32xf32, #tpu.memory_space<vmem>>, vector<1x2x32xf32>
    %16 = vector.shape_cast %15 : vector<1x2x32xf32> to vector<2x32xf32>
    %c1 = arith.constant 1 : index
    %c0_20 = arith.constant 0 : index
    %c0_21 = arith.constant 0 : index
    %17 = vector.load %arg2[%c1, %c0_20, %c0_21] : memref<2x2x32xf32, #tpu.memory_space<vmem>>, vector<1x2x32xf32>
    %18 = vector.shape_cast %17 : vector<1x2x32xf32> to vector<2x32xf32>
    %19 = vector.extract_strided_slice %14 {offsets = [0, 0], sizes = [2, 96], strides = [1, 1]} : vector<2x768xf32> to vector<2x96xf32>
    %cst_22 = arith.constant dense<0.000000e+00> : vector<2x96xf32>
    %20 = tpu.matmul %16, %4, %cst_22 {dimension_numbers = #tpu.dot_dimension_numbers<[1], [0], [0], [1], [0, 0, 1, 1], [], []>} : vector<2x32xf32>, vector<32x96xf32>, vector<2x96xf32> -> vector<2x96xf32>
    %21 = vector.broadcast %5 : vector<1x96xf32> to vector<2x96xf32>
    %22 = arith.addf %20, %21 : vector<2x96xf32>
    %23 = vector.extract_strided_slice %19 {offsets = [0, 0], sizes = [2, 64], strides = [1, 1]} : vector<2x96xf32> to vector<2x64xf32>
    %24 = vector.extract_strided_slice %22 {offsets = [0, 0], sizes = [2, 64], strides = [1, 1]} : vector<2x96xf32> to vector<2x64xf32>
    %25 = arith.addf %23, %24 : vector<2x64xf32>
    %26 = arith.negf %25 : vector<2x64xf32>
    %27 = math.exp %26 : vector<2x64xf32>
    %cst_23 = arith.constant 1.000000e+00 : f32
    %28 = vector.broadcast %cst_23 : f32 to vector<2x64xf32>
    %29 = arith.addf %28, %27 : vector<2x64xf32>
    %30 = arith.divf %28, %29 : vector<2x64xf32>
    %31 = vector.extract_strided_slice %30 {offsets = [0, 0], sizes = [2, 32], strides = [1, 1]} : vector<2x64xf32> to vector<2x32xf32>
    %32 = vector.extract_strided_slice %30 {offsets = [0, 32], sizes = [2, 32], strides = [1, 1]} : vector<2x64xf32> to vector<2x32xf32>
    %33 = vector.extract_strided_slice %19 {offsets = [0, 64], sizes = [2, 32], strides = [1, 1]} : vector<2x96xf32> to vector<2x32xf32>
    %34 = vector.extract_strided_slice %22 {offsets = [0, 64], sizes = [2, 32], strides = [1, 1]} : vector<2x96xf32> to vector<2x32xf32>
    %35 = arith.mulf %31, %34 : vector<2x32xf32>
    %36 = arith.addf %33, %35 : vector<2x32xf32>
    %37 = math.tanh %36 : vector<2x32xf32>
    %cst_24 = arith.constant 1.000000e+00 : f32
    %38 = vector.broadcast %cst_24 : f32 to vector<2x32xf32>
    %39 = arith.subf %38, %32 : vector<2x32xf32>
    %40 = arith.mulf %39, %37 : vector<2x32xf32>
    %41 = arith.mulf %32, %16 : vector<2x32xf32>
    %42 = arith.addf %40, %41 : vector<2x32xf32>
    %43 = tpu.concatenate %42, %18 in 1 : vector<2x32xf32>, vector<2x32xf32> -> vector<2x64xf32>
    %cst_25 = arith.constant dense<0.000000e+00> : vector<2x96xf32>
    %44 = tpu.matmul %43, %6, %cst_25 {dimension_numbers = #tpu.dot_dimension_numbers<[1], [0], [0], [1], [0, 0, 1, 1], [], []>} : vector<2x64xf32>, vector<64x96xf32>, vector<2x96xf32> -> vector<2x96xf32>
    %45 = vector.broadcast %7 : vector<1x96xf32> to vector<2x96xf32>
    %46 = arith.addf %44, %45 : vector<2x96xf32>
    %cst_26 = arith.constant dense<0.000000e+00> : vector<2x32xf32>
    %47 = tpu.matmul %18, %8, %cst_26 {dimension_numbers = #tpu.dot_dimension_numbers<[1], [0], [0], [1], [0, 0, 1, 1], [], []>} : vector<2x32xf32>, vector<32x32xf32>, vector<2x32xf32> -> vector<2x32xf32>
    %48 = vector.broadcast %9 : vector<1x32xf32> to vector<2x32xf32>
    %49 = arith.addf %47, %48 : vector<2x32xf32>
    %50 = vector.extract_strided_slice %46 {offsets = [0, 0], sizes = [2, 64], strides = [1, 1]} : vector<2x96xf32> to vector<2x64xf32>
    %51 = arith.negf %50 : vector<2x64xf32>
    %52 = math.exp %51 : vector<2x64xf32>
    %cst_27 = arith.constant 1.000000e+00 : f32
    %53 = vector.broadcast %cst_27 : f32 to vector<2x64xf32>
    %54 = arith.addf %53, %52 : vector<2x64xf32>
    %55 = arith.divf %53, %54 : vector<2x64xf32>
    %56 = vector.extract_strided_slice %55 {offsets = [0, 0], sizes = [2, 32], strides = [1, 1]} : vector<2x64xf32> to vector<2x32xf32>
    %57 = vector.extract_strided_slice %55 {offsets = [0, 32], sizes = [2, 32], strides = [1, 1]} : vector<2x64xf32> to vector<2x32xf32>
    %58 = vector.extract_strided_slice %46 {offsets = [0, 64], sizes = [2, 32], strides = [1, 1]} : vector<2x96xf32> to vector<2x32xf32>
    %59 = arith.mulf %56, %49 : vector<2x32xf32>
    %60 = arith.addf %58, %59 : vector<2x32xf32>
    %61 = math.tanh %60 : vector<2x32xf32>
    %cst_28 = arith.constant 1.000000e+00 : f32
    %62 = vector.broadcast %cst_28 : f32 to vector<2x32xf32>
    %63 = arith.subf %62, %57 : vector<2x32xf32>
    %64 = arith.mulf %63, %61 : vector<2x32xf32>
    %65 = arith.mulf %57, %18 : vector<2x32xf32>
    %66 = arith.addf %64, %65 : vector<2x32xf32>
    %67 = vector.extract_strided_slice %14 {offsets = [0, 96], sizes = [2, 96], strides = [1, 1]} : vector<2x768xf32> to vector<2x96xf32>
    %cst_29 = arith.constant dense<0.000000e+00> : vector<2x96xf32>
    %68 = tpu.matmul %42, %4, %cst_29 {dimension_numbers = #tpu.dot_dimension_numbers<[1], [0], [0], [1], [0, 0, 1, 1], [], []>} : vector<2x32xf32>, vector<32x96xf32>, vector<2x96xf32> -> vector<2x96xf32>
    %69 = vector.broadcast %5 : vector<1x96xf32> to vector<2x96xf32>
    %70 = arith.addf %68, %69 : vector<2x96xf32>
    %71 = vector.extract_strided_slice %67 {offsets = [0, 0], sizes = [2, 64], strides = [1, 1]} : vector<2x96xf32> to vector<2x64xf32>
    %72 = vector.extract_strided_slice %70 {offsets = [0, 0], sizes = [2, 64], strides = [1, 1]} : vector<2x96xf32> to vector<2x64xf32>
    %73 = arith.addf %71, %72 : vector<2x64xf32>
    %74 = arith.negf %73 : vector<2x64xf32>
    %75 = math.exp %74 : vector<2x64xf32>
    %cst_30 = arith.constant 1.000000e+00 : f32
    %76 = vector.broadcast %cst_30 : f32 to vector<2x64xf32>
    %77 = arith.addf %76, %75 : vector<2x64xf32>
    %78 = arith.divf %76, %77 : vector<2x64xf32>
    %79 = vector.extract_strided_slice %78 {offsets = [0, 0], sizes = [2, 32], strides = [1, 1]} : vector<2x64xf32> to vector<2x32xf32>
    %80 = vector.extract_strided_slice %78 {offsets = [0, 32], sizes = [2, 32], strides = [1, 1]} : vector<2x64xf32> to vector<2x32xf32>
    %81 = vector.extract_strided_slice %67 {offsets = [0, 64], sizes = [2, 32], strides = [1, 1]} : vector<2x96xf32> to vector<2x32xf32>
    %82 = vector.extract_strided_slice %70 {offsets = [0, 64], sizes = [2, 32], strides = [1, 1]} : vector<2x96xf32> to vector<2x32xf32>
    %83 = arith.mulf %79, %82 : vector<2x32xf32>
    %84 = arith.addf %81, %83 : vector<2x32xf32>
    %85 = math.tanh %84 : vector<2x32xf32>
    %cst_31 = arith.constant 1.000000e+00 : f32
    %86 = vector.broadcast %cst_31 : f32 to vector<2x32xf32>
    %87 = arith.subf %86, %80 : vector<2x32xf32>
    %88 = arith.mulf %87, %85 : vector<2x32xf32>
    %89 = arith.mulf %80, %42 : vector<2x32xf32>
    %90 = arith.addf %88, %89 : vector<2x32xf32>
    %91 = tpu.concatenate %90, %66 in 1 : vector<2x32xf32>, vector<2x32xf32> -> vector<2x64xf32>
    %cst_32 = arith.constant dense<0.000000e+00> : vector<2x96xf32>
    %92 = tpu.matmul %91, %6, %cst_32 {dimension_numbers = #tpu.dot_dimension_numbers<[1], [0], [0], [1], [0, 0, 1, 1], [], []>} : vector<2x64xf32>, vector<64x96xf32>, vector<2x96xf32> -> vector<2x96xf32>
    %93 = vector.broadcast %7 : vector<1x96xf32> to vector<2x96xf32>
    %94 = arith.addf %92, %93 : vector<2x96xf32>
    %cst_33 = arith.constant dense<0.000000e+00> : vector<2x32xf32>
    %95 = tpu.matmul %66, %8, %cst_33 {dimension_numbers = #tpu.dot_dimension_numbers<[1], [0], [0], [1], [0, 0, 1, 1], [], []>} : vector<2x32xf32>, vector<32x32xf32>, vector<2x32xf32> -> vector<2x32xf32>
    %96 = vector.broadcast %9 : vector<1x32xf32> to vector<2x32xf32>
    %97 = arith.addf %95, %96 : vector<2x32xf32>
    %98 = vector.extract_strided_slice %94 {offsets = [0, 0], sizes = [2, 64], strides = [1, 1]} : vector<2x96xf32> to vector<2x64xf32>
    %99 = arith.negf %98 : vector<2x64xf32>
    %100 = math.exp %99 : vector<2x64xf32>
    %cst_34 = arith.constant 1.000000e+00 : f32
    %101 = vector.broadcast %cst_34 : f32 to vector<2x64xf32>
    %102 = arith.addf %101, %100 : vector<2x64xf32>
    %103 = arith.divf %101, %102 : vector<2x64xf32>
    %104 = vector.extract_strided_slice %103 {offsets = [0, 0], sizes = [2, 32], strides = [1, 1]} : vector<2x64xf32> to vector<2x32xf32>
    %105 = vector.extract_strided_slice %103 {offsets = [0, 32], sizes = [2, 32], strides = [1, 1]} : vector<2x64xf32> to vector<2x32xf32>
    %106 = vector.extract_strided_slice %94 {offsets = [0, 64], sizes = [2, 32], strides = [1, 1]} : vector<2x96xf32> to vector<2x32xf32>
    %107 = arith.mulf %104, %97 : vector<2x32xf32>
    %108 = arith.addf %106, %107 : vector<2x32xf32>
    %109 = math.tanh %108 : vector<2x32xf32>
    %cst_35 = arith.constant 1.000000e+00 : f32
    %110 = vector.broadcast %cst_35 : f32 to vector<2x32xf32>
    %111 = arith.subf %110, %105 : vector<2x32xf32>
    %112 = arith.mulf %111, %109 : vector<2x32xf32>
    %113 = arith.mulf %105, %66 : vector<2x32xf32>
    %114 = arith.addf %112, %113 : vector<2x32xf32>
    %115 = vector.extract_strided_slice %14 {offsets = [0, 192], sizes = [2, 96], strides = [1, 1]} : vector<2x768xf32> to vector<2x96xf32>
    %cst_36 = arith.constant dense<0.000000e+00> : vector<2x96xf32>
    %116 = tpu.matmul %90, %4, %cst_36 {dimension_numbers = #tpu.dot_dimension_numbers<[1], [0], [0], [1], [0, 0, 1, 1], [], []>} : vector<2x32xf32>, vector<32x96xf32>, vector<2x96xf32> -> vector<2x96xf32>
    %117 = vector.broadcast %5 : vector<1x96xf32> to vector<2x96xf32>
    %118 = arith.addf %116, %117 : vector<2x96xf32>
    %119 = vector.extract_strided_slice %115 {offsets = [0, 0], sizes = [2, 64], strides = [1, 1]} : vector<2x96xf32> to vector<2x64xf32>
    %120 = vector.extract_strided_slice %118 {offsets = [0, 0], sizes = [2, 64], strides = [1, 1]} : vector<2x96xf32> to vector<2x64xf32>
    %121 = arith.addf %119, %120 : vector<2x64xf32>
    %122 = arith.negf %121 : vector<2x64xf32>
    %123 = math.exp %122 : vector<2x64xf32>
    %cst_37 = arith.constant 1.000000e+00 : f32
    %124 = vector.broadcast %cst_37 : f32 to vector<2x64xf32>
    %125 = arith.addf %124, %123 : vector<2x64xf32>
    %126 = arith.divf %124, %125 : vector<2x64xf32>
    %127 = vector.extract_strided_slice %126 {offsets = [0, 0], sizes = [2, 32], strides = [1, 1]} : vector<2x64xf32> to vector<2x32xf32>
    %128 = vector.extract_strided_slice %126 {offsets = [0, 32], sizes = [2, 32], strides = [1, 1]} : vector<2x64xf32> to vector<2x32xf32>
    %129 = vector.extract_strided_slice %115 {offsets = [0, 64], sizes = [2, 32], strides = [1, 1]} : vector<2x96xf32> to vector<2x32xf32>
    %130 = vector.extract_strided_slice %118 {offsets = [0, 64], sizes = [2, 32], strides = [1, 1]} : vector<2x96xf32> to vector<2x32xf32>
    %131 = arith.mulf %127, %130 : vector<2x32xf32>
    %132 = arith.addf %129, %131 : vector<2x32xf32>
    %133 = math.tanh %132 : vector<2x32xf32>
    %cst_38 = arith.constant 1.000000e+00 : f32
    %134 = vector.broadcast %cst_38 : f32 to vector<2x32xf32>
    %135 = arith.subf %134, %128 : vector<2x32xf32>
    %136 = arith.mulf %135, %133 : vector<2x32xf32>
    %137 = arith.mulf %128, %90 : vector<2x32xf32>
    %138 = arith.addf %136, %137 : vector<2x32xf32>
    %139 = tpu.concatenate %138, %114 in 1 : vector<2x32xf32>, vector<2x32xf32> -> vector<2x64xf32>
    %cst_39 = arith.constant dense<0.000000e+00> : vector<2x96xf32>
    %140 = tpu.matmul %139, %6, %cst_39 {dimension_numbers = #tpu.dot_dimension_numbers<[1], [0], [0], [1], [0, 0, 1, 1], [], []>} : vector<2x64xf32>, vector<64x96xf32>, vector<2x96xf32> -> vector<2x96xf32>
    %141 = vector.broadcast %7 : vector<1x96xf32> to vector<2x96xf32>
    %142 = arith.addf %140, %141 : vector<2x96xf32>
    %cst_40 = arith.constant dense<0.000000e+00> : vector<2x32xf32>
    %143 = tpu.matmul %114, %8, %cst_40 {dimension_numbers = #tpu.dot_dimension_numbers<[1], [0], [0], [1], [0, 0, 1, 1], [], []>} : vector<2x32xf32>, vector<32x32xf32>, vector<2x32xf32> -> vector<2x32xf32>
    %144 = vector.broadcast %9 : vector<1x32xf32> to vector<2x32xf32>
    %145 = arith.addf %143, %144 : vector<2x32xf32>
    %146 = vector.extract_strided_slice %142 {offsets = [0, 0], sizes = [2, 64], strides = [1, 1]} : vector<2x96xf32> to vector<2x64xf32>
    %147 = arith.negf %146 : vector<2x64xf32>
    %148 = math.exp %147 : vector<2x64xf32>
    %cst_41 = arith.constant 1.000000e+00 : f32
    %149 = vector.broadcast %cst_41 : f32 to vector<2x64xf32>
    %150 = arith.addf %149, %148 : vector<2x64xf32>
    %151 = arith.divf %149, %150 : vector<2x64xf32>
    %152 = vector.extract_strided_slice %151 {offsets = [0, 0], sizes = [2, 32], strides = [1, 1]} : vector<2x64xf32> to vector<2x32xf32>
    %153 = vector.extract_strided_slice %151 {offsets = [0, 32], sizes = [2, 32], strides = [1, 1]} : vector<2x64xf32> to vector<2x32xf32>
    %154 = vector.extract_strided_slice %142 {offsets = [0, 64], sizes = [2, 32], strides = [1, 1]} : vector<2x96xf32> to vector<2x32xf32>
    %155 = arith.mulf %152, %145 : vector<2x32xf32>
    %156 = arith.addf %154, %155 : vector<2x32xf32>
    %157 = math.tanh %156 : vector<2x32xf32>
    %cst_42 = arith.constant 1.000000e+00 : f32
    %158 = vector.broadcast %cst_42 : f32 to vector<2x32xf32>
    %159 = arith.subf %158, %153 : vector<2x32xf32>
    %160 = arith.mulf %159, %157 : vector<2x32xf32>
    %161 = arith.mulf %153, %114 : vector<2x32xf32>
    %162 = arith.addf %160, %161 : vector<2x32xf32>
    %163 = vector.extract_strided_slice %14 {offsets = [0, 288], sizes = [2, 96], strides = [1, 1]} : vector<2x768xf32> to vector<2x96xf32>
    %cst_43 = arith.constant dense<0.000000e+00> : vector<2x96xf32>
    %164 = tpu.matmul %138, %4, %cst_43 {dimension_numbers = #tpu.dot_dimension_numbers<[1], [0], [0], [1], [0, 0, 1, 1], [], []>} : vector<2x32xf32>, vector<32x96xf32>, vector<2x96xf32> -> vector<2x96xf32>
    %165 = vector.broadcast %5 : vector<1x96xf32> to vector<2x96xf32>
    %166 = arith.addf %164, %165 : vector<2x96xf32>
    %167 = vector.extract_strided_slice %163 {offsets = [0, 0], sizes = [2, 64], strides = [1, 1]} : vector<2x96xf32> to vector<2x64xf32>
    %168 = vector.extract_strided_slice %166 {offsets = [0, 0], sizes = [2, 64], strides = [1, 1]} : vector<2x96xf32> to vector<2x64xf32>
    %169 = arith.addf %167, %168 : vector<2x64xf32>
    %170 = arith.negf %169 : vector<2x64xf32>
    %171 = math.exp %170 : vector<2x64xf32>
    %cst_44 = arith.constant 1.000000e+00 : f32
    %172 = vector.broadcast %cst_44 : f32 to vector<2x64xf32>
    %173 = arith.addf %172, %171 : vector<2x64xf32>
    %174 = arith.divf %172, %173 : vector<2x64xf32>
    %175 = vector.extract_strided_slice %174 {offsets = [0, 0], sizes = [2, 32], strides = [1, 1]} : vector<2x64xf32> to vector<2x32xf32>
    %176 = vector.extract_strided_slice %174 {offsets = [0, 32], sizes = [2, 32], strides = [1, 1]} : vector<2x64xf32> to vector<2x32xf32>
    %177 = vector.extract_strided_slice %163 {offsets = [0, 64], sizes = [2, 32], strides = [1, 1]} : vector<2x96xf32> to vector<2x32xf32>
    %178 = vector.extract_strided_slice %166 {offsets = [0, 64], sizes = [2, 32], strides = [1, 1]} : vector<2x96xf32> to vector<2x32xf32>
    %179 = arith.mulf %175, %178 : vector<2x32xf32>
    %180 = arith.addf %177, %179 : vector<2x32xf32>
    %181 = math.tanh %180 : vector<2x32xf32>
    %cst_45 = arith.constant 1.000000e+00 : f32
    %182 = vector.broadcast %cst_45 : f32 to vector<2x32xf32>
    %183 = arith.subf %182, %176 : vector<2x32xf32>
    %184 = arith.mulf %183, %181 : vector<2x32xf32>
    %185 = arith.mulf %176, %138 : vector<2x32xf32>
    %186 = arith.addf %184, %185 : vector<2x32xf32>
    %187 = tpu.concatenate %186, %162 in 1 : vector<2x32xf32>, vector<2x32xf32> -> vector<2x64xf32>
    %cst_46 = arith.constant dense<0.000000e+00> : vector<2x96xf32>
    %188 = tpu.matmul %187, %6, %cst_46 {dimension_numbers = #tpu.dot_dimension_numbers<[1], [0], [0], [1], [0, 0, 1, 1], [], []>} : vector<2x64xf32>, vector<64x96xf32>, vector<2x96xf32> -> vector<2x96xf32>
    %189 = vector.broadcast %7 : vector<1x96xf32> to vector<2x96xf32>
    %190 = arith.addf %188, %189 : vector<2x96xf32>
    %cst_47 = arith.constant dense<0.000000e+00> : vector<2x32xf32>
    %191 = tpu.matmul %162, %8, %cst_47 {dimension_numbers = #tpu.dot_dimension_numbers<[1], [0], [0], [1], [0, 0, 1, 1], [], []>} : vector<2x32xf32>, vector<32x32xf32>, vector<2x32xf32> -> vector<2x32xf32>
    %192 = vector.broadcast %9 : vector<1x32xf32> to vector<2x32xf32>
    %193 = arith.addf %191, %192 : vector<2x32xf32>
    %194 = vector.extract_strided_slice %190 {offsets = [0, 0], sizes = [2, 64], strides = [1, 1]} : vector<2x96xf32> to vector<2x64xf32>
    %195 = arith.negf %194 : vector<2x64xf32>
    %196 = math.exp %195 : vector<2x64xf32>
    %cst_48 = arith.constant 1.000000e+00 : f32
    %197 = vector.broadcast %cst_48 : f32 to vector<2x64xf32>
    %198 = arith.addf %197, %196 : vector<2x64xf32>
    %199 = arith.divf %197, %198 : vector<2x64xf32>
    %200 = vector.extract_strided_slice %199 {offsets = [0, 0], sizes = [2, 32], strides = [1, 1]} : vector<2x64xf32> to vector<2x32xf32>
    %201 = vector.extract_strided_slice %199 {offsets = [0, 32], sizes = [2, 32], strides = [1, 1]} : vector<2x64xf32> to vector<2x32xf32>
    %202 = vector.extract_strided_slice %190 {offsets = [0, 64], sizes = [2, 32], strides = [1, 1]} : vector<2x96xf32> to vector<2x32xf32>
    %203 = arith.mulf %200, %193 : vector<2x32xf32>
    %204 = arith.addf %202, %203 : vector<2x32xf32>
    %205 = math.tanh %204 : vector<2x32xf32>
    %cst_49 = arith.constant 1.000000e+00 : f32
    %206 = vector.broadcast %cst_49 : f32 to vector<2x32xf32>
    %207 = arith.subf %206, %201 : vector<2x32xf32>
    %208 = arith.mulf %207, %205 : vector<2x32xf32>
    %209 = arith.mulf %201, %162 : vector<2x32xf32>
    %210 = arith.addf %208, %209 : vector<2x32xf32>
    %211 = vector.extract_strided_slice %14 {offsets = [0, 384], sizes = [2, 96], strides = [1, 1]} : vector<2x768xf32> to vector<2x96xf32>
    %cst_50 = arith.constant dense<0.000000e+00> : vector<2x96xf32>
    %212 = tpu.matmul %186, %4, %cst_50 {dimension_numbers = #tpu.dot_dimension_numbers<[1], [0], [0], [1], [0, 0, 1, 1], [], []>} : vector<2x32xf32>, vector<32x96xf32>, vector<2x96xf32> -> vector<2x96xf32>
    %213 = vector.broadcast %5 : vector<1x96xf32> to vector<2x96xf32>
    %214 = arith.addf %212, %213 : vector<2x96xf32>
    %215 = vector.extract_strided_slice %211 {offsets = [0, 0], sizes = [2, 64], strides = [1, 1]} : vector<2x96xf32> to vector<2x64xf32>
    %216 = vector.extract_strided_slice %214 {offsets = [0, 0], sizes = [2, 64], strides = [1, 1]} : vector<2x96xf32> to vector<2x64xf32>
    %217 = arith.addf %215, %216 : vector<2x64xf32>
    %218 = arith.negf %217 : vector<2x64xf32>
    %219 = math.exp %218 : vector<2x64xf32>
    %cst_51 = arith.constant 1.000000e+00 : f32
    %220 = vector.broadcast %cst_51 : f32 to vector<2x64xf32>
    %221 = arith.addf %220, %219 : vector<2x64xf32>
    %222 = arith.divf %220, %221 : vector<2x64xf32>
    %223 = vector.extract_strided_slice %222 {offsets = [0, 0], sizes = [2, 32], strides = [1, 1]} : vector<2x64xf32> to vector<2x32xf32>
    %224 = vector.extract_strided_slice %222 {offsets = [0, 32], sizes = [2, 32], strides = [1, 1]} : vector<2x64xf32> to vector<2x32xf32>
    %225 = vector.extract_strided_slice %211 {offsets = [0, 64], sizes = [2, 32], strides = [1, 1]} : vector<2x96xf32> to vector<2x32xf32>
    %226 = vector.extract_strided_slice %214 {offsets = [0, 64], sizes = [2, 32], strides = [1, 1]} : vector<2x96xf32> to vector<2x32xf32>
    %227 = arith.mulf %223, %226 : vector<2x32xf32>
    %228 = arith.addf %225, %227 : vector<2x32xf32>
    %229 = math.tanh %228 : vector<2x32xf32>
    %cst_52 = arith.constant 1.000000e+00 : f32
    %230 = vector.broadcast %cst_52 : f32 to vector<2x32xf32>
    %231 = arith.subf %230, %224 : vector<2x32xf32>
    %232 = arith.mulf %231, %229 : vector<2x32xf32>
    %233 = arith.mulf %224, %186 : vector<2x32xf32>
    %234 = arith.addf %232, %233 : vector<2x32xf32>
    %235 = tpu.concatenate %234, %210 in 1 : vector<2x32xf32>, vector<2x32xf32> -> vector<2x64xf32>
    %cst_53 = arith.constant dense<0.000000e+00> : vector<2x96xf32>
    %236 = tpu.matmul %235, %6, %cst_53 {dimension_numbers = #tpu.dot_dimension_numbers<[1], [0], [0], [1], [0, 0, 1, 1], [], []>} : vector<2x64xf32>, vector<64x96xf32>, vector<2x96xf32> -> vector<2x96xf32>
    %237 = vector.broadcast %7 : vector<1x96xf32> to vector<2x96xf32>
    %238 = arith.addf %236, %237 : vector<2x96xf32>
    %cst_54 = arith.constant dense<0.000000e+00> : vector<2x32xf32>
    %239 = tpu.matmul %210, %8, %cst_54 {dimension_numbers = #tpu.dot_dimension_numbers<[1], [0], [0], [1], [0, 0, 1, 1], [], []>} : vector<2x32xf32>, vector<32x32xf32>, vector<2x32xf32> -> vector<2x32xf32>
    %240 = vector.broadcast %9 : vector<1x32xf32> to vector<2x32xf32>
    %241 = arith.addf %239, %240 : vector<2x32xf32>
    %242 = vector.extract_strided_slice %238 {offsets = [0, 0], sizes = [2, 64], strides = [1, 1]} : vector<2x96xf32> to vector<2x64xf32>
    %243 = arith.negf %242 : vector<2x64xf32>
    %244 = math.exp %243 : vector<2x64xf32>
    %cst_55 = arith.constant 1.000000e+00 : f32
    %245 = vector.broadcast %cst_55 : f32 to vector<2x64xf32>
    %246 = arith.addf %245, %244 : vector<2x64xf32>
    %247 = arith.divf %245, %246 : vector<2x64xf32>
    %248 = vector.extract_strided_slice %247 {offsets = [0, 0], sizes = [2, 32], strides = [1, 1]} : vector<2x64xf32> to vector<2x32xf32>
    %249 = vector.extract_strided_slice %247 {offsets = [0, 32], sizes = [2, 32], strides = [1, 1]} : vector<2x64xf32> to vector<2x32xf32>
    %250 = vector.extract_strided_slice %238 {offsets = [0, 64], sizes = [2, 32], strides = [1, 1]} : vector<2x96xf32> to vector<2x32xf32>
    %251 = arith.mulf %248, %241 : vector<2x32xf32>
    %252 = arith.addf %250, %251 : vector<2x32xf32>
    %253 = math.tanh %252 : vector<2x32xf32>
    %cst_56 = arith.constant 1.000000e+00 : f32
    %254 = vector.broadcast %cst_56 : f32 to vector<2x32xf32>
    %255 = arith.subf %254, %249 : vector<2x32xf32>
    %256 = arith.mulf %255, %253 : vector<2x32xf32>
    %257 = arith.mulf %249, %210 : vector<2x32xf32>
    %258 = arith.addf %256, %257 : vector<2x32xf32>
    %259 = vector.extract_strided_slice %14 {offsets = [0, 480], sizes = [2, 96], strides = [1, 1]} : vector<2x768xf32> to vector<2x96xf32>
    %cst_57 = arith.constant dense<0.000000e+00> : vector<2x96xf32>
    %260 = tpu.matmul %234, %4, %cst_57 {dimension_numbers = #tpu.dot_dimension_numbers<[1], [0], [0], [1], [0, 0, 1, 1], [], []>} : vector<2x32xf32>, vector<32x96xf32>, vector<2x96xf32> -> vector<2x96xf32>
    %261 = vector.broadcast %5 : vector<1x96xf32> to vector<2x96xf32>
    %262 = arith.addf %260, %261 : vector<2x96xf32>
    %263 = vector.extract_strided_slice %259 {offsets = [0, 0], sizes = [2, 64], strides = [1, 1]} : vector<2x96xf32> to vector<2x64xf32>
    %264 = vector.extract_strided_slice %262 {offsets = [0, 0], sizes = [2, 64], strides = [1, 1]} : vector<2x96xf32> to vector<2x64xf32>
    %265 = arith.addf %263, %264 : vector<2x64xf32>
    %266 = arith.negf %265 : vector<2x64xf32>
    %267 = math.exp %266 : vector<2x64xf32>
    %cst_58 = arith.constant 1.000000e+00 : f32
    %268 = vector.broadcast %cst_58 : f32 to vector<2x64xf32>
    %269 = arith.addf %268, %267 : vector<2x64xf32>
    %270 = arith.divf %268, %269 : vector<2x64xf32>
    %271 = vector.extract_strided_slice %270 {offsets = [0, 0], sizes = [2, 32], strides = [1, 1]} : vector<2x64xf32> to vector<2x32xf32>
    %272 = vector.extract_strided_slice %270 {offsets = [0, 32], sizes = [2, 32], strides = [1, 1]} : vector<2x64xf32> to vector<2x32xf32>
    %273 = vector.extract_strided_slice %259 {offsets = [0, 64], sizes = [2, 32], strides = [1, 1]} : vector<2x96xf32> to vector<2x32xf32>
    %274 = vector.extract_strided_slice %262 {offsets = [0, 64], sizes = [2, 32], strides = [1, 1]} : vector<2x96xf32> to vector<2x32xf32>
    %275 = arith.mulf %271, %274 : vector<2x32xf32>
    %276 = arith.addf %273, %275 : vector<2x32xf32>
    %277 = math.tanh %276 : vector<2x32xf32>
    %cst_59 = arith.constant 1.000000e+00 : f32
    %278 = vector.broadcast %cst_59 : f32 to vector<2x32xf32>
    %279 = arith.subf %278, %272 : vector<2x32xf32>
    %280 = arith.mulf %279, %277 : vector<2x32xf32>
    %281 = arith.mulf %272, %234 : vector<2x32xf32>
    %282 = arith.addf %280, %281 : vector<2x32xf32>
    %283 = tpu.concatenate %282, %258 in 1 : vector<2x32xf32>, vector<2x32xf32> -> vector<2x64xf32>
    %cst_60 = arith.constant dense<0.000000e+00> : vector<2x96xf32>
    %284 = tpu.matmul %283, %6, %cst_60 {dimension_numbers = #tpu.dot_dimension_numbers<[1], [0], [0], [1], [0, 0, 1, 1], [], []>} : vector<2x64xf32>, vector<64x96xf32>, vector<2x96xf32> -> vector<2x96xf32>
    %285 = vector.broadcast %7 : vector<1x96xf32> to vector<2x96xf32>
    %286 = arith.addf %284, %285 : vector<2x96xf32>
    %cst_61 = arith.constant dense<0.000000e+00> : vector<2x32xf32>
    %287 = tpu.matmul %258, %8, %cst_61 {dimension_numbers = #tpu.dot_dimension_numbers<[1], [0], [0], [1], [0, 0, 1, 1], [], []>} : vector<2x32xf32>, vector<32x32xf32>, vector<2x32xf32> -> vector<2x32xf32>
    %288 = vector.broadcast %9 : vector<1x32xf32> to vector<2x32xf32>
    %289 = arith.addf %287, %288 : vector<2x32xf32>
    %290 = vector.extract_strided_slice %286 {offsets = [0, 0], sizes = [2, 64], strides = [1, 1]} : vector<2x96xf32> to vector<2x64xf32>
    %291 = arith.negf %290 : vector<2x64xf32>
    %292 = math.exp %291 : vector<2x64xf32>
    %cst_62 = arith.constant 1.000000e+00 : f32
    %293 = vector.broadcast %cst_62 : f32 to vector<2x64xf32>
    %294 = arith.addf %293, %292 : vector<2x64xf32>
    %295 = arith.divf %293, %294 : vector<2x64xf32>
    %296 = vector.extract_strided_slice %295 {offsets = [0, 0], sizes = [2, 32], strides = [1, 1]} : vector<2x64xf32> to vector<2x32xf32>
    %297 = vector.extract_strided_slice %295 {offsets = [0, 32], sizes = [2, 32], strides = [1, 1]} : vector<2x64xf32> to vector<2x32xf32>
    %298 = vector.extract_strided_slice %286 {offsets = [0, 64], sizes = [2, 32], strides = [1, 1]} : vector<2x96xf32> to vector<2x32xf32>
    %299 = arith.mulf %296, %289 : vector<2x32xf32>
    %300 = arith.addf %298, %299 : vector<2x32xf32>
    %301 = math.tanh %300 : vector<2x32xf32>
    %cst_63 = arith.constant 1.000000e+00 : f32
    %302 = vector.broadcast %cst_63 : f32 to vector<2x32xf32>
    %303 = arith.subf %302, %297 : vector<2x32xf32>
    %304 = arith.mulf %303, %301 : vector<2x32xf32>
    %305 = arith.mulf %297, %258 : vector<2x32xf32>
    %306 = arith.addf %304, %305 : vector<2x32xf32>
    %307 = vector.extract_strided_slice %14 {offsets = [0, 576], sizes = [2, 96], strides = [1, 1]} : vector<2x768xf32> to vector<2x96xf32>
    %cst_64 = arith.constant dense<0.000000e+00> : vector<2x96xf32>
    %308 = tpu.matmul %282, %4, %cst_64 {dimension_numbers = #tpu.dot_dimension_numbers<[1], [0], [0], [1], [0, 0, 1, 1], [], []>} : vector<2x32xf32>, vector<32x96xf32>, vector<2x96xf32> -> vector<2x96xf32>
    %309 = vector.broadcast %5 : vector<1x96xf32> to vector<2x96xf32>
    %310 = arith.addf %308, %309 : vector<2x96xf32>
    %311 = vector.extract_strided_slice %307 {offsets = [0, 0], sizes = [2, 64], strides = [1, 1]} : vector<2x96xf32> to vector<2x64xf32>
    %312 = vector.extract_strided_slice %310 {offsets = [0, 0], sizes = [2, 64], strides = [1, 1]} : vector<2x96xf32> to vector<2x64xf32>
    %313 = arith.addf %311, %312 : vector<2x64xf32>
    %314 = arith.negf %313 : vector<2x64xf32>
    %315 = math.exp %314 : vector<2x64xf32>
    %cst_65 = arith.constant 1.000000e+00 : f32
    %316 = vector.broadcast %cst_65 : f32 to vector<2x64xf32>
    %317 = arith.addf %316, %315 : vector<2x64xf32>
    %318 = arith.divf %316, %317 : vector<2x64xf32>
    %319 = vector.extract_strided_slice %318 {offsets = [0, 0], sizes = [2, 32], strides = [1, 1]} : vector<2x64xf32> to vector<2x32xf32>
    %320 = vector.extract_strided_slice %318 {offsets = [0, 32], sizes = [2, 32], strides = [1, 1]} : vector<2x64xf32> to vector<2x32xf32>
    %321 = vector.extract_strided_slice %307 {offsets = [0, 64], sizes = [2, 32], strides = [1, 1]} : vector<2x96xf32> to vector<2x32xf32>
    %322 = vector.extract_strided_slice %310 {offsets = [0, 64], sizes = [2, 32], strides = [1, 1]} : vector<2x96xf32> to vector<2x32xf32>
    %323 = arith.mulf %319, %322 : vector<2x32xf32>
    %324 = arith.addf %321, %323 : vector<2x32xf32>
    %325 = math.tanh %324 : vector<2x32xf32>
    %cst_66 = arith.constant 1.000000e+00 : f32
    %326 = vector.broadcast %cst_66 : f32 to vector<2x32xf32>
    %327 = arith.subf %326, %320 : vector<2x32xf32>
    %328 = arith.mulf %327, %325 : vector<2x32xf32>
    %329 = arith.mulf %320, %282 : vector<2x32xf32>
    %330 = arith.addf %328, %329 : vector<2x32xf32>
    %331 = tpu.concatenate %330, %306 in 1 : vector<2x32xf32>, vector<2x32xf32> -> vector<2x64xf32>
    %cst_67 = arith.constant dense<0.000000e+00> : vector<2x96xf32>
    %332 = tpu.matmul %331, %6, %cst_67 {dimension_numbers = #tpu.dot_dimension_numbers<[1], [0], [0], [1], [0, 0, 1, 1], [], []>} : vector<2x64xf32>, vector<64x96xf32>, vector<2x96xf32> -> vector<2x96xf32>
    %333 = vector.broadcast %7 : vector<1x96xf32> to vector<2x96xf32>
    %334 = arith.addf %332, %333 : vector<2x96xf32>
    %cst_68 = arith.constant dense<0.000000e+00> : vector<2x32xf32>
    %335 = tpu.matmul %306, %8, %cst_68 {dimension_numbers = #tpu.dot_dimension_numbers<[1], [0], [0], [1], [0, 0, 1, 1], [], []>} : vector<2x32xf32>, vector<32x32xf32>, vector<2x32xf32> -> vector<2x32xf32>
    %336 = vector.broadcast %9 : vector<1x32xf32> to vector<2x32xf32>
    %337 = arith.addf %335, %336 : vector<2x32xf32>
    %338 = vector.extract_strided_slice %334 {offsets = [0, 0], sizes = [2, 64], strides = [1, 1]} : vector<2x96xf32> to vector<2x64xf32>
    %339 = arith.negf %338 : vector<2x64xf32>
    %340 = math.exp %339 : vector<2x64xf32>
    %cst_69 = arith.constant 1.000000e+00 : f32
    %341 = vector.broadcast %cst_69 : f32 to vector<2x64xf32>
    %342 = arith.addf %341, %340 : vector<2x64xf32>
    %343 = arith.divf %341, %342 : vector<2x64xf32>
    %344 = vector.extract_strided_slice %343 {offsets = [0, 0], sizes = [2, 32], strides = [1, 1]} : vector<2x64xf32> to vector<2x32xf32>
    %345 = vector.extract_strided_slice %343 {offsets = [0, 32], sizes = [2, 32], strides = [1, 1]} : vector<2x64xf32> to vector<2x32xf32>
    %346 = vector.extract_strided_slice %334 {offsets = [0, 64], sizes = [2, 32], strides = [1, 1]} : vector<2x96xf32> to vector<2x32xf32>
    %347 = arith.mulf %344, %337 : vector<2x32xf32>
    %348 = arith.addf %346, %347 : vector<2x32xf32>
    %349 = math.tanh %348 : vector<2x32xf32>
    %cst_70 = arith.constant 1.000000e+00 : f32
    %350 = vector.broadcast %cst_70 : f32 to vector<2x32xf32>
    %351 = arith.subf %350, %345 : vector<2x32xf32>
    %352 = arith.mulf %351, %349 : vector<2x32xf32>
    %353 = arith.mulf %345, %306 : vector<2x32xf32>
    %354 = arith.addf %352, %353 : vector<2x32xf32>
    %355 = vector.extract_strided_slice %14 {offsets = [0, 672], sizes = [2, 96], strides = [1, 1]} : vector<2x768xf32> to vector<2x96xf32>
    %cst_71 = arith.constant dense<0.000000e+00> : vector<2x96xf32>
    %356 = tpu.matmul %330, %4, %cst_71 {dimension_numbers = #tpu.dot_dimension_numbers<[1], [0], [0], [1], [0, 0, 1, 1], [], []>} : vector<2x32xf32>, vector<32x96xf32>, vector<2x96xf32> -> vector<2x96xf32>
    %357 = vector.broadcast %5 : vector<1x96xf32> to vector<2x96xf32>
    %358 = arith.addf %356, %357 : vector<2x96xf32>
    %359 = vector.extract_strided_slice %355 {offsets = [0, 0], sizes = [2, 64], strides = [1, 1]} : vector<2x96xf32> to vector<2x64xf32>
    %360 = vector.extract_strided_slice %358 {offsets = [0, 0], sizes = [2, 64], strides = [1, 1]} : vector<2x96xf32> to vector<2x64xf32>
    %361 = arith.addf %359, %360 : vector<2x64xf32>
    %362 = arith.negf %361 : vector<2x64xf32>
    %363 = math.exp %362 : vector<2x64xf32>
    %cst_72 = arith.constant 1.000000e+00 : f32
    %364 = vector.broadcast %cst_72 : f32 to vector<2x64xf32>
    %365 = arith.addf %364, %363 : vector<2x64xf32>
    %366 = arith.divf %364, %365 : vector<2x64xf32>
    %367 = vector.extract_strided_slice %366 {offsets = [0, 0], sizes = [2, 32], strides = [1, 1]} : vector<2x64xf32> to vector<2x32xf32>
    %368 = vector.extract_strided_slice %366 {offsets = [0, 32], sizes = [2, 32], strides = [1, 1]} : vector<2x64xf32> to vector<2x32xf32>
    %369 = vector.extract_strided_slice %355 {offsets = [0, 64], sizes = [2, 32], strides = [1, 1]} : vector<2x96xf32> to vector<2x32xf32>
    %370 = vector.extract_strided_slice %358 {offsets = [0, 64], sizes = [2, 32], strides = [1, 1]} : vector<2x96xf32> to vector<2x32xf32>
    %371 = arith.mulf %367, %370 : vector<2x32xf32>
    %372 = arith.addf %369, %371 : vector<2x32xf32>
    %373 = math.tanh %372 : vector<2x32xf32>
    %cst_73 = arith.constant 1.000000e+00 : f32
    %374 = vector.broadcast %cst_73 : f32 to vector<2x32xf32>
    %375 = arith.subf %374, %368 : vector<2x32xf32>
    %376 = arith.mulf %375, %373 : vector<2x32xf32>
    %377 = arith.mulf %368, %330 : vector<2x32xf32>
    %378 = arith.addf %376, %377 : vector<2x32xf32>
    %379 = tpu.concatenate %378, %354 in 1 : vector<2x32xf32>, vector<2x32xf32> -> vector<2x64xf32>
    %cst_74 = arith.constant dense<0.000000e+00> : vector<2x96xf32>
    %380 = tpu.matmul %379, %6, %cst_74 {dimension_numbers = #tpu.dot_dimension_numbers<[1], [0], [0], [1], [0, 0, 1, 1], [], []>} : vector<2x64xf32>, vector<64x96xf32>, vector<2x96xf32> -> vector<2x96xf32>
    %381 = vector.broadcast %7 : vector<1x96xf32> to vector<2x96xf32>
    %382 = arith.addf %380, %381 : vector<2x96xf32>
    %cst_75 = arith.constant dense<0.000000e+00> : vector<2x32xf32>
    %383 = tpu.matmul %354, %8, %cst_75 {dimension_numbers = #tpu.dot_dimension_numbers<[1], [0], [0], [1], [0, 0, 1, 1], [], []>} : vector<2x32xf32>, vector<32x32xf32>, vector<2x32xf32> -> vector<2x32xf32>
    %384 = vector.broadcast %9 : vector<1x32xf32> to vector<2x32xf32>
    %385 = arith.addf %383, %384 : vector<2x32xf32>
    %386 = vector.extract_strided_slice %382 {offsets = [0, 0], sizes = [2, 64], strides = [1, 1]} : vector<2x96xf32> to vector<2x64xf32>
    %387 = arith.negf %386 : vector<2x64xf32>
    %388 = math.exp %387 : vector<2x64xf32>
    %cst_76 = arith.constant 1.000000e+00 : f32
    %389 = vector.broadcast %cst_76 : f32 to vector<2x64xf32>
    %390 = arith.addf %389, %388 : vector<2x64xf32>
    %391 = arith.divf %389, %390 : vector<2x64xf32>
    %392 = vector.extract_strided_slice %391 {offsets = [0, 0], sizes = [2, 32], strides = [1, 1]} : vector<2x64xf32> to vector<2x32xf32>
    %393 = vector.extract_strided_slice %391 {offsets = [0, 32], sizes = [2, 32], strides = [1, 1]} : vector<2x64xf32> to vector<2x32xf32>
    %394 = vector.extract_strided_slice %382 {offsets = [0, 64], sizes = [2, 32], strides = [1, 1]} : vector<2x96xf32> to vector<2x32xf32>
    %395 = arith.mulf %392, %385 : vector<2x32xf32>
    %396 = arith.addf %394, %395 : vector<2x32xf32>
    %397 = math.tanh %396 : vector<2x32xf32>
    %cst_77 = arith.constant 1.000000e+00 : f32
    %398 = vector.broadcast %cst_77 : f32 to vector<2x32xf32>
    %399 = arith.subf %398, %393 : vector<2x32xf32>
    %400 = arith.mulf %399, %397 : vector<2x32xf32>
    %401 = arith.mulf %393, %354 : vector<2x32xf32>
    %402 = arith.addf %400, %401 : vector<2x32xf32>
    %403 = tpu.concatenate %66, %114, %162, %210, %258, %306, %354, %402 in 1 : vector<2x32xf32>, vector<2x32xf32>, vector<2x32xf32>, vector<2x32xf32>, vector<2x32xf32>, vector<2x32xf32>, vector<2x32xf32>, vector<2x32xf32> -> vector<2x256xf32>
    %c0_78 = arith.constant 0 : index
    %c0_79 = arith.constant 0 : index
    %404 = vector.load %arg11[%c0_78, %c0_79] : memref<256x32xf32, #tpu.memory_space<vmem>>, vector<256x32xf32>
    %cst_80 = arith.constant dense<0.000000e+00> : vector<2x32xf32>
    %405 = tpu.matmul %403, %404, %cst_80 {dimension_numbers = #tpu.dot_dimension_numbers<[1], [0], [0], [1], [0, 0, 1, 1], [], []>} : vector<2x256xf32>, vector<256x32xf32>, vector<2x32xf32> -> vector<2x32xf32>
    %c0_81 = arith.constant 0 : index
    %c0_82 = arith.constant 0 : index
    %406 = vector.load %arg12[%c0_81, %c0_82] : memref<1x32xf32, #tpu.memory_space<vmem>>, vector<1x32xf32>
    %407 = vector.broadcast %406 : vector<1x32xf32> to vector<2x32xf32>
    %408 = arith.addf %405, %407 : vector<2x32xf32>
    %c0_83 = arith.constant 0 : index
    %c0_84 = arith.constant 0 : index
    %409 = vector.load %arg13[%c0_83, %c0_84] : memref<2x32xf32, #tpu.memory_space<vmem>>, vector<2x32xf32>
    tpu.vector_store %arg13[%c0_83, %c0_84], %408 {strides = array<i32>} : memref<2x32xf32, #tpu.memory_space<vmem>>, vector<2x32xf32>,
    return
  }
  func.func @transform_0(%arg0: i32) -> (i32, i32) {
    %c0_i32 = arith.constant 0 : i32
    %c0_i32_0 = arith.constant 0 : i32
    %c0_i32_1 = arith.constant 0 : i32
    return %c0_i32, %c0_i32_0 : i32, i32
  }
  func.func @transform_1(%arg0: i32) -> (i32, i32, i32) {
    %c0_i32 = arith.constant 0 : i32
    %c0_i32_0 = arith.constant 0 : i32
    %c0_i32_1 = arith.constant 0 : i32
    %c0_i32_2 = arith.constant 0 : i32
    return %c0_i32, %c0_i32_0, %c0_i32_1 : i32, i32, i32
  }
  func.func @transform_2(%arg0: i32) -> (i32, i32) {
    %c0_i32 = arith.constant 0 : i32
    %c0_i32_0 = arith.constant 0 : i32
    %c0_i32_1 = arith.constant 0 : i32
    return %c0_i32, %c0_i32_0 : i32, i32
  }
  func.func @transform_3(%arg0: i32) -> (i32, i32) {
    %c0_i32 = arith.constant 0 : i32
    %c0_i32_0 = arith.constant 0 : i32
    %c0_i32_1 = arith.constant 0 : i32
    return %c0_i32, %c0_i32_0 : i32, i32
  }
  func.func @transform_4(%arg0: i32) -> (i32, i32) {
    %c0_i32 = arith.constant 0 : i32
    %c0_i32_0 = arith.constant 0 : i32
    %c0_i32_1 = arith.constant 0 : i32
    return %c0_i32, %c0_i32_0 : i32, i32
  }
  func.func @transform_5(%arg0: i32) -> (i32, i32) {
    %c0_i32 = arith.constant 0 : i32
    %c0_i32_0 = arith.constant 0 : i32
    %c0_i32_1 = arith.constant 0 : i32
    return %c0_i32, %c0_i32_0 : i32, i32
  }
  func.func @transform_6(%arg0: i32) -> (i32, i32) {
    %c0_i32 = arith.constant 0 : i32
    %c0_i32_0 = arith.constant 0 : i32
    %c0_i32_1 = arith.constant 0 : i32
    return %c0_i32, %c0_i32_0 : i32, i32
  }
  func.func @transform_7(%arg0: i32) -> (i32, i32) {
    %c0_i32 = arith.constant 0 : i32
    %c0_i32_0 = arith.constant 0 : i32
    %c0_i32_1 = arith.constant 0 : i32
    return %c0_i32, %c0_i32_0 : i32, i32
  }
  func.func @transform_8(%arg0: i32) -> (i32, i32) {
    %c0_i32 = arith.constant 0 : i32
    %c0_i32_0 = arith.constant 0 : i32
    %c0_i32_1 = arith.constant 0 : i32
    return %c0_i32, %c0_i32_0 : i32, i32
  }
  func.func @transform_9(%arg0: i32) -> (i32, i32) {
    %c0_i32 = arith.constant 0 : i32
    %c0_i32_0 = arith.constant 0 : i32
    %c0_i32_1 = arith.constant 0 : i32
    return %c0_i32, %c0_i32_0 : i32, i32
  }
  func.func @transform_10(%arg0: i32) -> (i32, i32) {
    %c0_i32 = arith.constant 0 : i32
    %c0_i32_0 = arith.constant 0 : i32
    %c0_i32_1 = arith.constant 0 : i32
    return %c0_i32, %c0_i32_0 : i32, i32
  }
  func.func @transform_11(%arg0: i32) -> (i32, i32) {
    %c0_i32 = arith.constant 0 : i32
    %c0_i32_0 = arith.constant 0 : i32
    %c0_i32_1 = arith.constant 0 : i32
    return %c0_i32, %c0_i32_0 : i32, i32
  }
  func.func @transform_12(%arg0: i32) -> (i32, i32) {
    %c0_i32 = arith.constant 0 : i32
    %c0_i32_0 = arith.constant 0 : i32
    %c0_i32_1 = arith.constant 0 : i32
    return %c0_i32, %c0_i32_0 : i32, i32
  }
}

</mosaic_0001>

<llo_original>
// kernel: tpu_custom_call.1
$region0: #{tpu_custom_call.1}
  #allocation0 [shape = 'u32[]', space=smem, size = 0x4, offset = 0x4, fixed_abs, tag = 'smem constant byte address 0x4 - core index']
  #allocation1 [shape = 'u32[144,128]{1,0:T(1,128)}', space=vmem, size = 0x12000, scoped, tag = 'internal scratch']
  %s0 = inlined_call_operand.hbm [shape: f32[2,64], index: 0, kind: input, shape index: {}]
  %s1 = inlined_call_operand.hbm [shape: f32[2,2,32], index: 1, kind: input, shape index: {}]
  %s2 = inlined_call_operand.vmem [shape: f32[32,768], index: 2, kind: input, shape index: {}]
  %s3 = inlined_call_operand.vmem [shape: f32[1,768], index: 3, kind: input, shape index: {}]
  %s4 = inlined_call_operand.vmem [shape: f32[32,96], index: 4, kind: input, shape index: {}]
  %s5 = inlined_call_operand.vmem [shape: f32[1,96], index: 5, kind: input, shape index: {}]
  %s6 = inlined_call_operand.vmem [shape: f32[64,96], index: 6, kind: input, shape index: {}]
  %s7 = inlined_call_operand.vmem [shape: f32[1,96], index: 7, kind: input, shape index: {}]
  %s8 = inlined_call_operand.vmem [shape: f32[32,32], index: 8, kind: input, shape index: {}]
  %s9 = inlined_call_operand.vmem [shape: f32[1,32], index: 9, kind: input, shape index: {}]
  %s10 = inlined_call_operand.vmem [shape: f32[256,32], index: 10, kind: input, shape index: {}]
  %s11 = inlined_call_operand.vmem [shape: f32[1,32], index: 11, kind: input, shape index: {}]
  %s12 = inlined_call_operand.hbm [shape: f32[2,32], index: 12, kind: output, shape index: {}]
  %s13 = sld [smem:[#allocation0]]
  $region66: #{tpu_custom_call.1} parent=0
    _
  %s15 = ssub.s32 1, %s13
  %s16 = scalar_select 0, %s15, %s13
  $region1: #{tpu_custom_call.1} parent=0
    #allocation2 [shape = 'u8[1024]{0}', space=vmem, size = 0x400, scoped, tag = 'input window, operand 0, single buffered']
    #allocation3 [shape = 's32[1]{0}', space=sflag, size = 0x4, scoped, tag = 'scoped memory for tpu_custom_call.1']
    #allocation4 [shape = 's32[1]{0}', space=sflag, size = 0x4, scoped, tag = 'scoped memory for tpu_custom_call.1']
    #allocation5 [shape = 'u8[2048]{0}', space=vmem, size = 0x800, scoped, tag = 'input window, operand 1, single buffered']
    #allocation6 [shape = 's32[1]{0}', space=sflag, size = 0x4, scoped, tag = 'scoped memory for tpu_custom_call.1']
    #allocation7 [shape = 'u8[1024]{0}', space=vmem, size = 0x400, scoped, tag = 'output window, operand 0, single buffered']
    %17 = vsyncpa [#allocation3], 0
    %18 = vsyncpa [#allocation6], 0
    %19 = vsyncpa [#allocation4], 0
    // Predicated region
    $region2: #{tpu_custom_call.1} parent=1 // pred_check
      _
    $region3: #{tpu_custom_call.1} parent=1 // pred_check_branch
      %21 = sbr.rel (0) target = $region5
    $region4: #{tpu_custom_call.1} parent=1 // pred_region
      %s23 = ssub.s32 32, 32
      %24 = vsyncadd [#allocation3], %s23
      %s26 = sshll.u32 [#allocation2], 4
      %s27 = int_to_ptr.vmem [resolvable:$true] %s26
      %29 = dma.hbm_to_vmem [thread:$0]  %s0, 32, %s27, [#allocation3]
    $region5: #{tpu_custom_call.1} parent=1 // pred_fallthru
      _
    // Predicated region
    $region6: #{tpu_custom_call.1} parent=1 // pred_check
      _
    $region7: #{tpu_custom_call.1} parent=1 // pred_check_branch
      %31 = sbr.rel (0) target = $region9
    $region8: #{tpu_custom_call.1} parent=1 // pred_region
      %s33 = ssub.s32 64, 64
      %34 = vsyncadd [#allocation6], %s33
      %s35 = sshll.u32 [#allocation5], 4
      %s36 = int_to_ptr.vmem [resolvable:$true] %s35
      %41 = dma.hbm_to_vmem [thread:$0]  %s1, 64, %s36, [#allocation6], 32, 32, 2
    $region9: #{tpu_custom_call.1} parent=1 // pred_fallthru
      _
    // Predicated region
    $region10: #{tpu_custom_call.1} parent=1 // pred_check
      _
    $region11: #{tpu_custom_call.1} parent=1 // pred_check_branch
      %43 = sbr.rel (0) target = $region13
    $region12: #{tpu_custom_call.1} parent=1 // pred_region
      _
    $region13: #{tpu_custom_call.1} parent=1 // pred_fallthru
      _
    // Predicated region
    $region14: #{tpu_custom_call.1} parent=1 // pred_check
      _
    $region15: #{tpu_custom_call.1} parent=1 // pred_check_branch
      %45 = sbr.rel (0) target = $region17
    $region16: #{tpu_custom_call.1} parent=1 // pred_region
      _
    $region17: #{tpu_custom_call.1} parent=1 // pred_fallthru
      _
    // Predicated region
    $region18: #{tpu_custom_call.1} parent=1 // pred_check
      _
    $region19: #{tpu_custom_call.1} parent=1 // pred_check_branch
      %47 = sbr.rel (0) target = $region21
    $region20: #{tpu_custom_call.1} parent=1 // pred_region
      _
    $region21: #{tpu_custom_call.1} parent=1 // pred_fallthru
      _
    // Predicated region
    $region22: #{tpu_custom_call.1} parent=1 // pred_check
      _
    $region23: #{tpu_custom_call.1} parent=1 // pred_check_branch
      %49 = sbr.rel (0) target = $region25
    $region24: #{tpu_custom_call.1} parent=1 // pred_region
      _
    $region25: #{tpu_custom_call.1} parent=1 // pred_fallthru
      _
    // Predicated region
    $region26: #{tpu_custom_call.1} parent=1 // pred_check
      _
    $region27: #{tpu_custom_call.1} parent=1 // pred_check_branch
      %51 = sbr.rel (0) target = $region29
    $region28: #{tpu_custom_call.1} parent=1 // pred_region
      _
    $region29: #{tpu_custom_call.1} parent=1 // pred_fallthru
      _
    // Predicated region
    $region30: #{tpu_custom_call.1} parent=1 // pred_check
      _
    $region31: #{tpu_custom_call.1} parent=1 // pred_check_branch
      %53 = sbr.rel (0) target = $region33
    $region32: #{tpu_custom_call.1} parent=1 // pred_region
      _
    $region33: #{tpu_custom_call.1} parent=1 // pred_fallthru
      _
    // Predicated region
    $region34: #{tpu_custom_call.1} parent=1 // pred_check
      _
    $region35: #{tpu_custom_call.1} parent=1 // pred_check_branch
      %55 = sbr.rel (0) target = $region37
    $region36: #{tpu_custom_call.1} parent=1 // pred_region
      _
    $region37: #{tpu_custom_call.1} parent=1 // pred_fallthru
      _
    // Predicated region
    $region38: #{tpu_custom_call.1} parent=1 // pred_check
      _
    $region39: #{tpu_custom_call.1} parent=1 // pred_check_branch
      %57 = sbr.rel (0) target = $region41
    $region40: #{tpu_custom_call.1} parent=1 // pred_region
      _
    $region41: #{tpu_custom_call.1} parent=1 // pred_fallthru
      _
    // Predicated region
    $region42: #{tpu_custom_call.1} parent=1 // pred_check
      _
    $region43: #{tpu_custom_call.1} parent=1 // pred_check_branch
      %59 = sbr.rel (0) target = $region45
    $region44: #{tpu_custom_call.1} parent=1 // pred_region
      _
    $region45: #{tpu_custom_call.1} parent=1 // pred_fallthru
      _
    // Predicated region
    $region46: #{tpu_custom_call.1} parent=1 // pred_check
      _
    $region47: #{tpu_custom_call.1} parent=1 // pred_check_branch
      %61 = sbr.rel (0) target = $region49
    $region48: #{tpu_custom_call.1} parent=1 // pred_region
      _
    $region49: #{tpu_custom_call.1} parent=1 // pred_fallthru
      _
    // Predicated region
    $region50: #{tpu_custom_call.1} parent=1 // pred_check
      _
    $region51: #{tpu_custom_call.1} parent=1 // pred_check_branch
      %63 = sbr.rel (0) target = $region53
    $region52: #{tpu_custom_call.1} parent=1 // pred_region
      %64 = dma.done [#allocation3], 32
    $region53: #{tpu_custom_call.1} parent=1 // pred_fallthru
      _
    // Predicated region
    $region54: #{tpu_custom_call.1} parent=1 // pred_check
      _
    $region55: #{tpu_custom_call.1} parent=1 // pred_check_branch
      %66 = sbr.rel (0) target = $region57
    $region56: #{tpu_custom_call.1} parent=1 // pred_region
      %67 = dma.done [#allocation6], 64
    $region57: #{tpu_custom_call.1} parent=1 // pred_fallthru
      _
    %v68 = vld [vmem:[#allocation2] sm:$0x3]
    %70 = vrot.lane.b32.xlu0 %v68, 96
    %v71 = vpop.permute.xlu0 %70
    %v73 = vadd.f32 %v68, %v71
    %v74 = vld [vmem:[%s4] sm:$0xff]
    %v75 = vld [vmem:[%s4 + $0x8] sm:$0xff]
    %v76 = vld [vmem:[%s4 + $0x10] sm:$0xff]
    %v77 = vld [vmem:[%s4 + $0x18] sm:$0xff]
    %v78 = vld [vmem:[%s5] sm:$0x1]
    %v79 = vld [vmem:[%s6] sm:$0xff]
    %v80 = vld [vmem:[%s6 + $0x8] sm:$0xff]
    %v81 = vld [vmem:[%s6 + $0x10] sm:$0xff]
    %v82 = vld [vmem:[%s6 + $0x18] sm:$0xff]
    %v83 = vld [vmem:[%s6 + $0x20] sm:$0xff]
    %v84 = vld [vmem:[%s6 + $0x28] sm:$0xff]
    %v85 = vld [vmem:[%s6 + $0x30] sm:$0xff]
    %v86 = vld [vmem:[%s6 + $0x38] sm:$0xff]
    %v87 = vld [vmem:[%s7] sm:$0x1]
    %v88 = vld [vmem:[%s8] sm:$0xff]
    %v89 = vld [vmem:[%s8 + $0x8] sm:$0xff]
    %v90 = vld [vmem:[%s8 + $0x10] sm:$0xff]
    %v91 = vld [vmem:[%s8 + $0x18] sm:$0xff]
    %v92 = vld [vmem:[%s9] sm:$0x1]
    %v93 = vld [vmem:[%s2] sm:$0xff]
    %v94 = vld [vmem:[%s2 + $0x8] sm:$0xff]
    %v95 = vld [vmem:[%s2 + $0x10] sm:$0xff]
    %v96 = vld [vmem:[%s2 + $0x18] sm:$0xff]
    %v97 = vld [vmem:[%s2 + $0x20] sm:$0xff]
    %v98 = vld [vmem:[%s2 + $0x28] sm:$0xff]
    %v99 = vld [vmem:[%s2 + $0x30] sm:$0xff]
    %v100 = vld [vmem:[%s2 + $0x38] sm:$0xff]
    %v101 = vld [vmem:[%s2 + $0x40] sm:$0xff]
    %v102 = vld [vmem:[%s2 + $0x48] sm:$0xff]
    %v103 = vld [vmem:[%s2 + $0x50] sm:$0xff]
    %v104 = vld [vmem:[%s2 + $0x58] sm:$0xff]
    %v105 = vld [vmem:[%s2 + $0x60] sm:$0xff]
    %v106 = vld [vmem:[%s2 + $0x68] sm:$0xff]
    %v107 = vld [vmem:[%s2 + $0x70] sm:$0xff]
    %v108 = vld [vmem:[%s2 + $0x78] sm:$0xff]
    %v109 = vld [vmem:[%s2 + $0x80] sm:$0xff]
    %v110 = vld [vmem:[%s2 + $0x88] sm:$0xff]
    %v111 = vld [vmem:[%s2 + $0x90] sm:$0xff]
    %v112 = vld [vmem:[%s2 + $0x98] sm:$0xff]
    %v113 = vld [vmem:[%s2 + $0xa0] sm:$0xff]
    %v114 = vld [vmem:[%s2 + $0xa8] sm:$0xff]
    %v115 = vld [vmem:[%s2 + $0xb0] sm:$0xff]
    %v116 = vld [vmem:[%s2 + $0xb8] sm:$0xff]
    %v117 = vld [vmem:[%s3] sm:$0x3f]
    %v119 = vlaneseq
    %v120 = vshrl.u32 %v119, 7
    %v121 = vsub.s32 0, %v120
    %v122 = vrot.slane %v117, %v121
    %v123 = vlaneseq
    %v124 = vshrl.u32 %v123, 7
    %v125 = vsub.s32 1, %v124
    %v126 = vrot.slane %v117, %v125
    %v127 = vlaneseq
    %v128 = vshrl.u32 %v127, 7
    %v129 = vsub.s32 2, %v128
    %v130 = vrot.slane %v117, %v129
    %v131 = vlaneseq
    %v132 = vshrl.u32 %v131, 7
    %v133 = vsub.s32 3, %v132
    %v134 = vrot.slane %v117, %v133
    %v135 = vlaneseq
    %v136 = vshrl.u32 %v135, 7
    %v137 = vsub.s32 4, %v136
    %v138 = vrot.slane %v117, %v137
    %v139 = vlaneseq
    %v140 = vshrl.u32 %v139, 7
    %v141 = vsub.s32 5, %v140
    %v142 = vrot.slane %v117, %v141
    %vm149 = vcmask 261120
    %v151 = vsel %vm149, %v73, 0
    %153 = vmatprep.subr.mxu0 %v94
    %154 = vmatpush1.msra.mxu0 %v93
    %155 = vmatprep.subr.mxu0 %v100
    %156 = vmatpush1.msra.mxu0 %v99
    %157 = vmatprep.subr.mxu0 %v106
    %158 = vmatpush1.msra.mxu0 %v105
    %159 = vmatprep.subr.mxu0 %v112
    %160 = vmatpush1.msra.mxu0 %v111
    %161 = vmatprep.subr.mxu0 0.0
    %162 = vmatpush1.msra.mxu0 0.0
    %163 = vmatprep.subr.mxu0 0.0
    %164 = vmatpush1.msra.mxu0 0.0
    %165 = vmatprep.subr.mxu0 0.0
    %166 = vmatpush1.msra.mxu0 0.0
    %167 = vmatprep.subr.mxu0 0.0
    %168 = vmatpush1.msra.mxu0 0.0
    %169 = vmatprep.subr.mxu0 0.0
    %170 = vmatpush1.msra.mxu0 0.0
    %171 = vmatprep.subr.mxu0 0.0
    %172 = vmatpush1.msra.mxu0 0.0
    %173 = vmatprep.subr.mxu0 0.0
    %174 = vmatpush1.msra.mxu0 0.0
    %175 = vmatprep.subr.mxu0 0.0
    %176 = vmatpush1.msra.mxu0 0.0
    %177 = vmatprep.subr.mxu0 0.0
    %178 = vmatpush1.msra.mxu0 0.0
    %179 = vmatprep.subr.mxu0 0.0
    %180 = vmatpush1.msra.mxu0 0.0
    %181 = vmatprep.subr.mxu0 0.0
    %182 = vmatpush1.msra.mxu0 0.0
    %183 = vmatprep.subr.mxu0 0.0
    %184 = vmatpush1.msra.mxu0 0.0
    %185 = vmatprep.subr.mxu0 0.0
    %186 = vmatpush1.msra.mxu0 0.0
    %187 = vmatprep.subr.mxu0 0.0
    %188 = vmatpush1.msra.mxu0 0.0
    %189 = vmatprep.subr.mxu0 0.0
    %190 = vmatpush1.msra.mxu0 0.0
    %191 = vmatprep.subr.mxu0 0.0
    %192 = vmatpush1.msra.mxu0 0.0
    %193 = vmatprep.subr.mxu0 0.0
    %194 = vmatpush1.msra.mxu0 0.0
    %195 = vmatprep.subr.mxu0 0.0
    %196 = vmatpush1.msra.mxu0 0.0
    %197 = vmatprep.subr.mxu0 0.0
    %198 = vmatpush1.msra.mxu0 0.0
    %199 = vmatprep.subr.mxu0 0.0
    %200 = vmatpush1.msra.mxu0 0.0
    %201 = vmatprep.subr.mxu0 0.0
    %202 = vmatpush1.msra.mxu0 0.0
    %203 = vmatprep.subr.mxu0 0.0
    %204 = vmatpush1.msra.mxu0 0.0
    %205 = vmatprep.subr.mxu0 0.0
    %206 = vmatpush1.msra.mxu0 0.0
    %207 = vmatprep.subr.mxu0 0.0
    %208 = vmatpush1.msra.mxu0 0.0
    %209 = vmatprep.subr.mxu0 0.0
    %210 = vmatpush1.msra.mxu0 0.0
    %211 = vmatprep.subr.mxu0 0.0
    %212 = vmatpush1.msra.mxu0 0.0
    %213 = vmatprep.subr.mxu0 0.0
    %214 = vmatpush1.msra.mxu0 0.0
    %215 = vmatprep.subr.mxu0 0.0
    %216 = vmatpush1.msra.mxu0 0.0
    %217 = vmatprep.mubr.f32.mxu0 0.0
    %218 = vmatmul.mubr.f32.gmra.mrb[0].mxu0 %v151
    %v219 = vpop.f32.mrb[0].mxu0
    %v220 = vadd.f32 %v122, %v219
    %v221 = vpop.f32.mrb[0].mxu0
    %v222 = vadd.f32 %v126, %v221
    %223 = vdwg.mxu0
    %224 = vmatprep.subr.mxu0 %v96
    %225 = vmatpush1.msra.mxu0 %v95
    %226 = vmatprep.subr.mxu0 %v102
    %227 = vmatpush1.msra.mxu0 %v101
    %228 = vmatprep.subr.mxu0 %v108
    %229 = vmatpush1.msra.mxu0 %v107
    %230 = vmatprep.subr.mxu0 %v114
    %231 = vmatpush1.msra.mxu0 %v113
    %232 = vmatprep.subr.mxu0 0.0
    %233 = vmatpush1.msra.mxu0 0.0
    %234 = vmatprep.subr.mxu0 0.0
    %235 = vmatpush1.msra.mxu0 0.0
    %236 = vmatprep.subr.mxu0 0.0
    %237 = vmatpush1.msra.mxu0 0.0
    %238 = vmatprep.subr.mxu0 0.0
    %239 = vmatpush1.msra.mxu0 0.0
    %240 = vmatprep.subr.mxu0 0.0
    %241 = vmatpush1.msra.mxu0 0.0
    %242 = vmatprep.subr.mxu0 0.0
    %243 = vmatpush1.msra.mxu0 0.0
    %244 = vmatprep.subr.mxu0 0.0
    %245 = vmatpush1.msra.mxu0 0.0
    %246 = vmatprep.subr.mxu0 0.0
    %247 = vmatpush1.msra.mxu0 0.0
    %248 = vmatprep.subr.mxu0 0.0
    %249 = vmatpush1.msra.mxu0 0.0
    %250 = vmatprep.subr.mxu0 0.0
    %251 = vmatpush1.msra.mxu0 0.0
    %252 = vmatprep.subr.mxu0 0.0
    %253 = vmatpush1.msra.mxu0 0.0
    %254 = vmatprep.subr.mxu0 0.0
    %255 = vmatpush1.msra.mxu0 0.0
    %256 = vmatprep.subr.mxu0 0.0
    %257 = vmatpush1.msra.mxu0 0.0
    %258 = vmatprep.subr.mxu0 0.0
    %259 = vmatpush1.msra.mxu0 0.0
    %260 = vmatprep.subr.mxu0 0.0
    %261 = vmatpush1.msra.mxu0 0.0
    %262 = vmatprep.subr.mxu0 0.0
    %263 = vmatpush1.msra.mxu0 0.0
    %264 = vmatprep.subr.mxu0 0.0
    %265 = vmatpush1.msra.mxu0 0.0
    %266 = vmatprep.subr.mxu0 0.0
    %267 = vmatpush1.msra.mxu0 0.0
    %268 = vmatprep.subr.mxu0 0.0
    %269 = vmatpush1.msra.mxu0 0.0
    %270 = vmatprep.subr.mxu0 0.0
    %271 = vmatpush1.msra.mxu0 0.0
    %272 = vmatprep.subr.mxu0 0.0
    %273 = vmatpush1.msra.mxu0 0.0
    %274 = vmatprep.subr.mxu0 0.0
    %275 = vmatpush1.msra.mxu0 0.0
    %276 = vmatprep.subr.mxu0 0.0
    %277 = vmatpush1.msra.mxu0 0.0
    %278 = vmatprep.subr.mxu0 0.0
    %279 = vmatpush1.msra.mxu0 0.0
    %280 = vmatprep.subr.mxu0 0.0
    %281 = vmatpush1.msra.mxu0 0.0
    %282 = vmatprep.subr.mxu0 0.0
    %283 = vmatpush1.msra.mxu0 0.0
    %284 = vmatprep.subr.mxu0 0.0
    %285 = vmatpush1.msra.mxu0 0.0
    %286 = vmatprep.subr.mxu0 0.0
    %287 = vmatpush1.msra.mxu0 0.0
    %288 = vmatprep.mubr.f32.mxu0 0.0
    %289 = vmatmul.mubr.f32.gmra.mrb[0].mxu0 %v151
    %v290 = vpop.f32.mrb[0].mxu0
    %v291 = vadd.f32 %v130, %v290
    %v292 = vpop.f32.mrb[0].mxu0
    %v293 = vadd.f32 %v134, %v292
    %294 = vdwg.mxu0
    %295 = vmatprep.subr.mxu0 %v98
    %296 = vmatpush1.msra.mxu0 %v97
    %297 = vmatprep.subr.mxu0 %v104
    %298 = vmatpush1.msra.mxu0 %v103
    %299 = vmatprep.subr.mxu0 %v110
    %300 = vmatpush1.msra.mxu0 %v109
    %301 = vmatprep.subr.mxu0 %v116
    %302 = vmatpush1.msra.mxu0 %v115
    %303 = vmatprep.subr.mxu0 0.0
    %304 = vmatpush1.msra.mxu0 0.0
    %305 = vmatprep.subr.mxu0 0.0
    %306 = vmatpush1.msra.mxu0 0.0
    %307 = vmatprep.subr.mxu0 0.0
    %308 = vmatpush1.msra.mxu0 0.0
    %309 = vmatprep.subr.mxu0 0.0
    %310 = vmatpush1.msra.mxu0 0.0
    %311 = vmatprep.subr.mxu0 0.0
    %312 = vmatpush1.msra.mxu0 0.0
    %313 = vmatprep.subr.mxu0 0.0
    %314 = vmatpush1.msra.mxu0 0.0
    %315 = vmatprep.subr.mxu0 0.0
    %316 = vmatpush1.msra.mxu0 0.0
    %317 = vmatprep.subr.mxu0 0.0
    %318 = vmatpush1.msra.mxu0 0.0
    %319 = vmatprep.subr.mxu0 0.0
    %320 = vmatpush1.msra.mxu0 0.0
    %321 = vmatprep.subr.mxu0 0.0
    %322 = vmatpush1.msra.mxu0 0.0
    %323 = vmatprep.subr.mxu0 0.0
    %324 = vmatpush1.msra.mxu0 0.0
    %325 = vmatprep.subr.mxu0 0.0
    %326 = vmatpush1.msra.mxu0 0.0
    %327 = vmatprep.subr.mxu0 0.0
    %328 = vmatpush1.msra.mxu0 0.0
    %329 = vmatprep.subr.mxu0 0.0
    %330 = vmatpush1.msra.mxu0 0.0
    %331 = vmatprep.subr.mxu0 0.0
    %332 = vmatpush1.msra.mxu0 0.0
    %333 = vmatprep.subr.mxu0 0.0
    %334 = vmatpush1.msra.mxu0 0.0
    %335 = vmatprep.subr.mxu0 0.0
    %336 = vmatpush1.msra.mxu0 0.0
    %337 = vmatprep.subr.mxu0 0.0
    %338 = vmatpush1.msra.mxu0 0.0
    %339 = vmatprep.subr.mxu0 0.0
    %340 = vmatpush1.msra.mxu0 0.0
    %341 = vmatprep.subr.mxu0 0.0
    %342 = vmatpush1.msra.mxu0 0.0
    %343 = vmatprep.subr.mxu0 0.0
    %344 = vmatpush1.msra.mxu0 0.0
    %345 = vmatprep.subr.mxu0 0.0
    %346 = vmatpush1.msra.mxu0 0.0
    %347 = vmatprep.subr.mxu0 0.0
    %348 = vmatpush1.msra.mxu0 0.0
    %349 = vmatprep.subr.mxu0 0.0
    %350 = vmatpush1.msra.mxu0 0.0
    %351 = vmatprep.subr.mxu0 0.0
    %352 = vmatpush1.msra.mxu0 0.0
    %353 = vmatprep.subr.mxu0 0.0
    %354 = vmatpush1.msra.mxu0 0.0
    %355 = vmatprep.subr.mxu0 0.0
    %356 = vmatpush1.msra.mxu0 0.0
    %357 = vmatprep.subr.mxu0 0.0
    %358 = vmatpush1.msra.mxu0 0.0
    %359 = vmatprep.mubr.f32.mxu0 0.0
    %360 = vmatmul.mubr.f32.gmra.mrb[0].mxu0 %v151
    %v361 = vpop.f32.mrb[0].mxu0
    %v362 = vadd.f32 %v138, %v361
    %v363 = vpop.f32.mrb[0].mxu0
    %v364 = vadd.f32 %v142, %v363
    %365 = vdwg.mxu0
    %v366 = vld [vmem:[#allocation5] sm:$0x3]
    %s367 = scalar_lea.vmem [#allocation5], 2
    %v368 = vld [vmem:[%s367] sm:$0x3]
    %v370 = vlaneseq
    %v371 = vshrl.u32 %v370, 7
    %v372 = vsub.s32 0, %v371
    %v373 = vrot.slane %v78, %v372
    %v376 = vsel %vm149, %v366, 0
    %378 = vmatprep.subr.mxu0 0.0
    %379 = vmatpush1.msra.mxu0 %v74
    %380 = vmatprep.subr.mxu0 0.0
    %381 = vmatpush1.msra.mxu0 %v75
    %382 = vmatprep.subr.mxu0 0.0
    %383 = vmatpush1.msra.mxu0 %v76
    %384 = vmatprep.subr.mxu0 0.0
    %385 = vmatpush1.msra.mxu0 %v77
    %386 = vmatprep.subr.mxu0 0.0
    %387 = vmatpush1.msra.mxu0 0.0
    %388 = vmatprep.subr.mxu0 0.0
    %389 = vmatpush1.msra.mxu0 0.0
    %390 = vmatprep.subr.mxu0 0.0
    %391 = vmatpush1.msra.mxu0 0.0
    %392 = vmatprep.subr.mxu0 0.0
    %393 = vmatpush1.msra.mxu0 0.0
    %394 = vmatprep.subr.mxu0 0.0
    %395 = vmatpush1.msra.mxu0 0.0
    %396 = vmatprep.subr.mxu0 0.0
    %397 = vmatpush1.msra.mxu0 0.0
    %398 = vmatprep.subr.mxu0 0.0
    %399 = vmatpush1.msra.mxu0 0.0
    %400 = vmatprep.subr.mxu0 0.0
    %401 = vmatpush1.msra.mxu0 0.0
    %402 = vmatprep.subr.mxu0 0.0
    %403 = vmatpush1.msra.mxu0 0.0
    %404 = vmatprep.subr.mxu0 0.0
    %405 = vmatpush1.msra.mxu0 0.0
    %406 = vmatprep.subr.mxu0 0.0
    %407 = vmatpush1.msra.mxu0 0.0
    %408 = vmatprep.subr.mxu0 0.0
    %409 = vmatpush1.msra.mxu0 0.0
    %410 = vmatprep.subr.mxu0 0.0
    %411 = vmatpush1.msra.mxu0 0.0
    %412 = vmatprep.subr.mxu0 0.0
    %413 = vmatpush1.msra.mxu0 0.0
    %414 = vmatprep.subr.mxu0 0.0
    %415 = vmatpush1.msra.mxu0 0.0
    %416 = vmatprep.subr.mxu0 0.0
    %417 = vmatpush1.msra.mxu0 0.0
    %418 = vmatprep.subr.mxu0 0.0
    %419 = vmatpush1.msra.mxu0 0.0
    %420 = vmatprep.subr.mxu0 0.0
    %421 = vmatpush1.msra.mxu0 0.0
    %422 = vmatprep.subr.mxu0 0.0
    %423 = vmatpush1.msra.mxu0 0.0
    %424 = vmatprep.subr.mxu0 0.0
    %425 = vmatpush1.msra.mxu0 0.0
    %426 = vmatprep.subr.mxu0 0.0
    %427 = vmatpush1.msra.mxu0 0.0
    %428 = vmatprep.subr.mxu0 0.0
    %429 = vmatpush1.msra.mxu0 0.0
    %430 = vmatprep.subr.mxu0 0.0
    %431 = vmatpush1.msra.mxu0 0.0
    %432 = vmatprep.subr.mxu0 0.0
    %433 = vmatpush1.msra.mxu0 0.0
    %434 = vmatprep.subr.mxu0 0.0
    %435 = vmatpush1.msra.mxu0 0.0
    %436 = vmatprep.subr.mxu0 0.0
    %437 = vmatpush1.msra.mxu0 0.0
    %438 = vmatprep.subr.mxu0 0.0
    %439 = vmatpush1.msra.mxu0 0.0
    %440 = vmatprep.subr.mxu0 0.0
    %441 = vmatpush1.msra.mxu0 0.0
    %442 = vmatprep.mubr.f32.mxu0 0.0
    %443 = vmatmul.mubr.f32.gmra.mrb[0].mxu0 %v376
    %v444 = vpop.f32.mrb[0].mxu0
    %v445 = vadd.f32 %v373, %v444
    %v446 = vpop.f32.mrb[0].mxu0
    %447 = vdwg.mxu0
    %v448 = vadd.f32 %v220, %v445
    %v449 = vxor.u32 %v448, 2147483648
    %v450 = vmul.f32 %v449, 1.442695
    %v451 = vpow.pop %v450
    %v452 = vadd.f32 %v451, 1.0
    %v453 = vrcp.pop %v452
    %v454 = vmul.f32 1.0, %v453
    %456 = vrot.lane.b32.xlu0 %v445, 64
    %v457 = vpop.permute.xlu0 %456
    %v459 = vmul.f32 %v454, %v457
    %461 = vrot.lane.b32.xlu0 %v459, 64
    %v462 = vpop.permute.xlu0 %461
    %v464 = vadd.f32 %v220, %v462
    %v465 = vtanh.pop %v464
    %v466 = vsub.f32 1.0, %v454
    %468 = vrot.lane.b32.xlu0 %v465, 96
    %v469 = vpop.permute.xlu0 %468
    %v471 = vmul.f32 %v466, %v469
    %472 = vrot.lane.b32.xlu0 %v366, 32
    %v473 = vpop.permute.xlu0 %472
    %v475 = vmul.f32 %v454, %v473
    %v476 = vadd.f32 %v471, %v475
    %478 = vrot.lane.b32.xlu0 %v476, 96
    %v479 = vpop.permute.xlu0 %478
    %482 = vrot.lane.b32.xlu0 %v368, 32
    %v483 = vpop.permute.xlu0 %482
    %v485 = vsel %vm149, %v479, %v483
    %v487 = vlaneseq
    %v488 = vshrl.u32 %v487, 7
    %v489 = vsub.s32 0, %v488
    %v490 = vrot.slane %v87, %v489
    %vm492 = vcmask 523264
    %v494 = vsel %vm492, %v485, 0
    %496 = vmatprep.subr.mxu0 0.0
    %497 = vmatpush1.msra.mxu0 %v79
    %498 = vmatprep.subr.mxu0 0.0
    %499 = vmatpush1.msra.mxu0 %v80
    %500 = vmatprep.subr.mxu0 0.0
    %501 = vmatpush1.msra.mxu0 %v81
    %502 = vmatprep.subr.mxu0 0.0
    %503 = vmatpush1.msra.mxu0 %v82
    %504 = vmatprep.subr.mxu0 0.0
    %505 = vmatpush1.msra.mxu0 %v83
    %506 = vmatprep.subr.mxu0 0.0
    %507 = vmatpush1.msra.mxu0 %v84
    %508 = vmatprep.subr.mxu0 0.0
    %509 = vmatpush1.msra.mxu0 %v85
    %510 = vmatprep.subr.mxu0 0.0
    %511 = vmatpush1.msra.mxu0 %v86
    %512 = vmatprep.subr.mxu0 0.0
    %513 = vmatpush1.msra.mxu0 0.0
    %514 = vmatprep.subr.mxu0 0.0
    %515 = vmatpush1.msra.mxu0 0.0
    %516 = vmatprep.subr.mxu0 0.0
    %517 = vmatpush1.msra.mxu0 0.0
    %518 = vmatprep.subr.mxu0 0.0
    %519 = vmatpush1.msra.mxu0 0.0
    %520 = vmatprep.subr.mxu0 0.0
    %521 = vmatpush1.msra.mxu0 0.0
    %522 = vmatprep.subr.mxu0 0.0
    %523 = vmatpush1.msra.mxu0 0.0
    %524 = vmatprep.subr.mxu0 0.0
    %525 = vmatpush1.msra.mxu0 0.0
    %526 = vmatprep.subr.mxu0 0.0
    %527 = vmatpush1.msra.mxu0 0.0
    %528 = vmatprep.subr.mxu0 0.0
    %529 = vmatpush1.msra.mxu0 0.0
    %530 = vmatprep.subr.mxu0 0.0
    %531 = vmatpush1.msra.mxu0 0.0
    %532 = vmatprep.subr.mxu0 0.0
    %533 = vmatpush1.msra.mxu0 0.0
    %534 = vmatprep.subr.mxu0 0.0
    %535 = vmatpush1.msra.mxu0 0.0
    %536 = vmatprep.subr.mxu0 0.0
    %537 = vmatpush1.msra.mxu0 0.0
    %538 = vmatprep.subr.mxu0 0.0
    %539 = vmatpush1.msra.mxu0 0.0
    %540 = vmatprep.subr.mxu0 0.0
    %541 = vmatpush1.msra.mxu0 0.0
    %542 = vmatprep.subr.mxu0 0.0
    %543 = vmatpush1.msra.mxu0 0.0
    %544 = vmatprep.subr.mxu0 0.0
    %545 = vmatpush1.msra.mxu0 0.0
    %546 = vmatprep.subr.mxu0 0.0
    %547 = vmatpush1.msra.mxu0 0.0
    %548 = vmatprep.subr.mxu0 0.0
    %549 = vmatpush1.msra.mxu0 0.0
    %550 = vmatprep.subr.mxu0 0.0
    %551 = vmatpush1.msra.mxu0 0.0
    %552 = vmatprep.subr.mxu0 0.0
    %553 = vmatpush1.msra.mxu0 0.0
    %554 = vmatprep.subr.mxu0 0.0
    %555 = vmatpush1.msra.mxu0 0.0
    %556 = vmatprep.subr.mxu0 0.0
    %557 = vmatpush1.msra.mxu0 0.0
    %558 = vmatprep.subr.mxu0 0.0
    %559 = vmatpush1.msra.mxu0 0.0
    %560 = vmatprep.mubr.f32.mxu0 0.0
    %561 = vmatmul.mubr.f32.gmra.mrb[0].mxu0 %v494
    %v562 = vpop.f32.mrb[0].mxu0
    %v563 = vadd.f32 %v490, %v562
    %v564 = vpop.f32.mrb[0].mxu0
    %565 = vdwg.mxu0
    %v567 = vlaneseq
    %v568 = vshrl.u32 %v567, 7
    %v569 = vsub.s32 0, %v568
    %v570 = vrot.slane %v92, %v569
    %v572 = vsel %vm149, %v368, 0
    %574 = vmatprep.subr.mxu0 0.0
    %575 = vmatpush1.msra.mxu0 %v88
    %576 = vmatprep.subr.mxu0 0.0
    %577 = vmatpush1.msra.mxu0 %v89
    %578 = vmatprep.subr.mxu0 0.0
    %579 = vmatpush1.msra.mxu0 %v90
    %580 = vmatprep.subr.mxu0 0.0
    %581 = vmatpush1.msra.mxu0 %v91
    %582 = vmatprep.subr.mxu0 0.0
    %583 = vmatpush1.msra.mxu0 0.0
    %584 = vmatprep.subr.mxu0 0.0
    %585 = vmatpush1.msra.mxu0 0.0
    %586 = vmatprep.subr.mxu0 0.0
    %587 = vmatpush1.msra.mxu0 0.0
    %588 = vmatprep.subr.mxu0 0.0
    %589 = vmatpush1.msra.mxu0 0.0
    %590 = vmatprep.subr.mxu0 0.0
    %591 = vmatpush1.msra.mxu0 0.0
    %592 = vmatprep.subr.mxu0 0.0
    %593 = vmatpush1.msra.mxu0 0.0
    %594 = vmatprep.subr.mxu0 0.0
    %595 = vmatpush1.msra.mxu0 0.0
    %596 = vmatprep.subr.mxu0 0.0
    %597 = vmatpush1.msra.mxu0 0.0
    %598 = vmatprep.subr.mxu0 0.0
    %599 = vmatpush1.msra.mxu0 0.0
    %600 = vmatprep.subr.mxu0 0.0
    %601 = vmatpush1.msra.mxu0 0.0
    %602 = vmatprep.subr.mxu0 0.0
    %603 = vmatpush1.msra.mxu0 0.0
    %604 = vmatprep.subr.mxu0 0.0
    %605 = vmatpush1.msra.mxu0 0.0
    %606 = vmatprep.subr.mxu0 0.0
    %607 = vmatpush1.msra.mxu0 0.0
    %608 = vmatprep.subr.mxu0 0.0
    %609 = vmatpush1.msra.mxu0 0.0
    %610 = vmatprep.subr.mxu0 0.0
    %611 = vmatpush1.msra.mxu0 0.0
    %612 = vmatprep.subr.mxu0 0.0
    %613 = vmatpush1.msra.mxu0 0.0
    %614 = vmatprep.subr.mxu0 0.0
    %615 = vmatpush1.msra.mxu0 0.0
    %616 = vmatprep.subr.mxu0 0.0
    %617 = vmatpush1.msra.mxu0 0.0
    %618 = vmatprep.subr.mxu0 0.0
    %619 = vmatpush1.msra.mxu0 0.0
    %620 = vmatprep.subr.mxu0 0.0
    %621 = vmatpush1.msra.mxu0 0.0
    %622 = vmatprep.subr.mxu0 0.0
    %623 = vmatpush1.msra.mxu0 0.0
    %624 = vmatprep.subr.mxu0 0.0
    %625 = vmatpush1.msra.mxu0 0.0
    %626 = vmatprep.subr.mxu0 0.0
    %627 = vmatpush1.msra.mxu0 0.0
    %628 = vmatprep.subr.mxu0 0.0
    %629 = vmatpush1.msra.mxu0 0.0
    %630 = vmatprep.subr.mxu0 0.0
    %631 = vmatpush1.msra.mxu0 0.0
    %632 = vmatprep.subr.mxu0 0.0
    %633 = vmatpush1.msra.mxu0 0.0
    %634 = vmatprep.subr.mxu0 0.0
    %635 = vmatpush1.msra.mxu0 0.0
    %636 = vmatprep.subr.mxu0 0.0
    %637 = vmatpush1.msra.mxu0 0.0
    %638 = vmatprep.mubr.f32.mxu0 0.0
    %639 = vmatmul.mubr.f32.gmra.mrb[0].mxu0 %v572
    %v640 = vpop.f32.mrb[0].mxu0
    %v641 = vadd.f32 %v570, %v640
    %v642 = vpop.f32.mrb[0].mxu0
    %643 = vdwg.mxu0
    %v644 = vxor.u32 %v563, 2147483648
    %v645 = vmul.f32 %v644, 1.442695
    %v646 = vpow.pop %v645
    %v647 = vadd.f32 %v646, 1.0
    %v648 = vrcp.pop %v647
    %v649 = vmul.f32 1.0, %v648
    %v650 = vmul.f32 %v649, %v641
    %652 = vrot.lane.b32.xlu0 %v650, 64
    %v653 = vpop.permute.xlu0 %652
    %v655 = vadd.f32 %v563, %v653
    %v656 = vtanh.pop %v655
    %v657 = vsub.f32 1.0, %v649
    %659 = vrot.lane.b32.xlu0 %v656, 96
    %v660 = vpop.permute.xlu0 %659
    %v662 = vmul.f32 %v657, %v660
    %v663 = vmul.f32 %v649, %v483
    %v664 = vadd.f32 %v662, %v663
    %v665 = vsel %vm149, %v479, 0
    %667 = vmatprep.subr.mxu0 0.0
    %668 = vmatpush1.msra.mxu0 %v74
    %669 = vmatprep.subr.mxu0 0.0
    %670 = vmatpush1.msra.mxu0 %v75
    %671 = vmatprep.subr.mxu0 0.0
    %672 = vmatpush1.msra.mxu0 %v76
    %673 = vmatprep.subr.mxu0 0.0
    %674 = vmatpush1.msra.mxu0 %v77
    %675 = vmatprep.subr.mxu0 0.0
    %676 = vmatpush1.msra.mxu0 0.0
    %677 = vmatprep.subr.mxu0 0.0
    %678 = vmatpush1.msra.mxu0 0.0
    %679 = vmatprep.subr.mxu0 0.0
    %680 = vmatpush1.msra.mxu0 0.0
    %681 = vmatprep.subr.mxu0 0.0
    %682 = vmatpush1.msra.mxu0 0.0
    %683 = vmatprep.subr.mxu0 0.0
    %684 = vmatpush1.msra.mxu0 0.0
    %685 = vmatprep.subr.mxu0 0.0
    %686 = vmatpush1.msra.mxu0 0.0
    %687 = vmatprep.subr.mxu0 0.0
    %688 = vmatpush1.msra.mxu0 0.0
    %689 = vmatprep.subr.mxu0 0.0
    %690 = vmatpush1.msra.mxu0 0.0
    %691 = vmatprep.subr.mxu0 0.0
    %692 = vmatpush1.msra.mxu0 0.0
    %693 = vmatprep.subr.mxu0 0.0
    %694 = vmatpush1.msra.mxu0 0.0
    %695 = vmatprep.subr.mxu0 0.0
    %696 = vmatpush1.msra.mxu0 0.0
    %697 = vmatprep.subr.mxu0 0.0
    %698 = vmatpush1.msra.mxu0 0.0
    %699 = vmatprep.subr.mxu0 0.0
    %700 = vmatpush1.msra.mxu0 0.0
    %701 = vmatprep.subr.mxu0 0.0
    %702 = vmatpush1.msra.mxu0 0.0
    %703 = vmatprep.subr.mxu0 0.0
    %704 = vmatpush1.msra.mxu0 0.0
    %705 = vmatprep.subr.mxu0 0.0
    %706 = vmatpush1.msra.mxu0 0.0
    %707 = vmatprep.subr.mxu0 0.0
    %708 = vmatpush1.msra.mxu0 0.0
    %709 = vmatprep.subr.mxu0 0.0
    %710 = vmatpush1.msra.mxu0 0.0
    %711 = vmatprep.subr.mxu0 0.0
    %712 = vmatpush1.msra.mxu0 0.0
    %713 = vmatprep.subr.mxu0 0.0
    %714 = vmatpush1.msra.mxu0 0.0
    %715 = vmatprep.subr.mxu0 0.0
    %716 = vmatpush1.msra.mxu0 0.0
    %717 = vmatprep.subr.mxu0 0.0
    %718 = vmatpush1.msra.mxu0 0.0
    %719 = vmatprep.subr.mxu0 0.0
    %720 = vmatpush1.msra.mxu0 0.0
    %721 = vmatprep.subr.mxu0 0.0
    %722 = vmatpush1.msra.mxu0 0.0
    %723 = vmatprep.subr.mxu0 0.0
    %724 = vmatpush1.msra.mxu0 0.0
    %725 = vmatprep.subr.mxu0 0.0
    %726 = vmatpush1.msra.mxu0 0.0
    %727 = vmatprep.subr.mxu0 0.0
    %728 = vmatpush1.msra.mxu0 0.0
    %729 = vmatprep.subr.mxu0 0.0
    %730 = vmatpush1.msra.mxu0 0.0
    %731 = vmatprep.mubr.f32.mxu0 0.0
    %732 = vmatmul.mubr.f32.gmra.mrb[0].mxu0 %v665
    %v733 = vpop.f32.mrb[0].mxu0
    %v734 = vadd.f32 %v373, %v733
    %v735 = vpop.f32.mrb[0].mxu0
    %736 = vdwg.mxu0
    %738 = vrot.lane.b32.xlu0 %v734, 96
    %v739 = vpop.permute.xlu0 %738
    %v741 = vadd.f32 %v220, %v739
    %v742 = vadd.f32 %v222, %v739
    %v743 = vxor.u32 %v741, 2147483648
    %v744 = vxor.u32 %v742, 2147483648
    %v745 = vmul.f32 %v743, 1.442695
    %v746 = vpow.pop %v745
    %v747 = vmul.f32 %v744, 1.442695
    %v748 = vpow.pop %v747
    %v749 = vadd.f32 %v746, 1.0
    %v750 = vadd.f32 %v748, 1.0
    %v751 = vrcp.pop %v749
    %v752 = vmul.f32 1.0, %v751
    %v753 = vrcp.pop %v750
    %v754 = vmul.f32 1.0, %v753
    %755 = vrot.lane.b32.xlu0 %v734, 32
    %v756 = vpop.permute.xlu0 %755
    %v758 = vmul.f32 %v752, %v756
    %760 = vrot.lane.b32.xlu0 %v758, 64
    %v761 = vpop.permute.xlu0 %760
    %v763 = vadd.f32 %v222, %v761
    %v764 = vtanh.pop %v763
    %v765 = vsub.f32 1.0, %v754
    %767 = vrot.lane.b32.xlu0 %v764, 96
    %v768 = vpop.permute.xlu0 %767
    %v770 = vmul.f32 %v765, %v768
    %v771 = vmul.f32 %v754, %v479
    %v772 = vadd.f32 %v770, %v771
    %v773 = vsel %vm149, %v772, %v664
    %v775 = vsel %vm492, %v773, 0
    %777 = vmatprep.subr.mxu0 0.0
    %778 = vmatpush1.msra.mxu0 %v79
    %779 = vmatprep.subr.mxu0 0.0
    %780 = vmatpush1.msra.mxu0 %v80
    %781 = vmatprep.subr.mxu0 0.0
    %782 = vmatpush1.msra.mxu0 %v81
    %783 = vmatprep.subr.mxu0 0.0
    %784 = vmatpush1.msra.mxu0 %v82
    %785 = vmatprep.subr.mxu0 0.0
    %786 = vmatpush1.msra.mxu0 %v83
    %787 = vmatprep.subr.mxu0 0.0
    %788 = vmatpush1.msra.mxu0 %v84
    %789 = vmatprep.subr.mxu0 0.0
    %790 = vmatpush1.msra.mxu0 %v85
    %791 = vmatprep.subr.mxu0 0.0
    %792 = vmatpush1.msra.mxu0 %v86
    %793 = vmatprep.subr.mxu0 0.0
    %794 = vmatpush1.msra.mxu0 0.0
    %795 = vmatprep.subr.mxu0 0.0
    %796 = vmatpush1.msra.mxu0 0.0
    %797 = vmatprep.subr.mxu0 0.0
    %798 = vmatpush1.msra.mxu0 0.0
    %799 = vmatprep.subr.mxu0 0.0
    %800 = vmatpush1.msra.mxu0 0.0
    %801 = vmatprep.subr.mxu0 0.0
    %802 = vmatpush1.msra.mxu0 0.0
    %803 = vmatprep.subr.mxu0 0.0
    %804 = vmatpush1.msra.mxu0 0.0
    %805 = vmatprep.subr.mxu0 0.0
    %806 = vmatpush1.msra.mxu0 0.0
    %807 = vmatprep.subr.mxu0 0.0
    %808 = vmatpush1.msra.mxu0 0.0
    %809 = vmatprep.subr.mxu0 0.0
    %810 = vmatpush1.msra.mxu0 0.0
    %811 = vmatprep.subr.mxu0 0.0
    %812 = vmatpush1.msra.mxu0 0.0
    %813 = vmatprep.subr.mxu0 0.0
    %814 = vmatpush1.msra.mxu0 0.0
    %815 = vmatprep.subr.mxu0 0.0
    %816 = vmatpush1.msra.mxu0 0.0
    %817 = vmatprep.subr.mxu0 0.0
    %818 = vmatpush1.msra.mxu0 0.0
    %819 = vmatprep.subr.mxu0 0.0
    %820 = vmatpush1.msra.mxu0 0.0
    %821 = vmatprep.subr.mxu0 0.0
    %822 = vmatpush1.msra.mxu0 0.0
    %823 = vmatprep.subr.mxu0 0.0
    %824 = vmatpush1.msra.mxu0 0.0
    %825 = vmatprep.subr.mxu0 0.0
    %826 = vmatpush1.msra.mxu0 0.0
    %827 = vmatprep.subr.mxu0 0.0
    %828 = vmatpush1.msra.mxu0 0.0
    %829 = vmatprep.subr.mxu0 0.0
    %830 = vmatpush1.msra.mxu0 0.0
    %831 = vmatprep.subr.mxu0 0.0
    %832 = vmatpush1.msra.mxu0 0.0
    %833 = vmatprep.subr.mxu0 0.0
    %834 = vmatpush1.msra.mxu0 0.0
    %835 = vmatprep.subr.mxu0 0.0
    %836 = vmatpush1.msra.mxu0 0.0
    %837 = vmatprep.subr.mxu0 0.0
    %838 = vmatpush1.msra.mxu0 0.0
    %839 = vmatprep.subr.mxu0 0.0
    %840 = vmatpush1.msra.mxu0 0.0
    %841 = vmatprep.mubr.f32.mxu0 0.0
    %842 = vmatmul.mubr.f32.gmra.mrb[0].mxu0 %v775
    %v843 = vpop.f32.mrb[0].mxu0
    %v844 = vadd.f32 %v490, %v843
    %v845 = vpop.f32.mrb[0].mxu0
    %846 = vdwg.mxu0
    %848 = vrot.lane.b32.xlu0 %v664, 96
    %v849 = vpop.permute.xlu0 %848
    %v850 = vsel %vm149, %v849, 0
    %852 = vmatprep.subr.mxu0 0.0
    %853 = vmatpush1.msra.mxu0 %v88
    %854 = vmatprep.subr.mxu0 0.0
    %855 = vmatpush1.msra.mxu0 %v89
    %856 = vmatprep.subr.mxu0 0.0
    %857 = vmatpush1.msra.mxu0 %v90
    %858 = vmatprep.subr.mxu0 0.0
    %859 = vmatpush1.msra.mxu0 %v91
    %860 = vmatprep.subr.mxu0 0.0
    %861 = vmatpush1.msra.mxu0 0.0
    %862 = vmatprep.subr.mxu0 0.0
    %863 = vmatpush1.msra.mxu0 0.0
    %864 = vmatprep.subr.mxu0 0.0
    %865 = vmatpush1.msra.mxu0 0.0
    %866 = vmatprep.subr.mxu0 0.0
    %867 = vmatpush1.msra.mxu0 0.0
    %868 = vmatprep.subr.mxu0 0.0
    %869 = vmatpush1.msra.mxu0 0.0
    %870 = vmatprep.subr.mxu0 0.0
    %871 = vmatpush1.msra.mxu0 0.0
    %872 = vmatprep.subr.mxu0 0.0
    %873 = vmatpush1.msra.mxu0 0.0
    %874 = vmatprep.subr.mxu0 0.0
    %875 = vmatpush1.msra.mxu0 0.0
    %876 = vmatprep.subr.mxu0 0.0
    %877 = vmatpush1.msra.mxu0 0.0
    %878 = vmatprep.subr.mxu0 0.0
    %879 = vmatpush1.msra.mxu0 0.0
    %880 = vmatprep.subr.mxu0 0.0
    %881 = vmatpush1.msra.mxu0 0.0
    %882 = vmatprep.subr.mxu0 0.0
    %883 = vmatpush1.msra.mxu0 0.0
    %884 = vmatprep.subr.mxu0 0.0
    %885 = vmatpush1.msra.mxu0 0.0
    %886 = vmatprep.subr.mxu0 0.0
    %887 = vmatpush1.msra.mxu0 0.0
    %888 = vmatprep.subr.mxu0 0.0
    %889 = vmatpush1.msra.mxu0 0.0
    %890 = vmatprep.subr.mxu0 0.0
    %891 = vmatpush1.msra.mxu0 0.0
    %892 = vmatprep.subr.mxu0 0.0
    %893 = vmatpush1.msra.mxu0 0.0
    %894 = vmatprep.subr.mxu0 0.0
    %895 = vmatpush1.msra.mxu0 0.0
    %896 = vmatprep.subr.mxu0 0.0
    %897 = vmatpush1.msra.mxu0 0.0
    %898 = vmatprep.subr.mxu0 0.0
    %899 = vmatpush1.msra.mxu0 0.0
    %900 = vmatprep.subr.mxu0 0.0
    %901 = vmatpush1.msra.mxu0 0.0
    %902 = vmatprep.subr.mxu0 0.0
    %903 = vmatpush1.msra.mxu0 0.0
    %904 = vmatprep.subr.mxu0 0.0
    %905 = vmatpush1.msra.mxu0 0.0
    %906 = vmatprep.subr.mxu0 0.0
    %907 = vmatpush1.msra.mxu0 0.0
    %908 = vmatprep.subr.mxu0 0.0
    %909 = vmatpush1.msra.mxu0 0.0
    %910 = vmatprep.subr.mxu0 0.0
    %911 = vmatpush1.msra.mxu0 0.0
    %912 = vmatprep.subr.mxu0 0.0
    %913 = vmatpush1.msra.mxu0 0.0
    %914 = vmatprep.subr.mxu0 0.0
    %915 = vmatpush1.msra.mxu0 0.0
    %916 = vmatprep.mubr.f32.mxu0 0.0
    %917 = vmatmul.mubr.f32.gmra.mrb[0].mxu0 %v850
    %v918 = vpop.f32.mrb[0].mxu0
    %v919 = vadd.f32 %v570, %v918
    %v920 = vpop.f32.mrb[0].mxu0
    %921 = vdwg.mxu0
    %v922 = vxor.u32 %v844, 2147483648
    %v923 = vmul.f32 %v922, 1.442695
    %v924 = vpow.pop %v923
    %v925 = vadd.f32 %v924, 1.0
    %v926 = vrcp.pop %v925
    %v927 = vmul.f32 1.0, %v926
    %v928 = vmul.f32 %v927, %v919
    %930 = vrot.lane.b32.xlu0 %v928, 64
    %v931 = vpop.permute.xlu0 %930
    %v933 = vadd.f32 %v844, %v931
    %v934 = vtanh.pop %v933
    %v935 = vsub.f32 1.0, %v927
    %937 = vrot.lane.b32.xlu0 %v934, 96
    %v938 = vpop.permute.xlu0 %937
    %v940 = vmul.f32 %v935, %v938
    %v941 = vmul.f32 %v927, %v664
    %v942 = vadd.f32 %v940, %v941
    %v944 = vsel %vm149, %v772, 0
    %946 = vmatprep.subr.mxu0 0.0
    %947 = vmatpush1.msra.mxu0 %v74
    %948 = vmatprep.subr.mxu0 0.0
    %949 = vmatpush1.msra.mxu0 %v75
    %950 = vmatprep.subr.mxu0 0.0
    %951 = vmatpush1.msra.mxu0 %v76
    %952 = vmatprep.subr.mxu0 0.0
    %953 = vmatpush1.msra.mxu0 %v77
    %954 = vmatprep.subr.mxu0 0.0
    %955 = vmatpush1.msra.mxu0 0.0
    %956 = vmatprep.subr.mxu0 0.0
    %957 = vmatpush1.msra.mxu0 0.0
    %958 = vmatprep.subr.mxu0 0.0
    %959 = vmatpush1.msra.mxu0 0.0
    %960 = vmatprep.subr.mxu0 0.0
    %961 = vmatpush1.msra.mxu0 0.0
    %962 = vmatprep.subr.mxu0 0.0
    %963 = vmatpush1.msra.mxu0 0.0
    %964 = vmatprep.subr.mxu0 0.0
    %965 = vmatpush1.msra.mxu0 0.0
    %966 = vmatprep.subr.mxu0 0.0
    %967 = vmatpush1.msra.mxu0 0.0
    %968 = vmatprep.subr.mxu0 0.0
    %969 = vmatpush1.msra.mxu0 0.0
    %970 = vmatprep.subr.mxu0 0.0
    %971 = vmatpush1.msra.mxu0 0.0
    %972 = vmatprep.subr.mxu0 0.0
    %973 = vmatpush1.msra.mxu0 0.0
    %974 = vmatprep.subr.mxu0 0.0
    %975 = vmatpush1.msra.mxu0 0.0
    %976 = vmatprep.subr.mxu0 0.0
    %977 = vmatpush1.msra.mxu0 0.0
    %978 = vmatprep.subr.mxu0 0.0
    %979 = vmatpush1.msra.mxu0 0.0
    %980 = vmatprep.subr.mxu0 0.0
    %981 = vmatpush1.msra.mxu0 0.0
    %982 = vmatprep.subr.mxu0 0.0
    %983 = vmatpush1.msra.mxu0 0.0
    %984 = vmatprep.subr.mxu0 0.0
    %985 = vmatpush1.msra.mxu0 0.0
    %986 = vmatprep.subr.mxu0 0.0
    %987 = vmatpush1.msra.mxu0 0.0
    %988 = vmatprep.subr.mxu0 0.0
    %989 = vmatpush1.msra.mxu0 0.0
    %990 = vmatprep.subr.mxu0 0.0
    %991 = vmatpush1.msra.mxu0 0.0
    %992 = vmatprep.subr.mxu0 0.0
    %993 = vmatpush1.msra.mxu0 0.0
    %994 = vmatprep.subr.mxu0 0.0
    %995 = vmatpush1.msra.mxu0 0.0
    %996 = vmatprep.subr.mxu0 0.0
    %997 = vmatpush1.msra.mxu0 0.0
    %998 = vmatprep.subr.mxu0 0.0
    %999 = vmatpush1.msra.mxu0 0.0
    %1000 = vmatprep.subr.mxu0 0.0
    %1001 = vmatpush1.msra.mxu0 0.0
    %1002 = vmatprep.subr.mxu0 0.0
    %1003 = vmatpush1.msra.mxu0 0.0
    %1004 = vmatprep.subr.mxu0 0.0
    %1005 = vmatpush1.msra.mxu0 0.0
    %1006 = vmatprep.subr.mxu0 0.0
    %1007 = vmatpush1.msra.mxu0 0.0
    %1008 = vmatprep.subr.mxu0 0.0
    %1009 = vmatpush1.msra.mxu0 0.0
    %1010 = vmatprep.mubr.f32.mxu0 0.0
    %1011 = vmatmul.mubr.f32.gmra.mrb[0].mxu0 %v944
    %v1012 = vpop.f32.mrb[0].mxu0
    %v1013 = vadd.f32 %v373, %v1012
    %v1014 = vpop.f32.mrb[0].mxu0
    %1015 = vdwg.mxu0
    %1017 = vrot.lane.b32.xlu0 %v1013, 64
    %v1018 = vpop.permute.xlu0 %1017
    %v1020 = vadd.f32 %v222, %v1018
    %v1021 = vxor.u32 %v1020, 2147483648
    %v1022 = vmul.f32 %v1021, 1.442695
    %v1023 = vpow.pop %v1022
    %v1024 = vadd.f32 %v1023, 1.0
    %v1025 = vrcp.pop %v1024
    %v1026 = vmul.f32 1.0, %v1025
    %v1027 = vmul.f32 %v1026, %v1013
    %1029 = vrot.lane.b32.xlu0 %v1027, 64
    %v1030 = vpop.permute.xlu0 %1029
    %v1032 = vadd.f32 %v291, %v1030
    %v1033 = vtanh.pop %v1032
    %v1034 = vsub.f32 1.0, %v1026
    %1036 = vrot.lane.b32.xlu0 %v1033, 96
    %v1037 = vpop.permute.xlu0 %1036
    %v1039 = vmul.f32 %v1034, %v1037
    %1040 = vrot.lane.b32.xlu0 %v772, 96
    %v1041 = vpop.permute.xlu0 %1040
    %v1043 = vmul.f32 %v1026, %v1041
    %v1044 = vadd.f32 %v1039, %v1043
    %1046 = vrot.lane.b32.xlu0 %v1044, 32
    %v1047 = vpop.permute.xlu0 %1046
    %v1049 = vsel %vm149, %v1047, %v942
    %v1051 = vsel %vm492, %v1049, 0
    %1053 = vmatprep.subr.mxu0 0.0
    %1054 = vmatpush1.msra.mxu0 %v79
    %1055 = vmatprep.subr.mxu0 0.0
    %1056 = vmatpush1.msra.mxu0 %v80
    %1057 = vmatprep.subr.mxu0 0.0
    %1058 = vmatpush1.msra.mxu0 %v81
    %1059 = vmatprep.subr.mxu0 0.0
    %1060 = vmatpush1.msra.mxu0 %v82
    %1061 = vmatprep.subr.mxu0 0.0
    %1062 = vmatpush1.msra.mxu0 %v83
    %1063 = vmatprep.subr.mxu0 0.0
    %1064 = vmatpush1.msra.mxu0 %v84
    %1065 = vmatprep.subr.mxu0 0.0
    %1066 = vmatpush1.msra.mxu0 %v85
    %1067 = vmatprep.subr.mxu0 0.0
    %1068 = vmatpush1.msra.mxu0 %v86
    %1069 = vmatprep.subr.mxu0 0.0
    %1070 = vmatpush1.msra.mxu0 0.0
    %1071 = vmatprep.subr.mxu0 0.0
    %1072 = vmatpush1.msra.mxu0 0.0
    %1073 = vmatprep.subr.mxu0 0.0
    %1074 = vmatpush1.msra.mxu0 0.0
    %1075 = vmatprep.subr.mxu0 0.0
    %1076 = vmatpush1.msra.mxu0 0.0
    %1077 = vmatprep.subr.mxu0 0.0
    %1078 = vmatpush1.msra.mxu0 0.0
    %1079 = vmatprep.subr.mxu0 0.0
    %1080 = vmatpush1.msra.mxu0 0.0
    %1081 = vmatprep.subr.mxu0 0.0
    %1082 = vmatpush1.msra.mxu0 0.0
    %1083 = vmatprep.subr.mxu0 0.0
    %1084 = vmatpush1.msra.mxu0 0.0
    %1085 = vmatprep.subr.mxu0 0.0
    %1086 = vmatpush1.msra.mxu0 0.0
    %1087 = vmatprep.subr.mxu0 0.0
    %1088 = vmatpush1.msra.mxu0 0.0
    %1089 = vmatprep.subr.mxu0 0.0
    %1090 = vmatpush1.msra.mxu0 0.0
    %1091 = vmatprep.subr.mxu0 0.0
    %1092 = vmatpush1.msra.mxu0 0.0
    %1093 = vmatprep.subr.mxu0 0.0
    %1094 = vmatpush1.msra.mxu0 0.0
    %1095 = vmatprep.subr.mxu0 0.0
    %1096 = vmatpush1.msra.mxu0 0.0
    %1097 = vmatprep.subr.mxu0 0.0
    %1098 = vmatpush1.msra.mxu0 0.0
    %1099 = vmatprep.subr.mxu0 0.0
    %1100 = vmatpush1.msra.mxu0 0.0
    %1101 = vmatprep.subr.mxu0 0.0
    %1102 = vmatpush1.msra.mxu0 0.0
    %1103 = vmatprep.subr.mxu0 0.0
    %1104 = vmatpush1.msra.mxu0 0.0
    %1105 = vmatprep.subr.mxu0 0.0
    %1106 = vmatpush1.msra.mxu0 0.0
    %1107 = vmatprep.subr.mxu0 0.0
    %1108 = vmatpush1.msra.mxu0 0.0
    %1109 = vmatprep.subr.mxu0 0.0
    %1110 = vmatpush1.msra.mxu0 0.0
    %1111 = vmatprep.subr.mxu0 0.0
    %1112 = vmatpush1.msra.mxu0 0.0
    %1113 = vmatprep.subr.mxu0 0.0
    %1114 = vmatpush1.msra.mxu0 0.0
    %1115 = vmatprep.subr.mxu0 0.0
    %1116 = vmatpush1.msra.mxu0 0.0
    %1117 = vmatprep.mubr.f32.mxu0 0.0
    %1118 = vmatmul.mubr.f32.gmra.mrb[0].mxu0 %v1051
    %v1119 = vpop.f32.mrb[0].mxu0
    %v1120 = vadd.f32 %v490, %v1119
    %v1121 = vpop.f32.mrb[0].mxu0
    %1122 = vdwg.mxu0
    %1124 = vrot.lane.b32.xlu0 %v942, 96
    %v1125 = vpop.permute.xlu0 %1124
    %v1126 = vsel %vm149, %v1125, 0
    %1128 = vmatprep.subr.mxu0 0.0
    %1129 = vmatpush1.msra.mxu0 %v88
    %1130 = vmatprep.subr.mxu0 0.0
    %1131 = vmatpush1.msra.mxu0 %v89
    %1132 = vmatprep.subr.mxu0 0.0
    %1133 = vmatpush1.msra.mxu0 %v90
    %1134 = vmatprep.subr.mxu0 0.0
    %1135 = vmatpush1.msra.mxu0 %v91
    %1136 = vmatprep.subr.mxu0 0.0
    %1137 = vmatpush1.msra.mxu0 0.0
    %1138 = vmatprep.subr.mxu0 0.0
    %1139 = vmatpush1.msra.mxu0 0.0
    %1140 = vmatprep.subr.mxu0 0.0
    %1141 = vmatpush1.msra.mxu0 0.0
    %1142 = vmatprep.subr.mxu0 0.0
    %1143 = vmatpush1.msra.mxu0 0.0
    %1144 = vmatprep.subr.mxu0 0.0
    %1145 = vmatpush1.msra.mxu0 0.0
    %1146 = vmatprep.subr.mxu0 0.0
    %1147 = vmatpush1.msra.mxu0 0.0
    %1148 = vmatprep.subr.mxu0 0.0
    %1149 = vmatpush1.msra.mxu0 0.0
    %1150 = vmatprep.subr.mxu0 0.0
    %1151 = vmatpush1.msra.mxu0 0.0
    %1152 = vmatprep.subr.mxu0 0.0
    %1153 = vmatpush1.msra.mxu0 0.0
    %1154 = vmatprep.subr.mxu0 0.0
    %1155 = vmatpush1.msra.mxu0 0.0
    %1156 = vmatprep.subr.mxu0 0.0
    %1157 = vmatpush1.msra.mxu0 0.0
    %1158 = vmatprep.subr.mxu0 0.0
    %1159 = vmatpush1.msra.mxu0 0.0
    %1160 = vmatprep.subr.mxu0 0.0
    %1161 = vmatpush1.msra.mxu0 0.0
    %1162 = vmatprep.subr.mxu0 0.0
    %1163 = vmatpush1.msra.mxu0 0.0
    %1164 = vmatprep.subr.mxu0 0.0
    %1165 = vmatpush1.msra.mxu0 0.0
    %1166 = vmatprep.subr.mxu0 0.0
    %1167 = vmatpush1.msra.mxu0 0.0
    %1168 = vmatprep.subr.mxu0 0.0
    %1169 = vmatpush1.msra.mxu0 0.0
    %1170 = vmatprep.subr.mxu0 0.0
    %1171 = vmatpush1.msra.mxu0 0.0
    %1172 = vmatprep.subr.mxu0 0.0
    %1173 = vmatpush1.msra.mxu0 0.0
    %1174 = vmatprep.subr.mxu0 0.0
    %1175 = vmatpush1.msra.mxu0 0.0
    %1176 = vmatprep.subr.mxu0 0.0
    %1177 = vmatpush1.msra.mxu0 0.0
    %1178 = vmatprep.subr.mxu0 0.0
    %1179 = vmatpush1.msra.mxu0 0.0
    %1180 = vmatprep.subr.mxu0 0.0
    %1181 = vmatpush1.msra.mxu0 0.0
    %1182 = vmatprep.subr.mxu0 0.0
    %1183 = vmatpush1.msra.mxu0 0.0
    %1184 = vmatprep.subr.mxu0 0.0
    %1185 = vmatpush1.msra.mxu0 0.0
    %1186 = vmatprep.subr.mxu0 0.0
    %1187 = vmatpush1.msra.mxu0 0.0
    %1188 = vmatprep.subr.mxu0 0.0
    %1189 = vmatpush1.msra.mxu0 0.0
    %1190 = vmatprep.subr.mxu0 0.0
    %1191 = vmatpush1.msra.mxu0 0.0
    %1192 = vmatprep.mubr.f32.mxu0 0.0
    %1193 = vmatmul.mubr.f32.gmra.mrb[0].mxu0 %v1126
    %v1194 = vpop.f32.mrb[0].mxu0
    %v1195 = vadd.f32 %v570, %v1194
    %v1196 = vpop.f32.mrb[0].mxu0
    %1197 = vdwg.mxu0
    %v1198 = vxor.u32 %v1120, 2147483648
    %v1199 = vmul.f32 %v1198, 1.442695
    %v1200 = vpow.pop %v1199
    %v1201 = vadd.f32 %v1200, 1.0
    %v1202 = vrcp.pop %v1201
    %v1203 = vmul.f32 1.0, %v1202
    %v1204 = vmul.f32 %v1203, %v1195
    %1206 = vrot.lane.b32.xlu0 %v1204, 64
    %v1207 = vpop.permute.xlu0 %1206
    %v1209 = vadd.f32 %v1120, %v1207
    %v1210 = vtanh.pop %v1209
    %v1211 = vsub.f32 1.0, %v1203
    %1213 = vrot.lane.b32.xlu0 %v1210, 96
    %v1214 = vpop.permute.xlu0 %1213
    %v1216 = vmul.f32 %v1211, %v1214
    %v1217 = vmul.f32 %v1203, %v942
    %v1218 = vadd.f32 %v1216, %v1217
    %v1219 = vsel %vm149, %v1047, 0
    %1221 = vmatprep.subr.mxu0 0.0
    %1222 = vmatpush1.msra.mxu0 %v74
    %1223 = vmatprep.subr.mxu0 0.0
    %1224 = vmatpush1.msra.mxu0 %v75
    %1225 = vmatprep.subr.mxu0 0.0
    %1226 = vmatpush1.msra.mxu0 %v76
    %1227 = vmatprep.subr.mxu0 0.0
    %1228 = vmatpush1.msra.mxu0 %v77
    %1229 = vmatprep.subr.mxu0 0.0
    %1230 = vmatpush1.msra.mxu0 0.0
    %1231 = vmatprep.subr.mxu0 0.0
    %1232 = vmatpush1.msra.mxu0 0.0
    %1233 = vmatprep.subr.mxu0 0.0
    %1234 = vmatpush1.msra.mxu0 0.0
    %1235 = vmatprep.subr.mxu0 0.0
    %1236 = vmatpush1.msra.mxu0 0.0
    %1237 = vmatprep.subr.mxu0 0.0
    %1238 = vmatpush1.msra.mxu0 0.0
    %1239 = vmatprep.subr.mxu0 0.0
    %1240 = vmatpush1.msra.mxu0 0.0
    %1241 = vmatprep.subr.mxu0 0.0
    %1242 = vmatpush1.msra.mxu0 0.0
    %1243 = vmatprep.subr.mxu0 0.0
    %1244 = vmatpush1.msra.mxu0 0.0
    %1245 = vmatprep.subr.mxu0 0.0
    %1246 = vmatpush1.msra.mxu0 0.0
    %1247 = vmatprep.subr.mxu0 0.0
    %1248 = vmatpush1.msra.mxu0 0.0
    %1249 = vmatprep.subr.mxu0 0.0
    %1250 = vmatpush1.msra.mxu0 0.0
    %1251 = vmatprep.subr.mxu0 0.0
    %1252 = vmatpush1.msra.mxu0 0.0
    %1253 = vmatprep.subr.mxu0 0.0
    %1254 = vmatpush1.msra.mxu0 0.0
    %1255 = vmatprep.subr.mxu0 0.0
    %1256 = vmatpush1.msra.mxu0 0.0
    %1257 = vmatprep.subr.mxu0 0.0
    %1258 = vmatpush1.msra.mxu0 0.0
    %1259 = vmatprep.subr.mxu0 0.0
    %1260 = vmatpush1.msra.mxu0 0.0
    %1261 = vmatprep.subr.mxu0 0.0
    %1262 = vmatpush1.msra.mxu0 0.0
    %1263 = vmatprep.subr.mxu0 0.0
    %1264 = vmatpush1.msra.mxu0 0.0
    %1265 = vmatprep.subr.mxu0 0.0
    %1266 = vmatpush1.msra.mxu0 0.0
    %1267 = vmatprep.subr.mxu0 0.0
    %1268 = vmatpush1.msra.mxu0 0.0
    %1269 = vmatprep.subr.mxu0 0.0
    %1270 = vmatpush1.msra.mxu0 0.0
    %1271 = vmatprep.subr.mxu0 0.0
    %1272 = vmatpush1.msra.mxu0 0.0
    %1273 = vmatprep.subr.mxu0 0.0
    %1274 = vmatpush1.msra.mxu0 0.0
    %1275 = vmatprep.subr.mxu0 0.0
    %1276 = vmatpush1.msra.mxu0 0.0
    %1277 = vmatprep.subr.mxu0 0.0
    %1278 = vmatpush1.msra.mxu0 0.0
    %1279 = vmatprep.subr.mxu0 0.0
    %1280 = vmatpush1.msra.mxu0 0.0
    %1281 = vmatprep.subr.mxu0 0.0
    %1282 = vmatpush1.msra.mxu0 0.0
    %1283 = vmatprep.subr.mxu0 0.0
    %1284 = vmatpush1.msra.mxu0 0.0
    %1285 = vmatprep.mubr.f32.mxu0 0.0
    %1286 = vmatmul.mubr.f32.gmra.mrb[0].mxu0 %v1219
    %v1287 = vpop.f32.mrb[0].mxu0
    %v1288 = vadd.f32 %v373, %v1287
    %v1289 = vpop.f32.mrb[0].mxu0
    %1290 = vdwg.mxu0
    %1292 = vrot.lane.b32.xlu0 %v1288, 32
    %v1293 = vpop.permute.xlu0 %1292
    %v1295 = vadd.f32 %v291, %v1293
    %v1296 = vxor.u32 %v1295, 2147483648
    %v1297 = vmul.f32 %v1296, 1.442695
    %v1298 = vpow.pop %v1297
    %v1299 = vadd.f32 %v1298, 1.0
    %v1300 = vrcp.pop %v1299
    %v1301 = vmul.f32 1.0, %v1300
    %1302 = vrot.lane.b32.xlu0 %v1288, 96
    %v1303 = vpop.permute.xlu0 %1302
    %v1305 = vmul.f32 %v1301, %v1303
    %1307 = vrot.lane.b32.xlu0 %v1305, 64
    %v1308 = vpop.permute.xlu0 %1307
    %v1310 = vadd.f32 %v291, %v1308
    %v1311 = vtanh.pop %v1310
    %v1312 = vsub.f32 1.0, %v1301
    %1314 = vrot.lane.b32.xlu0 %v1311, 96
    %v1315 = vpop.permute.xlu0 %1314
    %v1317 = vmul.f32 %v1312, %v1315
    %1318 = vrot.lane.b32.xlu0 %v1044, 96
    %v1319 = vpop.permute.xlu0 %1318
    %v1321 = vmul.f32 %v1301, %v1319
    %v1322 = vadd.f32 %v1317, %v1321
    %1324 = vrot.lane.b32.xlu0 %v1322, 64
    %v1325 = vpop.permute.xlu0 %1324
    %v1327 = vsel %vm149, %v1325, %v1218
    %v1329 = vsel %vm492, %v1327, 0
    %1331 = vmatprep.subr.mxu0 0.0
    %1332 = vmatpush1.msra.mxu0 %v79
    %1333 = vmatprep.subr.mxu0 0.0
    %1334 = vmatpush1.msra.mxu0 %v80
    %1335 = vmatprep.subr.mxu0 0.0
    %1336 = vmatpush1.msra.mxu0 %v81
    %1337 = vmatprep.subr.mxu0 0.0
    %1338 = vmatpush1.msra.mxu0 %v82
    %1339 = vmatprep.subr.mxu0 0.0
    %1340 = vmatpush1.msra.mxu0 %v83
    %1341 = vmatprep.subr.mxu0 0.0
    %1342 = vmatpush1.msra.mxu0 %v84
    %1343 = vmatprep.subr.mxu0 0.0
    %1344 = vmatpush1.msra.mxu0 %v85
    %1345 = vmatprep.subr.mxu0 0.0
    %1346 = vmatpush1.msra.mxu0 %v86
    %1347 = vmatprep.subr.mxu0 0.0
    %1348 = vmatpush1.msra.mxu0 0.0
    %1349 = vmatprep.subr.mxu0 0.0
    %1350 = vmatpush1.msra.mxu0 0.0
    %1351 = vmatprep.subr.mxu0 0.0
    %1352 = vmatpush1.msra.mxu0 0.0
    %1353 = vmatprep.subr.mxu0 0.0
    %1354 = vmatpush1.msra.mxu0 0.0
    %1355 = vmatprep.subr.mxu0 0.0
    %1356 = vmatpush1.msra.mxu0 0.0
    %1357 = vmatprep.subr.mxu0 0.0
    %1358 = vmatpush1.msra.mxu0 0.0
    %1359 = vmatprep.subr.mxu0 0.0
    %1360 = vmatpush1.msra.mxu0 0.0
    %1361 = vmatprep.subr.mxu0 0.0
    %1362 = vmatpush1.msra.mxu0 0.0
    %1363 = vmatprep.subr.mxu0 0.0
    %1364 = vmatpush1.msra.mxu0 0.0
    %1365 = vmatprep.subr.mxu0 0.0
    %1366 = vmatpush1.msra.mxu0 0.0
    %1367 = vmatprep.subr.mxu0 0.0
    %1368 = vmatpush1.msra.mxu0 0.0
    %1369 = vmatprep.subr.mxu0 0.0
    %1370 = vmatpush1.msra.mxu0 0.0
    %1371 = vmatprep.subr.mxu0 0.0
    %1372 = vmatpush1.msra.mxu0 0.0
    %1373 = vmatprep.subr.mxu0 0.0
    %1374 = vmatpush1.msra.mxu0 0.0
    %1375 = vmatprep.subr.mxu0 0.0
    %1376 = vmatpush1.msra.mxu0 0.0
    %1377 = vmatprep.subr.mxu0 0.0
    %1378 = vmatpush1.msra.mxu0 0.0
    %1379 = vmatprep.subr.mxu0 0.0
    %1380 = vmatpush1.msra.mxu0 0.0
    %1381 = vmatprep.subr.mxu0 0.0
    %1382 = vmatpush1.msra.mxu0 0.0
    %1383 = vmatprep.subr.mxu0 0.0
    %1384 = vmatpush1.msra.mxu0 0.0
    %1385 = vmatprep.subr.mxu0 0.0
    %1386 = vmatpush1.msra.mxu0 0.0
    %1387 = vmatprep.subr.mxu0 0.0
    %1388 = vmatpush1.msra.mxu0 0.0
    %1389 = vmatprep.subr.mxu0 0.0
    %1390 = vmatpush1.msra.mxu0 0.0
    %1391 = vmatprep.subr.mxu0 0.0
    %1392 = vmatpush1.msra.mxu0 0.0
    %1393 = vmatprep.subr.mxu0 0.0
    %1394 = vmatpush1.msra.mxu0 0.0
    %1395 = vmatprep.mubr.f32.mxu0 0.0
    %1396 = vmatmul.mubr.f32.gmra.mrb[0].mxu0 %v1329
    %v1397 = vpop.f32.mrb[0].mxu0
    %v1398 = vadd.f32 %v490, %v1397
    %v1399 = vpop.f32.mrb[0].mxu0
    %1400 = vdwg.mxu0
    %1402 = vrot.lane.b32.xlu0 %v1218, 96
    %v1403 = vpop.permute.xlu0 %1402
    %v1404 = vsel %vm149, %v1403, 0
    %1406 = vmatprep.subr.mxu0 0.0
    %1407 = vmatpush1.msra.mxu0 %v88
    %1408 = vmatprep.subr.mxu0 0.0
    %1409 = vmatpush1.msra.mxu0 %v89
    %1410 = vmatprep.subr.mxu0 0.0
    %1411 = vmatpush1.msra.mxu0 %v90
    %1412 = vmatprep.subr.mxu0 0.0
    %1413 = vmatpush1.msra.mxu0 %v91
    %1414 = vmatprep.subr.mxu0 0.0
    %1415 = vmatpush1.msra.mxu0 0.0
    %1416 = vmatprep.subr.mxu0 0.0
    %1417 = vmatpush1.msra.mxu0 0.0
    %1418 = vmatprep.subr.mxu0 0.0
    %1419 = vmatpush1.msra.mxu0 0.0
    %1420 = vmatprep.subr.mxu0 0.0
    %1421 = vmatpush1.msra.mxu0 0.0
    %1422 = vmatprep.subr.mxu0 0.0
    %1423 = vmatpush1.msra.mxu0 0.0
    %1424 = vmatprep.subr.mxu0 0.0
    %1425 = vmatpush1.msra.mxu0 0.0
    %1426 = vmatprep.subr.mxu0 0.0
    %1427 = vmatpush1.msra.mxu0 0.0
    %1428 = vmatprep.subr.mxu0 0.0
    %1429 = vmatpush1.msra.mxu0 0.0
    %1430 = vmatprep.subr.mxu0 0.0
    %1431 = vmatpush1.msra.mxu0 0.0
    %1432 = vmatprep.subr.mxu0 0.0
    %1433 = vmatpush1.msra.mxu0 0.0
    %1434 = vmatprep.subr.mxu0 0.0
    %1435 = vmatpush1.msra.mxu0 0.0
    %1436 = vmatprep.subr.mxu0 0.0
    %1437 = vmatpush1.msra.mxu0 0.0
    %1438 = vmatprep.subr.mxu0 0.0
    %1439 = vmatpush1.msra.mxu0 0.0
    %1440 = vmatprep.subr.mxu0 0.0
    %1441 = vmatpush1.msra.mxu0 0.0
    %1442 = vmatprep.subr.mxu0 0.0
    %1443 = vmatpush1.msra.mxu0 0.0
    %1444 = vmatprep.subr.mxu0 0.0
    %1445 = vmatpush1.msra.mxu0 0.0
    %1446 = vmatprep.subr.mxu0 0.0
    %1447 = vmatpush1.msra.mxu0 0.0
    %1448 = vmatprep.subr.mxu0 0.0
    %1449 = vmatpush1.msra.mxu0 0.0
    %1450 = vmatprep.subr.mxu0 0.0
    %1451 = vmatpush1.msra.mxu0 0.0
    %1452 = vmatprep.subr.mxu0 0.0
    %1453 = vmatpush1.msra.mxu0 0.0
    %1454 = vmatprep.subr.mxu0 0.0
    %1455 = vmatpush1.msra.mxu0 0.0
    %1456 = vmatprep.subr.mxu0 0.0
    %1457 = vmatpush1.msra.mxu0 0.0
    %1458 = vmatprep.subr.mxu0 0.0
    %1459 = vmatpush1.msra.mxu0 0.0
    %1460 = vmatprep.subr.mxu0 0.0
    %1461 = vmatpush1.msra.mxu0 0.0
    %1462 = vmatprep.subr.mxu0 0.0
    %1463 = vmatpush1.msra.mxu0 0.0
    %1464 = vmatprep.subr.mxu0 0.0
    %1465 = vmatpush1.msra.mxu0 0.0
    %1466 = vmatprep.subr.mxu0 0.0
    %1467 = vmatpush1.msra.mxu0 0.0
    %1468 = vmatprep.subr.mxu0 0.0
    %1469 = vmatpush1.msra.mxu0 0.0
    %1470 = vmatprep.mubr.f32.mxu0 0.0
    %1471 = vmatmul.mubr.f32.gmra.mrb[0].mxu0 %v1404
    %v1472 = vpop.f32.mrb[0].mxu0
    %v1473 = vadd.f32 %v570, %v1472
    %v1474 = vpop.f32.mrb[0].mxu0
    %1475 = vdwg.mxu0
    %v1476 = vxor.u32 %v1398, 2147483648
    %v1477 = vmul.f32 %v1476, 1.442695
    %v1478 = vpow.pop %v1477
    %v1479 = vadd.f32 %v1478, 1.0
    %v1480 = vrcp.pop %v1479
    %v1481 = vmul.f32 1.0, %v1480
    %v1482 = vmul.f32 %v1481, %v1473
    %1484 = vrot.lane.b32.xlu0 %v1482, 64
    %v1485 = vpop.permute.xlu0 %1484
    %v1487 = vadd.f32 %v1398, %v1485
    %v1488 = vtanh.pop %v1487
    %v1489 = vsub.f32 1.0, %v1481
    %1491 = vrot.lane.b32.xlu0 %v1488, 96
    %v1492 = vpop.permute.xlu0 %1491
    %v1494 = vmul.f32 %v1489, %v1492
    %v1495 = vmul.f32 %v1481, %v1218
    %v1496 = vadd.f32 %v1494, %v1495
    %v1497 = vsel %vm149, %v1325, 0
    %1499 = vmatprep.subr.mxu0 0.0
    %1500 = vmatpush1.msra.mxu0 %v74
    %1501 = vmatprep.subr.mxu0 0.0
    %1502 = vmatpush1.msra.mxu0 %v75
    %1503 = vmatprep.subr.mxu0 0.0
    %1504 = vmatpush1.msra.mxu0 %v76
    %1505 = vmatprep.subr.mxu0 0.0
    %1506 = vmatpush1.msra.mxu0 %v77
    %1507 = vmatprep.subr.mxu0 0.0
    %1508 = vmatpush1.msra.mxu0 0.0
    %1509 = vmatprep.subr.mxu0 0.0
    %1510 = vmatpush1.msra.mxu0 0.0
    %1511 = vmatprep.subr.mxu0 0.0
    %1512 = vmatpush1.msra.mxu0 0.0
    %1513 = vmatprep.subr.mxu0 0.0
    %1514 = vmatpush1.msra.mxu0 0.0
    %1515 = vmatprep.subr.mxu0 0.0
    %1516 = vmatpush1.msra.mxu0 0.0
    %1517 = vmatprep.subr.mxu0 0.0
    %1518 = vmatpush1.msra.mxu0 0.0
    %1519 = vmatprep.subr.mxu0 0.0
    %1520 = vmatpush1.msra.mxu0 0.0
    %1521 = vmatprep.subr.mxu0 0.0
    %1522 = vmatpush1.msra.mxu0 0.0
    %1523 = vmatprep.subr.mxu0 0.0
    %1524 = vmatpush1.msra.mxu0 0.0
    %1525 = vmatprep.subr.mxu0 0.0
    %1526 = vmatpush1.msra.mxu0 0.0
    %1527 = vmatprep.subr.mxu0 0.0
    %1528 = vmatpush1.msra.mxu0 0.0
    %1529 = vmatprep.subr.mxu0 0.0
    %1530 = vmatpush1.msra.mxu0 0.0
    %1531 = vmatprep.subr.mxu0 0.0
    %1532 = vmatpush1.msra.mxu0 0.0
    %1533 = vmatprep.subr.mxu0 0.0
    %1534 = vmatpush1.msra.mxu0 0.0
    %1535 = vmatprep.subr.mxu0 0.0
    %1536 = vmatpush1.msra.mxu0 0.0
    %1537 = vmatprep.subr.mxu0 0.0
    %1538 = vmatpush1.msra.mxu0 0.0
    %1539 = vmatprep.subr.mxu0 0.0
    %1540 = vmatpush1.msra.mxu0 0.0
    %1541 = vmatprep.subr.mxu0 0.0
    %1542 = vmatpush1.msra.mxu0 0.0
    %1543 = vmatprep.subr.mxu0 0.0
    %1544 = vmatpush1.msra.mxu0 0.0
    %1545 = vmatprep.subr.mxu0 0.0
    %1546 = vmatpush1.msra.mxu0 0.0
    %1547 = vmatprep.subr.mxu0 0.0
    %1548 = vmatpush1.msra.mxu0 0.0
    %1549 = vmatprep.subr.mxu0 0.0
    %1550 = vmatpush1.msra.mxu0 0.0
    %1551 = vmatprep.subr.mxu0 0.0
    %1552 = vmatpush1.msra.mxu0 0.0
    %1553 = vmatprep.subr.mxu0 0.0
    %1554 = vmatpush1.msra.mxu0 0.0
    %1555 = vmatprep.subr.mxu0 0.0
    %1556 = vmatpush1.msra.mxu0 0.0
    %1557 = vmatprep.subr.mxu0 0.0
    %1558 = vmatpush1.msra.mxu0 0.0
    %1559 = vmatprep.subr.mxu0 0.0
    %1560 = vmatpush1.msra.mxu0 0.0
    %1561 = vmatprep.subr.mxu0 0.0
    %1562 = vmatpush1.msra.mxu0 0.0
    %1563 = vmatprep.mubr.f32.mxu0 0.0
    %1564 = vmatmul.mubr.f32.gmra.mrb[0].mxu0 %v1497
    %v1565 = vpop.f32.mrb[0].mxu0
    %v1566 = vadd.f32 %v373, %v1565
    %v1567 = vpop.f32.mrb[0].mxu0
    %1568 = vdwg.mxu0
    %v1569 = vadd.f32 %v293, %v1566
    %v1570 = vxor.u32 %v1569, 2147483648
    %v1571 = vmul.f32 %v1570, 1.442695
    %v1572 = vpow.pop %v1571
    %v1573 = vadd.f32 %v1572, 1.0
    %v1574 = vrcp.pop %v1573
    %v1575 = vmul.f32 1.0, %v1574
    %1577 = vrot.lane.b32.xlu0 %v1566, 64
    %v1578 = vpop.permute.xlu0 %1577
    %v1580 = vmul.f32 %v1575, %v1578
    %1582 = vrot.lane.b32.xlu0 %v1580, 64
    %v1583 = vpop.permute.xlu0 %1582
    %v1585 = vadd.f32 %v293, %v1583
    %v1586 = vtanh.pop %v1585
    %v1587 = vsub.f32 1.0, %v1575
    %1589 = vrot.lane.b32.xlu0 %v1586, 96
    %v1590 = vpop.permute.xlu0 %1589
    %v1592 = vmul.f32 %v1587, %v1590
    %1593 = vrot.lane.b32.xlu0 %v1322, 96
    %v1594 = vpop.permute.xlu0 %1593
    %v1596 = vmul.f32 %v1575, %v1594
    %v1597 = vadd.f32 %v1592, %v1596
    %1599 = vrot.lane.b32.xlu0 %v1597, 96
    %v1600 = vpop.permute.xlu0 %1599
    %v1602 = vsel %vm149, %v1600, %v1496
    %v1604 = vsel %vm492, %v1602, 0
    %1606 = vmatprep.subr.mxu0 0.0
    %1607 = vmatpush1.msra.mxu0 %v79
    %1608 = vmatprep.subr.mxu0 0.0
    %1609 = vmatpush1.msra.mxu0 %v80
    %1610 = vmatprep.subr.mxu0 0.0
    %1611 = vmatpush1.msra.mxu0 %v81
    %1612 = vmatprep.subr.mxu0 0.0
    %1613 = vmatpush1.msra.mxu0 %v82
    %1614 = vmatprep.subr.mxu0 0.0
    %1615 = vmatpush1.msra.mxu0 %v83
    %1616 = vmatprep.subr.mxu0 0.0
    %1617 = vmatpush1.msra.mxu0 %v84
    %1618 = vmatprep.subr.mxu0 0.0
    %1619 = vmatpush1.msra.mxu0 %v85
    %1620 = vmatprep.subr.mxu0 0.0
    %1621 = vmatpush1.msra.mxu0 %v86
    %1622 = vmatprep.subr.mxu0 0.0
    %1623 = vmatpush1.msra.mxu0 0.0
    %1624 = vmatprep.subr.mxu0 0.0
    %1625 = vmatpush1.msra.mxu0 0.0
    %1626 = vmatprep.subr.mxu0 0.0
    %1627 = vmatpush1.msra.mxu0 0.0
    %1628 = vmatprep.subr.mxu0 0.0
    %1629 = vmatpush1.msra.mxu0 0.0
    %1630 = vmatprep.subr.mxu0 0.0
    %1631 = vmatpush1.msra.mxu0 0.0
    %1632 = vmatprep.subr.mxu0 0.0
    %1633 = vmatpush1.msra.mxu0 0.0
    %1634 = vmatprep.subr.mxu0 0.0
    %1635 = vmatpush1.msra.mxu0 0.0
    %1636 = vmatprep.subr.mxu0 0.0
    %1637 = vmatpush1.msra.mxu0 0.0
    %1638 = vmatprep.subr.mxu0 0.0
    %1639 = vmatpush1.msra.mxu0 0.0
    %1640 = vmatprep.subr.mxu0 0.0
    %1641 = vmatpush1.msra.mxu0 0.0
    %1642 = vmatprep.subr.mxu0 0.0
    %1643 = vmatpush1.msra.mxu0 0.0
    %1644 = vmatprep.subr.mxu0 0.0
    %1645 = vmatpush1.msra.mxu0 0.0
    %1646 = vmatprep.subr.mxu0 0.0
    %1647 = vmatpush1.msra.mxu0 0.0
    %1648 = vmatprep.subr.mxu0 0.0
    %1649 = vmatpush1.msra.mxu0 0.0
    %1650 = vmatprep.subr.mxu0 0.0
    %1651 = vmatpush1.msra.mxu0 0.0
    %1652 = vmatprep.subr.mxu0 0.0
    %1653 = vmatpush1.msra.mxu0 0.0
    %1654 = vmatprep.subr.mxu0 0.0
    %1655 = vmatpush1.msra.mxu0 0.0
    %1656 = vmatprep.subr.mxu0 0.0
    %1657 = vmatpush1.msra.mxu0 0.0
    %1658 = vmatprep.subr.mxu0 0.0
    %1659 = vmatpush1.msra.mxu0 0.0
    %1660 = vmatprep.subr.mxu0 0.0
    %1661 = vmatpush1.msra.mxu0 0.0
    %1662 = vmatprep.subr.mxu0 0.0
    %1663 = vmatpush1.msra.mxu0 0.0
    %1664 = vmatprep.subr.mxu0 0.0
    %1665 = vmatpush1.msra.mxu0 0.0
    %1666 = vmatprep.subr.mxu0 0.0
    %1667 = vmatpush1.msra.mxu0 0.0
    %1668 = vmatprep.subr.mxu0 0.0
    %1669 = vmatpush1.msra.mxu0 0.0
    %1670 = vmatprep.mubr.f32.mxu0 0.0
    %1671 = vmatmul.mubr.f32.gmra.mrb[0].mxu0 %v1604
    %v1672 = vpop.f32.mrb[0].mxu0
    %v1673 = vadd.f32 %v490, %v1672
    %v1674 = vpop.f32.mrb[0].mxu0
    %1675 = vdwg.mxu0
    %1677 = vrot.lane.b32.xlu0 %v1496, 96
    %v1678 = vpop.permute.xlu0 %1677
    %v1679 = vsel %vm149, %v1678, 0
    %1681 = vmatprep.subr.mxu0 0.0
    %1682 = vmatpush1.msra.mxu0 %v88
    %1683 = vmatprep.subr.mxu0 0.0
    %1684 = vmatpush1.msra.mxu0 %v89
    %1685 = vmatprep.subr.mxu0 0.0
    %1686 = vmatpush1.msra.mxu0 %v90
    %1687 = vmatprep.subr.mxu0 0.0
    %1688 = vmatpush1.msra.mxu0 %v91
    %1689 = vmatprep.subr.mxu0 0.0
    %1690 = vmatpush1.msra.mxu0 0.0
    %1691 = vmatprep.subr.mxu0 0.0
    %1692 = vmatpush1.msra.mxu0 0.0
    %1693 = vmatprep.subr.mxu0 0.0
    %1694 = vmatpush1.msra.mxu0 0.0
    %1695 = vmatprep.subr.mxu0 0.0
    %1696 = vmatpush1.msra.mxu0 0.0
    %1697 = vmatprep.subr.mxu0 0.0
    %1698 = vmatpush1.msra.mxu0 0.0
    %1699 = vmatprep.subr.mxu0 0.0
    %1700 = vmatpush1.msra.mxu0 0.0
    %1701 = vmatprep.subr.mxu0 0.0
    %1702 = vmatpush1.msra.mxu0 0.0
    %1703 = vmatprep.subr.mxu0 0.0
    %1704 = vmatpush1.msra.mxu0 0.0
    %1705 = vmatprep.subr.mxu0 0.0
    %1706 = vmatpush1.msra.mxu0 0.0
    %1707 = vmatprep.subr.mxu0 0.0
    %1708 = vmatpush1.msra.mxu0 0.0
    %1709 = vmatprep.subr.mxu0 0.0
    %1710 = vmatpush1.msra.mxu0 0.0
    %1711 = vmatprep.subr.mxu0 0.0
    %1712 = vmatpush1.msra.mxu0 0.0
    %1713 = vmatprep.subr.mxu0 0.0
    %1714 = vmatpush1.msra.mxu0 0.0
    %1715 = vmatprep.subr.mxu0 0.0
    %1716 = vmatpush1.msra.mxu0 0.0
    %1717 = vmatprep.subr.mxu0 0.0
    %1718 = vmatpush1.msra.mxu0 0.0
    %1719 = vmatprep.subr.mxu0 0.0
    %1720 = vmatpush1.msra.mxu0 0.0
    %1721 = vmatprep.subr.mxu0 0.0
    %1722 = vmatpush1.msra.mxu0 0.0
    %1723 = vmatprep.subr.mxu0 0.0
    %1724 = vmatpush1.msra.mxu0 0.0
    %1725 = vmatprep.subr.mxu0 0.0
    %1726 = vmatpush1.msra.mxu0 0.0
    %1727 = vmatprep.subr.mxu0 0.0
    %1728 = vmatpush1.msra.mxu0 0.0
    %1729 = vmatprep.subr.mxu0 0.0
    %1730 = vmatpush1.msra.mxu0 0.0
    %1731 = vmatprep.subr.mxu0 0.0
    %1732 = vmatpush1.msra.mxu0 0.0
    %1733 = vmatprep.subr.mxu0 0.0
    %1734 = vmatpush1.msra.mxu0 0.0
    %1735 = vmatprep.subr.mxu0 0.0
    %1736 = vmatpush1.msra.mxu0 0.0
    %1737 = vmatprep.subr.mxu0 0.0
    %1738 = vmatpush1.msra.mxu0 0.0
    %1739 = vmatprep.subr.mxu0 0.0
    %1740 = vmatpush1.msra.mxu0 0.0
    %1741 = vmatprep.subr.mxu0 0.0
    %1742 = vmatpush1.msra.mxu0 0.0
    %1743 = vmatprep.subr.mxu0 0.0
    %1744 = vmatpush1.msra.mxu0 0.0
    %1745 = vmatprep.mubr.f32.mxu0 0.0
    %1746 = vmatmul.mubr.f32.gmra.mrb[0].mxu0 %v1679
    %v1747 = vpop.f32.mrb[0].mxu0
    %v1748 = vadd.f32 %v570, %v1747
    %v1749 = vpop.f32.mrb[0].mxu0
    %1750 = vdwg.mxu0
    %v1751 = vxor.u32 %v1673, 2147483648
    %v1752 = vmul.f32 %v1751, 1.442695
    %v1753 = vpow.pop %v1752
    %v1754 = vadd.f32 %v1753, 1.0
    %v1755 = vrcp.pop %v1754
    %v1756 = vmul.f32 1.0, %v1755
    %v1757 = vmul.f32 %v1756, %v1748
    %1759 = vrot.lane.b32.xlu0 %v1757, 64
    %v1760 = vpop.permute.xlu0 %1759
    %v1762 = vadd.f32 %v1673, %v1760
    %v1763 = vtanh.pop %v1762
    %v1764 = vsub.f32 1.0, %v1756
    %1766 = vrot.lane.b32.xlu0 %v1763, 96
    %v1767 = vpop.permute.xlu0 %1766
    %v1769 = vmul.f32 %v1764, %v1767
    %v1770 = vmul.f32 %v1756, %v1496
    %v1771 = vadd.f32 %v1769, %v1770
    %v1772 = vsel %vm149, %v1600, 0
    %1774 = vmatprep.subr.mxu0 0.0
    %1775 = vmatpush1.msra.mxu0 %v74
    %1776 = vmatprep.subr.mxu0 0.0
    %1777 = vmatpush1.msra.mxu0 %v75
    %1778 = vmatprep.subr.mxu0 0.0
    %1779 = vmatpush1.msra.mxu0 %v76
    %1780 = vmatprep.subr.mxu0 0.0
    %1781 = vmatpush1.msra.mxu0 %v77
    %1782 = vmatprep.subr.mxu0 0.0
    %1783 = vmatpush1.msra.mxu0 0.0
    %1784 = vmatprep.subr.mxu0 0.0
    %1785 = vmatpush1.msra.mxu0 0.0
    %1786 = vmatprep.subr.mxu0 0.0
    %1787 = vmatpush1.msra.mxu0 0.0
    %1788 = vmatprep.subr.mxu0 0.0
    %1789 = vmatpush1.msra.mxu0 0.0
    %1790 = vmatprep.subr.mxu0 0.0
    %1791 = vmatpush1.msra.mxu0 0.0
    %1792 = vmatprep.subr.mxu0 0.0
    %1793 = vmatpush1.msra.mxu0 0.0
    %1794 = vmatprep.subr.mxu0 0.0
    %1795 = vmatpush1.msra.mxu0 0.0
    %1796 = vmatprep.subr.mxu0 0.0
    %1797 = vmatpush1.msra.mxu0 0.0
    %1798 = vmatprep.subr.mxu0 0.0
    %1799 = vmatpush1.msra.mxu0 0.0
    %1800 = vmatprep.subr.mxu0 0.0
    %1801 = vmatpush1.msra.mxu0 0.0
    %1802 = vmatprep.subr.mxu0 0.0
    %1803 = vmatpush1.msra.mxu0 0.0
    %1804 = vmatprep.subr.mxu0 0.0
    %1805 = vmatpush1.msra.mxu0 0.0
    %1806 = vmatprep.subr.mxu0 0.0
    %1807 = vmatpush1.msra.mxu0 0.0
    %1808 = vmatprep.subr.mxu0 0.0
    %1809 = vmatpush1.msra.mxu0 0.0
    %1810 = vmatprep.subr.mxu0 0.0
    %1811 = vmatpush1.msra.mxu0 0.0
    %1812 = vmatprep.subr.mxu0 0.0
    %1813 = vmatpush1.msra.mxu0 0.0
    %1814 = vmatprep.subr.mxu0 0.0
    %1815 = vmatpush1.msra.mxu0 0.0
    %1816 = vmatprep.subr.mxu0 0.0
    %1817 = vmatpush1.msra.mxu0 0.0
    %1818 = vmatprep.subr.mxu0 0.0
    %1819 = vmatpush1.msra.mxu0 0.0
    %1820 = vmatprep.subr.mxu0 0.0
    %1821 = vmatpush1.msra.mxu0 0.0
    %1822 = vmatprep.subr.mxu0 0.0
    %1823 = vmatpush1.msra.mxu0 0.0
    %1824 = vmatprep.subr.mxu0 0.0
    %1825 = vmatpush1.msra.mxu0 0.0
    %1826 = vmatprep.subr.mxu0 0.0
    %1827 = vmatpush1.msra.mxu0 0.0
    %1828 = vmatprep.subr.mxu0 0.0
    %1829 = vmatpush1.msra.mxu0 0.0
    %1830 = vmatprep.subr.mxu0 0.0
    %1831 = vmatpush1.msra.mxu0 0.0
    %1832 = vmatprep.subr.mxu0 0.0
    %1833 = vmatpush1.msra.mxu0 0.0
    %1834 = vmatprep.subr.mxu0 0.0
    %1835 = vmatpush1.msra.mxu0 0.0
    %1836 = vmatprep.subr.mxu0 0.0
    %1837 = vmatpush1.msra.mxu0 0.0
    %1838 = vmatprep.mubr.f32.mxu0 0.0
    %1839 = vmatmul.mubr.f32.gmra.mrb[0].mxu0 %v1772
    %v1840 = vpop.f32.mrb[0].mxu0
    %v1841 = vadd.f32 %v373, %v1840
    %v1842 = vpop.f32.mrb[0].mxu0
    %1843 = vdwg.mxu0
    %1845 = vrot.lane.b32.xlu0 %v1841, 96
    %v1846 = vpop.permute.xlu0 %1845
    %v1848 = vadd.f32 %v293, %v1846
    %v1849 = vadd.f32 %v362, %v1846
    %v1850 = vxor.u32 %v1848, 2147483648
    %v1851 = vxor.u32 %v1849, 2147483648
    %v1852 = vmul.f32 %v1850, 1.442695
    %v1853 = vpow.pop %v1852
    %v1854 = vmul.f32 %v1851, 1.442695
    %v1855 = vpow.pop %v1854
    %v1856 = vadd.f32 %v1853, 1.0
    %v1857 = vadd.f32 %v1855, 1.0
    %v1858 = vrcp.pop %v1856
    %v1859 = vmul.f32 1.0, %v1858
    %v1860 = vrcp.pop %v1857
    %v1861 = vmul.f32 1.0, %v1860
    %1862 = vrot.lane.b32.xlu0 %v1841, 32
    %v1863 = vpop.permute.xlu0 %1862
    %v1865 = vmul.f32 %v1859, %v1863
    %1867 = vrot.lane.b32.xlu0 %v1865, 64
    %v1868 = vpop.permute.xlu0 %1867
    %v1870 = vadd.f32 %v362, %v1868
    %v1871 = vtanh.pop %v1870
    %v1872 = vsub.f32 1.0, %v1861
    %1874 = vrot.lane.b32.xlu0 %v1871, 96
    %v1875 = vpop.permute.xlu0 %1874
    %v1877 = vmul.f32 %v1872, %v1875
    %v1878 = vmul.f32 %v1861, %v1600
    %v1879 = vadd.f32 %v1877, %v1878
    %v1880 = vsel %vm149, %v1879, %v1771
    %v1882 = vsel %vm492, %v1880, 0
    %1884 = vmatprep.subr.mxu0 0.0
    %1885 = vmatpush1.msra.mxu0 %v79
    %1886 = vmatprep.subr.mxu0 0.0
    %1887 = vmatpush1.msra.mxu0 %v80
    %1888 = vmatprep.subr.mxu0 0.0
    %1889 = vmatpush1.msra.mxu0 %v81
    %1890 = vmatprep.subr.mxu0 0.0
    %1891 = vmatpush1.msra.mxu0 %v82
    %1892 = vmatprep.subr.mxu0 0.0
    %1893 = vmatpush1.msra.mxu0 %v83
    %1894 = vmatprep.subr.mxu0 0.0
    %1895 = vmatpush1.msra.mxu0 %v84
    %1896 = vmatprep.subr.mxu0 0.0
    %1897 = vmatpush1.msra.mxu0 %v85
    %1898 = vmatprep.subr.mxu0 0.0
    %1899 = vmatpush1.msra.mxu0 %v86
    %1900 = vmatprep.subr.mxu0 0.0
    %1901 = vmatpush1.msra.mxu0 0.0
    %1902 = vmatprep.subr.mxu0 0.0
    %1903 = vmatpush1.msra.mxu0 0.0
    %1904 = vmatprep.subr.mxu0 0.0
    %1905 = vmatpush1.msra.mxu0 0.0
    %1906 = vmatprep.subr.mxu0 0.0
    %1907 = vmatpush1.msra.mxu0 0.0
    %1908 = vmatprep.subr.mxu0 0.0
    %1909 = vmatpush1.msra.mxu0 0.0
    %1910 = vmatprep.subr.mxu0 0.0
    %1911 = vmatpush1.msra.mxu0 0.0
    %1912 = vmatprep.subr.mxu0 0.0
    %1913 = vmatpush1.msra.mxu0 0.0
    %1914 = vmatprep.subr.mxu0 0.0
    %1915 = vmatpush1.msra.mxu0 0.0
    %1916 = vmatprep.subr.mxu0 0.0
    %1917 = vmatpush1.msra.mxu0 0.0
    %1918 = vmatprep.subr.mxu0 0.0
    %1919 = vmatpush1.msra.mxu0 0.0
    %1920 = vmatprep.subr.mxu0 0.0
    %1921 = vmatpush1.msra.mxu0 0.0
    %1922 = vmatprep.subr.mxu0 0.0
    %1923 = vmatpush1.msra.mxu0 0.0
    %1924 = vmatprep.subr.mxu0 0.0
    %1925 = vmatpush1.msra.mxu0 0.0
    %1926 = vmatprep.subr.mxu0 0.0
    %1927 = vmatpush1.msra.mxu0 0.0
    %1928 = vmatprep.subr.mxu0 0.0
    %1929 = vmatpush1.msra.mxu0 0.0
    %1930 = vmatprep.subr.mxu0 0.0
    %1931 = vmatpush1.msra.mxu0 0.0
    %1932 = vmatprep.subr.mxu0 0.0
    %1933 = vmatpush1.msra.mxu0 0.0
    %1934 = vmatprep.subr.mxu0 0.0
    %1935 = vmatpush1.msra.mxu0 0.0
    %1936 = vmatprep.subr.mxu0 0.0
    %1937 = vmatpush1.msra.mxu0 0.0
    %1938 = vmatprep.subr.mxu0 0.0
    %1939 = vmatpush1.msra.mxu0 0.0
    %1940 = vmatprep.subr.mxu0 0.0
    %1941 = vmatpush1.msra.mxu0 0.0
    %1942 = vmatprep.subr.mxu0 0.0
    %1943 = vmatpush1.msra.mxu0 0.0
    %1944 = vmatprep.subr.mxu0 0.0
    %1945 = vmatpush1.msra.mxu0 0.0
    %1946 = vmatprep.subr.mxu0 0.0
    %1947 = vmatpush1.msra.mxu0 0.0
    %1948 = vmatprep.mubr.f32.mxu0 0.0
    %1949 = vmatmul.mubr.f32.gmra.mrb[0].mxu0 %v1882
    %v1950 = vpop.f32.mrb[0].mxu0
    %v1951 = vadd.f32 %v490, %v1950
    %v1952 = vpop.f32.mrb[0].mxu0
    %1953 = vdwg.mxu0
    %1955 = vrot.lane.b32.xlu0 %v1771, 96
    %v1956 = vpop.permute.xlu0 %1955
    %v1957 = vsel %vm149, %v1956, 0
    %1959 = vmatprep.subr.mxu0 0.0
    %1960 = vmatpush1.msra.mxu0 %v88
    %1961 = vmatprep.subr.mxu0 0.0
    %1962 = vmatpush1.msra.mxu0 %v89
    %1963 = vmatprep.subr.mxu0 0.0
    %1964 = vmatpush1.msra.mxu0 %v90
    %1965 = vmatprep.subr.mxu0 0.0
    %1966 = vmatpush1.msra.mxu0 %v91
    %1967 = vmatprep.subr.mxu0 0.0
    %1968 = vmatpush1.msra.mxu0 0.0
    %1969 = vmatprep.subr.mxu0 0.0
    %1970 = vmatpush1.msra.mxu0 0.0
    %1971 = vmatprep.subr.mxu0 0.0
    %1972 = vmatpush1.msra.mxu0 0.0
    %1973 = vmatprep.subr.mxu0 0.0
    %1974 = vmatpush1.msra.mxu0 0.0
    %1975 = vmatprep.subr.mxu0 0.0
    %1976 = vmatpush1.msra.mxu0 0.0
    %1977 = vmatprep.subr.mxu0 0.0
    %1978 = vmatpush1.msra.mxu0 0.0
    %1979 = vmatprep.subr.mxu0 0.0
    %1980 = vmatpush1.msra.mxu0 0.0
    %1981 = vmatprep.subr.mxu0 0.0
    %1982 = vmatpush1.msra.mxu0 0.0
    %1983 = vmatprep.subr.mxu0 0.0
    %1984 = vmatpush1.msra.mxu0 0.0
    %1985 = vmatprep.subr.mxu0 0.0
    %1986 = vmatpush1.msra.mxu0 0.0
    %1987 = vmatprep.subr.mxu0 0.0
    %1988 = vmatpush1.msra.mxu0 0.0
    %1989 = vmatprep.subr.mxu0 0.0
    %1990 = vmatpush1.msra.mxu0 0.0
    %1991 = vmatprep.subr.mxu0 0.0
    %1992 = vmatpush1.msra.mxu0 0.0
    %1993 = vmatprep.subr.mxu0 0.0
    %1994 = vmatpush1.msra.mxu0 0.0
    %1995 = vmatprep.subr.mxu0 0.0
    %1996 = vmatpush1.msra.mxu0 0.0
    %1997 = vmatprep.subr.mxu0 0.0
    %1998 = vmatpush1.msra.mxu0 0.0
    %1999 = vmatprep.subr.mxu0 0.0
    %2000 = vmatpush1.msra.mxu0 0.0
    %2001 = vmatprep.subr.mxu0 0.0
    %2002 = vmatpush1.msra.mxu0 0.0
    %2003 = vmatprep.subr.mxu0 0.0
    %2004 = vmatpush1.msra.mxu0 0.0
    %2005 = vmatprep.subr.mxu0 0.0
    %2006 = vmatpush1.msra.mxu0 0.0
    %2007 = vmatprep.subr.mxu0 0.0
    %2008 = vmatpush1.msra.mxu0 0.0
    %2009 = vmatprep.subr.mxu0 0.0
    %2010 = vmatpush1.msra.mxu0 0.0
    %2011 = vmatprep.subr.mxu0 0.0
    %2012 = vmatpush1.msra.mxu0 0.0
    %2013 = vmatprep.subr.mxu0 0.0
    %2014 = vmatpush1.msra.mxu0 0.0
    %2015 = vmatprep.subr.mxu0 0.0
    %2016 = vmatpush1.msra.mxu0 0.0
    %2017 = vmatprep.subr.mxu0 0.0
    %2018 = vmatpush1.msra.mxu0 0.0
    %2019 = vmatprep.subr.mxu0 0.0
    %2020 = vmatpush1.msra.mxu0 0.0
    %2021 = vmatprep.subr.mxu0 0.0
    %2022 = vmatpush1.msra.mxu0 0.0
    %2023 = vmatprep.mubr.f32.mxu0 0.0
    %2024 = vmatmul.mubr.f32.gmra.mrb[0].mxu0 %v1957
    %v2025 = vpop.f32.mrb[0].mxu0
    %v2026 = vadd.f32 %v570, %v2025
    %v2027 = vpop.f32.mrb[0].mxu0
    %2028 = vdwg.mxu0
    %v2029 = vxor.u32 %v1951, 2147483648
    %v2030 = vmul.f32 %v2029, 1.442695
    %v2031 = vpow.pop %v2030
    %v2032 = vadd.f32 %v2031, 1.0
    %v2033 = vrcp.pop %v2032
    %v2034 = vmul.f32 1.0, %v2033
    %v2035 = vmul.f32 %v2034, %v2026
    %2037 = vrot.lane.b32.xlu0 %v2035, 64
    %v2038 = vpop.permute.xlu0 %2037
    %v2040 = vadd.f32 %v1951, %v2038
    %v2041 = vtanh.pop %v2040
    %v2042 = vsub.f32 1.0, %v2034
    %2044 = vrot.lane.b32.xlu0 %v2041, 96
    %v2045 = vpop.permute.xlu0 %2044
    %v2047 = vmul.f32 %v2042, %v2045
    %v2048 = vmul.f32 %v2034, %v1771
    %v2049 = vadd.f32 %v2047, %v2048
    %v2051 = vsel %vm149, %v1879, 0
    %2053 = vmatprep.subr.mxu0 0.0
    %2054 = vmatpush1.msra.mxu0 %v74
    %2055 = vmatprep.subr.mxu0 0.0
    %2056 = vmatpush1.msra.mxu0 %v75
    %2057 = vmatprep.subr.mxu0 0.0
    %2058 = vmatpush1.msra.mxu0 %v76
    %2059 = vmatprep.subr.mxu0 0.0
    %2060 = vmatpush1.msra.mxu0 %v77
    %2061 = vmatprep.subr.mxu0 0.0
    %2062 = vmatpush1.msra.mxu0 0.0
    %2063 = vmatprep.subr.mxu0 0.0
    %2064 = vmatpush1.msra.mxu0 0.0
    %2065 = vmatprep.subr.mxu0 0.0
    %2066 = vmatpush1.msra.mxu0 0.0
    %2067 = vmatprep.subr.mxu0 0.0
    %2068 = vmatpush1.msra.mxu0 0.0
    %2069 = vmatprep.subr.mxu0 0.0
    %2070 = vmatpush1.msra.mxu0 0.0
    %2071 = vmatprep.subr.mxu0 0.0
    %2072 = vmatpush1.msra.mxu0 0.0
    %2073 = vmatprep.subr.mxu0 0.0
    %2074 = vmatpush1.msra.mxu0 0.0
    %2075 = vmatprep.subr.mxu0 0.0
    %2076 = vmatpush1.msra.mxu0 0.0
    %2077 = vmatprep.subr.mxu0 0.0
    %2078 = vmatpush1.msra.mxu0 0.0
    %2079 = vmatprep.subr.mxu0 0.0
    %2080 = vmatpush1.msra.mxu0 0.0
    %2081 = vmatprep.subr.mxu0 0.0
    %2082 = vmatpush1.msra.mxu0 0.0
    %2083 = vmatprep.subr.mxu0 0.0
    %2084 = vmatpush1.msra.mxu0 0.0
    %2085 = vmatprep.subr.mxu0 0.0
    %2086 = vmatpush1.msra.mxu0 0.0
    %2087 = vmatprep.subr.mxu0 0.0
    %2088 = vmatpush1.msra.mxu0 0.0
    %2089 = vmatprep.subr.mxu0 0.0
    %2090 = vmatpush1.msra.mxu0 0.0
    %2091 = vmatprep.subr.mxu0 0.0
    %2092 = vmatpush1.msra.mxu0 0.0
    %2093 = vmatprep.subr.mxu0 0.0
    %2094 = vmatpush1.msra.mxu0 0.0
    %2095 = vmatprep.subr.mxu0 0.0
    %2096 = vmatpush1.msra.mxu0 0.0
    %2097 = vmatprep.subr.mxu0 0.0
    %2098 = vmatpush1.msra.mxu0 0.0
    %2099 = vmatprep.subr.mxu0 0.0
    %2100 = vmatpush1.msra.mxu0 0.0
    %2101 = vmatprep.subr.mxu0 0.0
    %2102 = vmatpush1.msra.mxu0 0.0
    %2103 = vmatprep.subr.mxu0 0.0
    %2104 = vmatpush1.msra.mxu0 0.0
    %2105 = vmatprep.subr.mxu0 0.0
    %2106 = vmatpush1.msra.mxu0 0.0
    %2107 = vmatprep.subr.mxu0 0.0
    %2108 = vmatpush1.msra.mxu0 0.0
    %2109 = vmatprep.subr.mxu0 0.0
    %2110 = vmatpush1.msra.mxu0 0.0
    %2111 = vmatprep.subr.mxu0 0.0
    %2112 = vmatpush1.msra.mxu0 0.0
    %2113 = vmatprep.subr.mxu0 0.0
    %2114 = vmatpush1.msra.mxu0 0.0
    %2115 = vmatprep.subr.mxu0 0.0
    %2116 = vmatpush1.msra.mxu0 0.0
    %2117 = vmatprep.mubr.f32.mxu0 0.0
    %2118 = vmatmul.mubr.f32.gmra.mrb[0].mxu0 %v2051
    %v2119 = vpop.f32.mrb[0].mxu0
    %v2120 = vadd.f32 %v373, %v2119
    %v2121 = vpop.f32.mrb[0].mxu0
    %2122 = vdwg.mxu0
    %2124 = vrot.lane.b32.xlu0 %v2120, 64
    %v2125 = vpop.permute.xlu0 %2124
    %v2127 = vadd.f32 %v362, %v2125
    %v2128 = vxor.u32 %v2127, 2147483648
    %v2129 = vmul.f32 %v2128, 1.442695
    %v2130 = vpow.pop %v2129
    %v2131 = vadd.f32 %v2130, 1.0
    %v2132 = vrcp.pop %v2131
    %v2133 = vmul.f32 1.0, %v2132
    %v2134 = vmul.f32 %v2133, %v2120
    %2136 = vrot.lane.b32.xlu0 %v2134, 64
    %v2137 = vpop.permute.xlu0 %2136
    %v2139 = vadd.f32 %v364, %v2137
    %v2140 = vtanh.pop %v2139
    %v2141 = vsub.f32 1.0, %v2133
    %2143 = vrot.lane.b32.xlu0 %v2140, 96
    %v2144 = vpop.permute.xlu0 %2143
    %v2146 = vmul.f32 %v2141, %v2144
    %2147 = vrot.lane.b32.xlu0 %v1879, 96
    %v2148 = vpop.permute.xlu0 %2147
    %v2150 = vmul.f32 %v2133, %v2148
    %v2151 = vadd.f32 %v2146, %v2150
    %2153 = vrot.lane.b32.xlu0 %v2151, 32
    %v2154 = vpop.permute.xlu0 %2153
    %v2156 = vsel %vm149, %v2154, %v2049
    %v2158 = vsel %vm492, %v2156, 0
    %2160 = vmatprep.subr.mxu0 0.0
    %2161 = vmatpush1.msra.mxu0 %v79
    %2162 = vmatprep.subr.mxu0 0.0
    %2163 = vmatpush1.msra.mxu0 %v80
    %2164 = vmatprep.subr.mxu0 0.0
    %2165 = vmatpush1.msra.mxu0 %v81
    %2166 = vmatprep.subr.mxu0 0.0
    %2167 = vmatpush1.msra.mxu0 %v82
    %2168 = vmatprep.subr.mxu0 0.0
    %2169 = vmatpush1.msra.mxu0 %v83
    %2170 = vmatprep.subr.mxu0 0.0
    %2171 = vmatpush1.msra.mxu0 %v84
    %2172 = vmatprep.subr.mxu0 0.0
    %2173 = vmatpush1.msra.mxu0 %v85
    %2174 = vmatprep.subr.mxu0 0.0
    %2175 = vmatpush1.msra.mxu0 %v86
    %2176 = vmatprep.subr.mxu0 0.0
    %2177 = vmatpush1.msra.mxu0 0.0
    %2178 = vmatprep.subr.mxu0 0.0
    %2179 = vmatpush1.msra.mxu0 0.0
    %2180 = vmatprep.subr.mxu0 0.0
    %2181 = vmatpush1.msra.mxu0 0.0
    %2182 = vmatprep.subr.mxu0 0.0
    %2183 = vmatpush1.msra.mxu0 0.0
    %2184 = vmatprep.subr.mxu0 0.0
    %2185 = vmatpush1.msra.mxu0 0.0
    %2186 = vmatprep.subr.mxu0 0.0
    %2187 = vmatpush1.msra.mxu0 0.0
    %2188 = vmatprep.subr.mxu0 0.0
    %2189 = vmatpush1.msra.mxu0 0.0
    %2190 = vmatprep.subr.mxu0 0.0
    %2191 = vmatpush1.msra.mxu0 0.0
    %2192 = vmatprep.subr.mxu0 0.0
    %2193 = vmatpush1.msra.mxu0 0.0
    %2194 = vmatprep.subr.mxu0 0.0
    %2195 = vmatpush1.msra.mxu0 0.0
    %2196 = vmatprep.subr.mxu0 0.0
    %2197 = vmatpush1.msra.mxu0 0.0
    %2198 = vmatprep.subr.mxu0 0.0
    %2199 = vmatpush1.msra.mxu0 0.0
    %2200 = vmatprep.subr.mxu0 0.0
    %2201 = vmatpush1.msra.mxu0 0.0
    %2202 = vmatprep.subr.mxu0 0.0
    %2203 = vmatpush1.msra.mxu0 0.0
    %2204 = vmatprep.subr.mxu0 0.0
    %2205 = vmatpush1.msra.mxu0 0.0
    %2206 = vmatprep.subr.mxu0 0.0
    %2207 = vmatpush1.msra.mxu0 0.0
    %2208 = vmatprep.subr.mxu0 0.0
    %2209 = vmatpush1.msra.mxu0 0.0
    %2210 = vmatprep.subr.mxu0 0.0
    %2211 = vmatpush1.msra.mxu0 0.0
    %2212 = vmatprep.subr.mxu0 0.0
    %2213 = vmatpush1.msra.mxu0 0.0
    %2214 = vmatprep.subr.mxu0 0.0
    %2215 = vmatpush1.msra.mxu0 0.0
    %2216 = vmatprep.subr.mxu0 0.0
    %2217 = vmatpush1.msra.mxu0 0.0
    %2218 = vmatprep.subr.mxu0 0.0
    %2219 = vmatpush1.msra.mxu0 0.0
    %2220 = vmatprep.subr.mxu0 0.0
    %2221 = vmatpush1.msra.mxu0 0.0
    %2222 = vmatprep.subr.mxu0 0.0
    %2223 = vmatpush1.msra.mxu0 0.0
    %2224 = vmatprep.mubr.f32.mxu0 0.0
    %2225 = vmatmul.mubr.f32.gmra.mrb[0].mxu0 %v2158
    %v2226 = vpop.f32.mrb[0].mxu0
    %v2227 = vadd.f32 %v490, %v2226
    %v2228 = vpop.f32.mrb[0].mxu0
    %2229 = vdwg.mxu0
    %2231 = vrot.lane.b32.xlu0 %v2049, 96
    %v2232 = vpop.permute.xlu0 %2231
    %v2233 = vsel %vm149, %v2232, 0
    %2235 = vmatprep.subr.mxu0 0.0
    %2236 = vmatpush1.msra.mxu0 %v88
    %2237 = vmatprep.subr.mxu0 0.0
    %2238 = vmatpush1.msra.mxu0 %v89
    %2239 = vmatprep.subr.mxu0 0.0
    %2240 = vmatpush1.msra.mxu0 %v90
    %2241 = vmatprep.subr.mxu0 0.0
    %2242 = vmatpush1.msra.mxu0 %v91
    %2243 = vmatprep.subr.mxu0 0.0
    %2244 = vmatpush1.msra.mxu0 0.0
    %2245 = vmatprep.subr.mxu0 0.0
    %2246 = vmatpush1.msra.mxu0 0.0
    %2247 = vmatprep.subr.mxu0 0.0
    %2248 = vmatpush1.msra.mxu0 0.0
    %2249 = vmatprep.subr.mxu0 0.0
    %2250 = vmatpush1.msra.mxu0 0.0
    %2251 = vmatprep.subr.mxu0 0.0
    %2252 = vmatpush1.msra.mxu0 0.0
    %2253 = vmatprep.subr.mxu0 0.0
    %2254 = vmatpush1.msra.mxu0 0.0
    %2255 = vmatprep.subr.mxu0 0.0
    %2256 = vmatpush1.msra.mxu0 0.0
    %2257 = vmatprep.subr.mxu0 0.0
    %2258 = vmatpush1.msra.mxu0 0.0
    %2259 = vmatprep.subr.mxu0 0.0
    %2260 = vmatpush1.msra.mxu0 0.0
    %2261 = vmatprep.subr.mxu0 0.0
    %2262 = vmatpush1.msra.mxu0 0.0
    %2263 = vmatprep.subr.mxu0 0.0
    %2264 = vmatpush1.msra.mxu0 0.0
    %2265 = vmatprep.subr.mxu0 0.0
    %2266 = vmatpush1.msra.mxu0 0.0
    %2267 = vmatprep.subr.mxu0 0.0
    %2268 = vmatpush1.msra.mxu0 0.0
    %2269 = vmatprep.subr.mxu0 0.0
    %2270 = vmatpush1.msra.mxu0 0.0
    %2271 = vmatprep.subr.mxu0 0.0
    %2272 = vmatpush1.msra.mxu0 0.0
    %2273 = vmatprep.subr.mxu0 0.0
    %2274 = vmatpush1.msra.mxu0 0.0
    %2275 = vmatprep.subr.mxu0 0.0
    %2276 = vmatpush1.msra.mxu0 0.0
    %2277 = vmatprep.subr.mxu0 0.0
    %2278 = vmatpush1.msra.mxu0 0.0
    %2279 = vmatprep.subr.mxu0 0.0
    %2280 = vmatpush1.msra.mxu0 0.0
    %2281 = vmatprep.subr.mxu0 0.0
    %2282 = vmatpush1.msra.mxu0 0.0
    %2283 = vmatprep.subr.mxu0 0.0
    %2284 = vmatpush1.msra.mxu0 0.0
    %2285 = vmatprep.subr.mxu0 0.0
    %2286 = vmatpush1.msra.mxu0 0.0
    %2287 = vmatprep.subr.mxu0 0.0
    %2288 = vmatpush1.msra.mxu0 0.0
    %2289 = vmatprep.subr.mxu0 0.0
    %2290 = vmatpush1.msra.mxu0 0.0
    %2291 = vmatprep.subr.mxu0 0.0
    %2292 = vmatpush1.msra.mxu0 0.0
    %2293 = vmatprep.subr.mxu0 0.0
    %2294 = vmatpush1.msra.mxu0 0.0
    %2295 = vmatprep.subr.mxu0 0.0
    %2296 = vmatpush1.msra.mxu0 0.0
    %2297 = vmatprep.subr.mxu0 0.0
    %2298 = vmatpush1.msra.mxu0 0.0
    %2299 = vmatprep.mubr.f32.mxu0 0.0
    %2300 = vmatmul.mubr.f32.gmra.mrb[0].mxu0 %v2233
    %v2301 = vpop.f32.mrb[0].mxu0
    %v2302 = vadd.f32 %v570, %v2301
    %v2303 = vpop.f32.mrb[0].mxu0
    %2304 = vdwg.mxu0
    %v2305 = vxor.u32 %v2227, 2147483648
    %v2306 = vmul.f32 %v2305, 1.442695
    %v2307 = vpow.pop %v2306
    %v2308 = vadd.f32 %v2307, 1.0
    %v2309 = vrcp.pop %v2308
    %v2310 = vmul.f32 1.0, %v2309
    %v2311 = vmul.f32 %v2310, %v2302
    %2313 = vrot.lane.b32.xlu0 %v2311, 64
    %v2314 = vpop.permute.xlu0 %2313
    %v2316 = vadd.f32 %v2227, %v2314
    %v2317 = vtanh.pop %v2316
    %v2318 = vsub.f32 1.0, %v2310
    %2320 = vrot.lane.b32.xlu0 %v2317, 96
    %v2321 = vpop.permute.xlu0 %2320
    %v2323 = vmul.f32 %v2318, %v2321
    %v2324 = vmul.f32 %v2310, %v2049
    %v2325 = vadd.f32 %v2323, %v2324
    %v2326 = vsel %vm149, %v2154, 0
    %2328 = vmatprep.subr.mxu0 0.0
    %2329 = vmatpush1.msra.mxu0 %v74
    %2330 = vmatprep.subr.mxu0 0.0
    %2331 = vmatpush1.msra.mxu0 %v75
    %2332 = vmatprep.subr.mxu0 0.0
    %2333 = vmatpush1.msra.mxu0 %v76
    %2334 = vmatprep.subr.mxu0 0.0
    %2335 = vmatpush1.msra.mxu0 %v77
    %2336 = vmatprep.subr.mxu0 0.0
    %2337 = vmatpush1.msra.mxu0 0.0
    %2338 = vmatprep.subr.mxu0 0.0
    %2339 = vmatpush1.msra.mxu0 0.0
    %2340 = vmatprep.subr.mxu0 0.0
    %2341 = vmatpush1.msra.mxu0 0.0
    %2342 = vmatprep.subr.mxu0 0.0
    %2343 = vmatpush1.msra.mxu0 0.0
    %2344 = vmatprep.subr.mxu0 0.0
    %2345 = vmatpush1.msra.mxu0 0.0
    %2346 = vmatprep.subr.mxu0 0.0
    %2347 = vmatpush1.msra.mxu0 0.0
    %2348 = vmatprep.subr.mxu0 0.0
    %2349 = vmatpush1.msra.mxu0 0.0
    %2350 = vmatprep.subr.mxu0 0.0
    %2351 = vmatpush1.msra.mxu0 0.0
    %2352 = vmatprep.subr.mxu0 0.0
    %2353 = vmatpush1.msra.mxu0 0.0
    %2354 = vmatprep.subr.mxu0 0.0
    %2355 = vmatpush1.msra.mxu0 0.0
    %2356 = vmatprep.subr.mxu0 0.0
    %2357 = vmatpush1.msra.mxu0 0.0
    %2358 = vmatprep.subr.mxu0 0.0
    %2359 = vmatpush1.msra.mxu0 0.0
    %2360 = vmatprep.subr.mxu0 0.0
    %2361 = vmatpush1.msra.mxu0 0.0
    %2362 = vmatprep.subr.mxu0 0.0
    %2363 = vmatpush1.msra.mxu0 0.0
    %2364 = vmatprep.subr.mxu0 0.0
    %2365 = vmatpush1.msra.mxu0 0.0
    %2366 = vmatprep.subr.mxu0 0.0
    %2367 = vmatpush1.msra.mxu0 0.0
    %2368 = vmatprep.subr.mxu0 0.0
    %2369 = vmatpush1.msra.mxu0 0.0
    %2370 = vmatprep.subr.mxu0 0.0
    %2371 = vmatpush1.msra.mxu0 0.0
    %2372 = vmatprep.subr.mxu0 0.0
    %2373 = vmatpush1.msra.mxu0 0.0
    %2374 = vmatprep.subr.mxu0 0.0
    %2375 = vmatpush1.msra.mxu0 0.0
    %2376 = vmatprep.subr.mxu0 0.0
    %2377 = vmatpush1.msra.mxu0 0.0
    %2378 = vmatprep.subr.mxu0 0.0
    %2379 = vmatpush1.msra.mxu0 0.0
    %2380 = vmatprep.subr.mxu0 0.0
    %2381 = vmatpush1.msra.mxu0 0.0
    %2382 = vmatprep.subr.mxu0 0.0
    %2383 = vmatpush1.msra.mxu0 0.0
    %2384 = vmatprep.subr.mxu0 0.0
    %2385 = vmatpush1.msra.mxu0 0.0
    %2386 = vmatprep.subr.mxu0 0.0
    %2387 = vmatpush1.msra.mxu0 0.0
    %2388 = vmatprep.subr.mxu0 0.0
    %2389 = vmatpush1.msra.mxu0 0.0
    %2390 = vmatprep.subr.mxu0 0.0
    %2391 = vmatpush1.msra.mxu0 0.0
    %2392 = vmatprep.mubr.f32.mxu0 0.0
    %2393 = vmatmul.mubr.f32.gmra.mrb[0].mxu0 %v2326
    %v2394 = vpop.f32.mrb[0].mxu0
    %v2395 = vadd.f32 %v373, %v2394
    %v2396 = vpop.f32.mrb[0].mxu0
    %2397 = vdwg.mxu0
    %2399 = vrot.lane.b32.xlu0 %v2395, 32
    %v2400 = vpop.permute.xlu0 %2399
    %v2402 = vadd.f32 %v364, %v2400
    %v2403 = vxor.u32 %v2402, 2147483648
    %v2404 = vmul.f32 %v2403, 1.442695
    %v2405 = vpow.pop %v2404
    %v2406 = vadd.f32 %v2405, 1.0
    %v2407 = vrcp.pop %v2406
    %v2408 = vmul.f32 1.0, %v2407
    %2409 = vrot.lane.b32.xlu0 %v2395, 96
    %v2410 = vpop.permute.xlu0 %2409
    %v2412 = vmul.f32 %v2408, %v2410
    %2414 = vrot.lane.b32.xlu0 %v2412, 64
    %v2415 = vpop.permute.xlu0 %2414
    %v2417 = vadd.f32 %v364, %v2415
    %v2418 = vtanh.pop %v2417
    %v2419 = vsub.f32 1.0, %v2408
    %2421 = vrot.lane.b32.xlu0 %v2418, 96
    %v2422 = vpop.permute.xlu0 %2421
    %v2424 = vmul.f32 %v2419, %v2422
    %2425 = vrot.lane.b32.xlu0 %v2151, 96
    %v2426 = vpop.permute.xlu0 %2425
    %v2428 = vmul.f32 %v2408, %v2426
    %v2429 = vadd.f32 %v2424, %v2428
    %2431 = vrot.lane.b32.xlu0 %v2429, 64
    %v2432 = vpop.permute.xlu0 %2431
    %v2434 = vsel %vm149, %v2432, %v2325
    %v2436 = vsel %vm492, %v2434, 0
    %2438 = vmatprep.subr.mxu0 0.0
    %2439 = vmatpush1.msra.mxu0 %v79
    %2440 = vmatprep.subr.mxu0 0.0
    %2441 = vmatpush1.msra.mxu0 %v80
    %2442 = vmatprep.subr.mxu0 0.0
    %2443 = vmatpush1.msra.mxu0 %v81
    %2444 = vmatprep.subr.mxu0 0.0
    %2445 = vmatpush1.msra.mxu0 %v82
    %2446 = vmatprep.subr.mxu0 0.0
    %2447 = vmatpush1.msra.mxu0 %v83
    %2448 = vmatprep.subr.mxu0 0.0
    %2449 = vmatpush1.msra.mxu0 %v84
    %2450 = vmatprep.subr.mxu0 0.0
    %2451 = vmatpush1.msra.mxu0 %v85
    %2452 = vmatprep.subr.mxu0 0.0
    %2453 = vmatpush1.msra.mxu0 %v86
    %2454 = vmatprep.subr.mxu0 0.0
    %2455 = vmatpush1.msra.mxu0 0.0
    %2456 = vmatprep.subr.mxu0 0.0
    %2457 = vmatpush1.msra.mxu0 0.0
    %2458 = vmatprep.subr.mxu0 0.0
    %2459 = vmatpush1.msra.mxu0 0.0
    %2460 = vmatprep.subr.mxu0 0.0
    %2461 = vmatpush1.msra.mxu0 0.0
    %2462 = vmatprep.subr.mxu0 0.0
    %2463 = vmatpush1.msra.mxu0 0.0
    %2464 = vmatprep.subr.mxu0 0.0
    %2465 = vmatpush1.msra.mxu0 0.0
    %2466 = vmatprep.subr.mxu0 0.0
    %2467 = vmatpush1.msra.mxu0 0.0
    %2468 = vmatprep.subr.mxu0 0.0
    %2469 = vmatpush1.msra.mxu0 0.0
    %2470 = vmatprep.subr.mxu0 0.0
    %2471 = vmatpush1.msra.mxu0 0.0
    %2472 = vmatprep.subr.mxu0 0.0
    %2473 = vmatpush1.msra.mxu0 0.0
    %2474 = vmatprep.subr.mxu0 0.0
    %2475 = vmatpush1.msra.mxu0 0.0
    %2476 = vmatprep.subr.mxu0 0.0
    %2477 = vmatpush1.msra.mxu0 0.0
    %2478 = vmatprep.subr.mxu0 0.0
    %2479 = vmatpush1.msra.mxu0 0.0
    %2480 = vmatprep.subr.mxu0 0.0
    %2481 = vmatpush1.msra.mxu0 0.0
    %2482 = vmatprep.subr.mxu0 0.0
    %2483 = vmatpush1.msra.mxu0 0.0
    %2484 = vmatprep.subr.mxu0 0.0
    %2485 = vmatpush1.msra.mxu0 0.0
    %2486 = vmatprep.subr.mxu0 0.0
    %2487 = vmatpush1.msra.mxu0 0.0
    %2488 = vmatprep.subr.mxu0 0.0
    %2489 = vmatpush1.msra.mxu0 0.0
    %2490 = vmatprep.subr.mxu0 0.0
    %2491 = vmatpush1.msra.mxu0 0.0
    %2492 = vmatprep.subr.mxu0 0.0
    %2493 = vmatpush1.msra.mxu0 0.0
    %2494 = vmatprep.subr.mxu0 0.0
    %2495 = vmatpush1.msra.mxu0 0.0
    %2496 = vmatprep.subr.mxu0 0.0
    %2497 = vmatpush1.msra.mxu0 0.0
    %2498 = vmatprep.subr.mxu0 0.0
    %2499 = vmatpush1.msra.mxu0 0.0
    %2500 = vmatprep.subr.mxu0 0.0
    %2501 = vmatpush1.msra.mxu0 0.0
    %2502 = vmatprep.mubr.f32.mxu0 0.0
    %2503 = vmatmul.mubr.f32.gmra.mrb[0].mxu0 %v2436
    %v2504 = vpop.f32.mrb[0].mxu0
    %v2505 = vadd.f32 %v490, %v2504
    %v2506 = vpop.f32.mrb[0].mxu0
    %2507 = vdwg.mxu0
    %2509 = vrot.lane.b32.xlu0 %v2325, 96
    %v2510 = vpop.permute.xlu0 %2509
    %v2511 = vsel %vm149, %v2510, 0
    %2513 = vmatprep.subr.mxu0 0.0
    %2514 = vmatpush1.msra.mxu0 %v88
    %2515 = vmatprep.subr.mxu0 0.0
    %2516 = vmatpush1.msra.mxu0 %v89
    %2517 = vmatprep.subr.mxu0 0.0
    %2518 = vmatpush1.msra.mxu0 %v90
    %2519 = vmatprep.subr.mxu0 0.0
    %2520 = vmatpush1.msra.mxu0 %v91
    %2521 = vmatprep.subr.mxu0 0.0
    %2522 = vmatpush1.msra.mxu0 0.0
    %2523 = vmatprep.subr.mxu0 0.0
    %2524 = vmatpush1.msra.mxu0 0.0
    %2525 = vmatprep.subr.mxu0 0.0
    %2526 = vmatpush1.msra.mxu0 0.0
    %2527 = vmatprep.subr.mxu0 0.0
    %2528 = vmatpush1.msra.mxu0 0.0
    %2529 = vmatprep.subr.mxu0 0.0
    %2530 = vmatpush1.msra.mxu0 0.0
    %2531 = vmatprep.subr.mxu0 0.0
    %2532 = vmatpush1.msra.mxu0 0.0
    %2533 = vmatprep.subr.mxu0 0.0
    %2534 = vmatpush1.msra.mxu0 0.0
    %2535 = vmatprep.subr.mxu0 0.0
    %2536 = vmatpush1.msra.mxu0 0.0
    %2537 = vmatprep.subr.mxu0 0.0
    %2538 = vmatpush1.msra.mxu0 0.0
    %2539 = vmatprep.subr.mxu0 0.0
    %2540 = vmatpush1.msra.mxu0 0.0
    %2541 = vmatprep.subr.mxu0 0.0
    %2542 = vmatpush1.msra.mxu0 0.0
    %2543 = vmatprep.subr.mxu0 0.0
    %2544 = vmatpush1.msra.mxu0 0.0
    %2545 = vmatprep.subr.mxu0 0.0
    %2546 = vmatpush1.msra.mxu0 0.0
    %2547 = vmatprep.subr.mxu0 0.0
    %2548 = vmatpush1.msra.mxu0 0.0
    %2549 = vmatprep.subr.mxu0 0.0
    %2550 = vmatpush1.msra.mxu0 0.0
    %2551 = vmatprep.subr.mxu0 0.0
    %2552 = vmatpush1.msra.mxu0 0.0
    %2553 = vmatprep.subr.mxu0 0.0
    %2554 = vmatpush1.msra.mxu0 0.0
    %2555 = vmatprep.subr.mxu0 0.0
    %2556 = vmatpush1.msra.mxu0 0.0
    %2557 = vmatprep.subr.mxu0 0.0
    %2558 = vmatpush1.msra.mxu0 0.0
    %2559 = vmatprep.subr.mxu0 0.0
    %2560 = vmatpush1.msra.mxu0 0.0
    %2561 = vmatprep.subr.mxu0 0.0
    %2562 = vmatpush1.msra.mxu0 0.0
    %2563 = vmatprep.subr.mxu0 0.0
    %2564 = vmatpush1.msra.mxu0 0.0
    %2565 = vmatprep.subr.mxu0 0.0
    %2566 = vmatpush1.msra.mxu0 0.0
    %2567 = vmatprep.subr.mxu0 0.0
    %2568 = vmatpush1.msra.mxu0 0.0
    %2569 = vmatprep.subr.mxu0 0.0
    %2570 = vmatpush1.msra.mxu0 0.0
    %2571 = vmatprep.subr.mxu0 0.0
    %2572 = vmatpush1.msra.mxu0 0.0
    %2573 = vmatprep.subr.mxu0 0.0
    %2574 = vmatpush1.msra.mxu0 0.0
    %2575 = vmatprep.subr.mxu0 0.0
    %2576 = vmatpush1.msra.mxu0 0.0
    %2577 = vmatprep.mubr.f32.mxu0 0.0
    %2578 = vmatmul.mubr.f32.gmra.mrb[0].mxu0 %v2511
    %v2579 = vpop.f32.mrb[0].mxu0
    %v2580 = vadd.f32 %v570, %v2579
    %v2581 = vpop.f32.mrb[0].mxu0
    %2582 = vdwg.mxu0
    %v2583 = vxor.u32 %v2505, 2147483648
    %v2584 = vmul.f32 %v2583, 1.442695
    %v2585 = vpow.pop %v2584
    %v2586 = vadd.f32 %v2585, 1.0
    %v2587 = vrcp.pop %v2586
    %v2588 = vmul.f32 1.0, %v2587
    %v2589 = vmul.f32 %v2588, %v2580
    %2591 = vrot.lane.b32.xlu0 %v2589, 64
    %v2592 = vpop.permute.xlu0 %2591
    %v2594 = vadd.f32 %v2505, %v2592
    %v2595 = vtanh.pop %v2594
    %v2596 = vsub.f32 1.0, %v2588
    %2598 = vrot.lane.b32.xlu0 %v2595, 96
    %v2599 = vpop.permute.xlu0 %2598
    %v2601 = vmul.f32 %v2596, %v2599
    %v2602 = vmul.f32 %v2588, %v2325
    %v2603 = vadd.f32 %v2601, %v2602
    %2605 = vrot.lane.b32.xlu0 %v1218, 32
    %v2606 = vpop.permute.xlu0 %2605
    %2608 = vrot.lane.b32.xlu0 %v1496, 64
    %v2609 = vpop.permute.xlu0 %2608
    %2612 = vrot.lane.b32.xlu0 %v2325, 32
    %v2613 = vpop.permute.xlu0 %2612
    %2616 = vrot.lane.b32.xlu0 %v2603, 64
    %v2617 = vpop.permute.xlu0 %2616
    %v2619 = vsel %vm149, %v849, %v942
    %v2620 = vsel %vm492, %v2619, %v2606
    %vm2621 = vcmask 785408
    %v2622 = vsel %vm2621, %v2620, %v2609
    %v2623 = vsel %vm149, %v1956, %v2049
    %v2624 = vsel %vm492, %v2623, %v2613
    %v2625 = vsel %vm2621, %v2624, %v2617
    %v2626 = vld [vmem:[%s10] sm:$0xff]
    %v2627 = vld [vmem:[%s10 + $0x8] sm:$0xff]
    %v2628 = vld [vmem:[%s10 + $0x10] sm:$0xff]
    %v2629 = vld [vmem:[%s10 + $0x18] sm:$0xff]
    %v2630 = vld [vmem:[%s10 + $0x20] sm:$0xff]
    %v2631 = vld [vmem:[%s10 + $0x28] sm:$0xff]
    %v2632 = vld [vmem:[%s10 + $0x30] sm:$0xff]
    %v2633 = vld [vmem:[%s10 + $0x38] sm:$0xff]
    %v2634 = vld [vmem:[%s10 + $0x40] sm:$0xff]
    %v2635 = vld [vmem:[%s10 + $0x48] sm:$0xff]
    %v2636 = vld [vmem:[%s10 + $0x50] sm:$0xff]
    %v2637 = vld [vmem:[%s10 + $0x58] sm:$0xff]
    %v2638 = vld [vmem:[%s10 + $0x60] sm:$0xff]
    %v2639 = vld [vmem:[%s10 + $0x68] sm:$0xff]
    %v2640 = vld [vmem:[%s10 + $0x70] sm:$0xff]
    %v2641 = vld [vmem:[%s10 + $0x78] sm:$0xff]
    %v2642 = vld [vmem:[%s10 + $0x80] sm:$0xff]
    %v2643 = vld [vmem:[%s10 + $0x88] sm:$0xff]
    %v2644 = vld [vmem:[%s10 + $0x90] sm:$0xff]
    %v2645 = vld [vmem:[%s10 + $0x98] sm:$0xff]
    %v2646 = vld [vmem:[%s10 + $0xa0] sm:$0xff]
    %v2647 = vld [vmem:[%s10 + $0xa8] sm:$0xff]
    %v2648 = vld [vmem:[%s10 + $0xb0] sm:$0xff]
    %v2649 = vld [vmem:[%s10 + $0xb8] sm:$0xff]
    %v2650 = vld [vmem:[%s10 + $0xc0] sm:$0xff]
    %v2651 = vld [vmem:[%s10 + $0xc8] sm:$0xff]
    %v2652 = vld [vmem:[%s10 + $0xd0] sm:$0xff]
    %v2653 = vld [vmem:[%s10 + $0xd8] sm:$0xff]
    %v2654 = vld [vmem:[%s10 + $0xe0] sm:$0xff]
    %v2655 = vld [vmem:[%s10 + $0xe8] sm:$0xff]
    %v2656 = vld [vmem:[%s10 + $0xf0] sm:$0xff]
    %v2657 = vld [vmem:[%s10 + $0xf8] sm:$0xff]
    %v2658 = vld [vmem:[%s11] sm:$0x1]
    %v2660 = vlaneseq
    %v2661 = vshrl.u32 %v2660, 7
    %v2662 = vsub.s32 0, %v2661
    %v2663 = vrot.slane %v2658, %v2662
    %2665 = vmatprep.subr.mxu0 0.0
    %2666 = vmatpush1.msra.mxu0 %v2626
    %2667 = vmatprep.subr.mxu0 0.0
    %2668 = vmatpush1.msra.mxu0 %v2627
    %2669 = vmatprep.subr.mxu0 0.0
    %2670 = vmatpush1.msra.mxu0 %v2628
    %2671 = vmatprep.subr.mxu0 0.0
    %2672 = vmatpush1.msra.mxu0 %v2629
    %2673 = vmatprep.subr.mxu0 0.0
    %2674 = vmatpush1.msra.mxu0 %v2630
    %2675 = vmatprep.subr.mxu0 0.0
    %2676 = vmatpush1.msra.mxu0 %v2631
    %2677 = vmatprep.subr.mxu0 0.0
    %2678 = vmatpush1.msra.mxu0 %v2632
    %2679 = vmatprep.subr.mxu0 0.0
    %2680 = vmatpush1.msra.mxu0 %v2633
    %2681 = vmatprep.subr.mxu0 0.0
    %2682 = vmatpush1.msra.mxu0 %v2634
    %2683 = vmatprep.subr.mxu0 0.0
    %2684 = vmatpush1.msra.mxu0 %v2635
    %2685 = vmatprep.subr.mxu0 0.0
    %2686 = vmatpush1.msra.mxu0 %v2636
    %2687 = vmatprep.subr.mxu0 0.0
    %2688 = vmatpush1.msra.mxu0 %v2637
    %2689 = vmatprep.subr.mxu0 0.0
    %2690 = vmatpush1.msra.mxu0 %v2638
    %2691 = vmatprep.subr.mxu0 0.0
    %2692 = vmatpush1.msra.mxu0 %v2639
    %2693 = vmatprep.subr.mxu0 0.0
    %2694 = vmatpush1.msra.mxu0 %v2640
    %2695 = vmatprep.subr.mxu0 0.0
    %2696 = vmatpush1.msra.mxu0 %v2641
    %2697 = vmatprep.subr.mxu0 0.0
    %2698 = vmatpush1.msra.mxu0 %v2642
    %2699 = vmatprep.subr.mxu0 0.0
    %2700 = vmatpush1.msra.mxu0 %v2643
    %2701 = vmatprep.subr.mxu0 0.0
    %2702 = vmatpush1.msra.mxu0 %v2644
    %2703 = vmatprep.subr.mxu0 0.0
    %2704 = vmatpush1.msra.mxu0 %v2645
    %2705 = vmatprep.subr.mxu0 0.0
    %2706 = vmatpush1.msra.mxu0 %v2646
    %2707 = vmatprep.subr.mxu0 0.0
    %2708 = vmatpush1.msra.mxu0 %v2647
    %2709 = vmatprep.subr.mxu0 0.0
    %2710 = vmatpush1.msra.mxu0 %v2648
    %2711 = vmatprep.subr.mxu0 0.0
    %2712 = vmatpush1.msra.mxu0 %v2649
    %2713 = vmatprep.subr.mxu0 0.0
    %2714 = vmatpush1.msra.mxu0 %v2650
    %2715 = vmatprep.subr.mxu0 0.0
    %2716 = vmatpush1.msra.mxu0 %v2651
    %2717 = vmatprep.subr.mxu0 0.0
    %2718 = vmatpush1.msra.mxu0 %v2652
    %2719 = vmatprep.subr.mxu0 0.0
    %2720 = vmatpush1.msra.mxu0 %v2653
    %2721 = vmatprep.subr.mxu0 0.0
    %2722 = vmatpush1.msra.mxu0 %v2654
    %2723 = vmatprep.subr.mxu0 0.0
    %2724 = vmatpush1.msra.mxu0 %v2655
    %2725 = vmatprep.subr.mxu0 0.0
    %2726 = vmatpush1.msra.mxu0 %v2656
    %2727 = vmatprep.subr.mxu0 0.0
    %2728 = vmatpush1.msra.mxu0 %v2657
    %2729 = vmatprep.mubr.f32.mxu0 %v2625
    %2730 = vmatmul.mubr.f32.gmra.mrb[0].mxu0 %v2622
    %v2731 = vpop.f32.mrb[0].mxu0
    %v2732 = vadd.f32 %v2663, %v2731
    %v2733 = vpop.f32.mrb[0].mxu0
    %2734 = vdwg.mxu0
    %vm2735 = vcmask 254976
    %2736 = vst.msk [vmem:[#allocation7] sm:$0x3] %vm2735, %v2732
    // Predicated region
    $region58: #{tpu_custom_call.1} parent=1 // pred_check
      _
    $region59: #{tpu_custom_call.1} parent=1 // pred_check_branch
      %2738 = sbr.rel (0) target = $region61
    $region60: #{tpu_custom_call.1} parent=1 // pred_region
      %s2740 = ssub.s32 32, 32
      %2741 = vsyncadd [#allocation4], %s2740
      %s2743 = sshll.u32 [#allocation7], 4
      %s2744 = int_to_ptr.vmem [resolvable:$true] %s2743
      %2746 = dma.vmem_to_hbm [thread:$0]  %s2744, 32, %s12, [#allocation4]
    $region61: #{tpu_custom_call.1} parent=1 // pred_fallthru
      _
    // Predicated region
    $region62: #{tpu_custom_call.1} parent=1 // pred_check
      _
    $region63: #{tpu_custom_call.1} parent=1 // pred_check_branch
      %2748 = sbr.rel (0) target = $region65
    $region64: #{tpu_custom_call.1} parent=1 // pred_region
      %2749 = dma.done [#allocation4], 32
    $region65: #{tpu_custom_call.1} parent=1 // pred_fallthru
      _
    %2750 = vsyncpa [#allocation3], 1
    %2751 = vsyncpa [#allocation6], 1
    %2752 = vsyncpa [#allocation4], 1

</llo_original>
